<compile_context>
chip_gen: v7x
topology: tpu7x:2x2x1
jax: 0.10.0
libtpu: 0.0.40
codegen_flags: <defaults>
</compile_context>

<pallas_src>
import functools

import numpy as np
import jax
import jax.numpy as jnp
from jax import lax
from jax.experimental import pallas as pl
from jax.experimental.pallas import tpu as pltpu


def _round_up(v, m):
    return ((v + m - 1) // m) * m


def _make_adjacency_kernel(num_domains, B, K, Bp, Kp):
    """Kernel: normalize -> batched self sims + fused cross sims -> top-k scatter."""
    D1 = num_domains + 1
    NEG = float("-inf")

    def topk_scatter(sim, want_idx):
        """Row-wise top-K of sim (D, B, B) -> scatter values (D, B, Bp) [+ indices (D, B, Kp)]."""
        D = sim.shape[0]
        col = lax.broadcasted_iota(jnp.int32, (D, B, B), 2)
        colp = lax.broadcasted_iota(jnp.int32, (D, B, Bp), 2)
        ngh = jnp.zeros((D, B, Bp), jnp.float32)
        if want_idx:
            kcol = lax.broadcasted_iota(jnp.int32, (D, B, Kp), 2)
            idx = jnp.zeros((D, B, Kp), jnp.int32)
        else:
            idx = None
        work = sim
        for t in range(K):                       # K is small -> static unroll
            m = jnp.max(work, axis=-1, keepdims=True)                              # (D, B, 1)
            first = jnp.min(jnp.where(work == m, col, B), axis=-1, keepdims=True)  # lowest argmax
            ngh = jnp.where(colp == first, m, ngh)       # selected value IS the row max
            if want_idx:
                idx = jnp.where(kcol == t, first, idx)
            if t != K - 1:                       # masking after the last pick is dead work
                work = jnp.where(col == first, NEG, work)
        return ngh, idx

    def kernel(x_ref, self_ref, cross_ref, idx_ref):
        x = x_ref[...]                                                # (D1, B, F)
        # Fused F.normalize(p=2, dim=1): x * rsqrt(max(||x||^2, 1e-24)).
        ssq = jnp.sum(x * x, axis=-1, keepdims=True)
        xn = x * lax.rsqrt(jnp.maximum(ssq, 1e-24))

        # --- self similarities: ONE batched matmul over the domain axis ------
        sim_self = lax.dot_general(
            xn, xn, (((2,), (2,)), ((0,), (0,))),                     # (D1, B, B)
            preferred_element_type=jnp.float32,
            precision=lax.Precision.HIGHEST)
        ngh_s, idx_s = topk_scatter(sim_self, want_idx=True)
        self_ref[...] = ngh_s
        idx_ref[...] = idx_s

        # --- cross similarities vs. the target domain: ONE flat matmul -------
        xt = xn[num_domains]                                          # (B, F)
        xc = xn[:num_domains].reshape(num_domains * B, xn.shape[-1])  # (ND*B, F)
        sim_cross = lax.dot_general(
            xc, xt, (((1,), (1,)), ((), ())),                         # (ND*B, B)
            preferred_element_type=jnp.float32,
            precision=lax.Precision.HIGHEST,
        ).reshape(num_domains, B, B)
        ngh_c, _ = topk_scatter(sim_cross, want_idx=False)
        cross_ref[...] = ngh_c

    return kernel


def adjacency_layer(x, num_domains, batch_size, k):
    """JAX/Pallas equivalent of AdjacencyLayer.forward.

    Returns (adj, topk_ngh) exactly like the PyTorch module:
      adj: (N, N) float32, N = (num_domains + 1) * batch_size
      topk_ngh: list of (batch_size, k) int32 index arrays (one per domain, incl. target)
    """
    D1 = num_domains + 1
    B = batch_size
    assert num_domains >= 1
    assert 1 <= k <= B, "k must be in [1, batch_size] (torch.topk semantics)"
    Fdim = x.shape[1]
    assert x.shape[0] == D1 * B
    Bp = _round_up(B, 128)      # lane-dense output widths (unmasked vst)
    Kp = _round_up(k, 128)
    x3 = x.astype(jnp.float32).reshape(D1, B, Fdim)

    kernel = _make_adjacency_kernel(num_domains, B, k, Bp, Kp)
    ngh_self, ngh_cross, idx = pl.pallas_call(
        kernel,
        out_shape=(
            jax.ShapeDtypeStruct((D1, B, Bp), jnp.float32),           # diagonal (self) blocks
            jax.ShapeDtypeStruct((num_domains, B, Bp), jnp.float32),  # blocks vs. target domain
            jax.ShapeDtypeStruct((D1, B, Kp), jnp.int32),             # self top-k indices
        ),
        grid_spec=pltpu.PrefetchScalarGridSpec(
            num_scalar_prefetch=0,
            grid=(1,),                                                # single fused step
            in_specs=[pl.BlockSpec((D1, B, Fdim), lambda i: (0, 0, 0))],
            out_specs=[
                pl.BlockSpec((D1, B, Bp), lambda i: (0, 0, 0)),
                pl.BlockSpec((num_domains, B, Bp), lambda i: (0, 0, 0)),
                pl.BlockSpec((D1, B, Kp), lambda i: (0, 0, 0)),
            ],
        ),
        compiler_params=pltpu.CompilerParams(
            dimension_semantics=("arbitrary",),     # single step; nothing to shard
            vmem_limit_bytes=32 * 1024 * 1024,      # explicit scoped-VMEM budget (v5e default is 16 MiB)
        ),
    )(x3)

    # --- glue: assemble the dense adjacency with two vectorized scatters -----
    N = D1 * B
    blocks = jnp.zeros((D1, B, D1, B), jnp.float32)
    dd = jnp.arange(D1)
    blocks = blocks.at[dd, :, dd, :].set(ngh_self[:, :, :B])                      # diagonal blocks
    blocks = blocks.at[:num_domains, :, num_domains, :].set(ngh_cross[:, :, :B])  # column block j
    adj = blocks.reshape(N, N)
    topk_ngh = [idx[i, :, :k] for i in range(D1)]
    return adj, topk_ngh


def adjacency_layer_ref(x, num_domains, batch_size, k):
    """Pure-JAX reference mirroring the PyTorch forward (for the sanity check)."""
    D1 = num_domains + 1
    B = batch_size
    N = D1 * B
    x = x.astype(jnp.float32)

    def norm(v):
        return v / jnp.maximum(jnp.linalg.norm(v, axis=1, keepdims=True), 1e-12)

    def mm(a, b):
        return jnp.dot(a, b, precision=lax.Precision.HIGHEST)

    adj = jnp.zeros((N, N), jnp.float32)
    j = num_domains
    xj = norm(x[j * B:(j + 1) * B])
    for i in range(num_domains):
        xi = norm(x[i * B:(i + 1) * B])
        sim = mm(xi, xj.T)
        vals, inds = lax.top_k(sim, k)
        ngh = jnp.zeros((B, B), jnp.float32).at[jnp.arange(B)[:, None], inds].set(vals)
        adj = adj.at[i * B:(i + 1) * B, j * B:(j + 1) * B].set(ngh)
    topk_ngh = []
    for i in range(D1):
        xi = norm(x[i * B:(i + 1) * B])
        sim = mm(xi, xi.T)
        vals, inds = lax.top_k(sim, k)
        ngh = jnp.zeros((B, B), jnp.float32).at[jnp.arange(B)[:, None], inds].set(vals)
        adj = adj.at[i * B:(i + 1) * B, i * B:(i + 1) * B].set(ngh)
        topk_ngh.append(inds)
    return adj, topk_ngh


if __name__ == "__main__":
    num_domains, batch_size, k, feat = 3, 8, 3, 32
    key = jax.random.PRNGKey(0)
    x = jax.random.normal(key, ((num_domains + 1) * batch_size, feat), dtype=jnp.float32)

    fwd = jax.jit(functools.partial(adjacency_layer, num_domains=num_domains,
                                    batch_size=batch_size, k=k))
    adj, topk_ngh = fwd(x)
    adj = jax.block_until_ready(adj)
    topk_ngh = [jax.block_until_ready(t) for t in topk_ngh]

    adj_ref, topk_ref = adjacency_layer_ref(x, num_domains, batch_size, k)
    np.testing.assert_allclose(np.asarray(adj), np.asarray(adj_ref), rtol=1e-5, atol=1e-5)
    for got, want in zip(topk_ngh, topk_ref):
        np.testing.assert_array_equal(np.asarray(got), np.asarray(want))

    print("KERNEL_OK")
</pallas_src>

<mosaic_0001>
module attributes {stable_mosaic.version = 11 : i64} {
  func.func @kernel(%arg0: i32, %arg1: memref<4x8x32xf32, #tpu.memory_space<vmem>>, %arg2: memref<4x8x128xf32, #tpu.memory_space<vmem>>, %arg3: memref<3x8x128xf32, #tpu.memory_space<vmem>>, %arg4: memref<4x8x128xi32, #tpu.memory_space<vmem>>) attributes {dimension_semantics = [#tpu.dimension_semantics<arbitrary>], iteration_bounds = array<i64: 1>, scalar_prefetch = 0 : i64, scratch_operands = 0 : i64, tpu.core_type = #tpu.core_type<tc>, window_params = [{pipeline_mode = #tpu.pipeline_mode<synchronous>, transform_indices = @transform_0, window_bounds = array<i64: 4, 8, 32>}, {pipeline_mode = #tpu.pipeline_mode<synchronous>, transform_indices = @transform_1, window_bounds = array<i64: 4, 8, 128>}, {pipeline_mode = #tpu.pipeline_mode<synchronous>, transform_indices = @transform_2, window_bounds = array<i64: 3, 8, 128>}, {pipeline_mode = #tpu.pipeline_mode<synchronous>, transform_indices = @transform_3, window_bounds = array<i64: 4, 8, 128>}]} {
    %c0 = arith.constant 0 : index
    %c0_0 = arith.constant 0 : index
    %c0_1 = arith.constant 0 : index
    %0 = vector.load %arg1[%c0, %c0_0, %c0_1] : memref<4x8x32xf32, #tpu.memory_space<vmem>>, vector<4x8x32xf32>
    %1 = arith.mulf %0, %0 : vector<4x8x32xf32>
    %cst = arith.constant dense<0.000000e+00> : vector<4x8xf32>
    %2 = vector.multi_reduction <add>, %1, %cst [2] : vector<4x8x32xf32> to vector<4x8xf32>
    %3 = vector.shape_cast %2 : vector<4x8xf32> to vector<4x8x1xf32>
    %cst_2 = arith.constant 1.000000e-24 : f32
    %4 = vector.broadcast %cst_2 : f32 to vector<4x8x1xf32>
    %5 = arith.maximumf %3, %4 : vector<4x8x1xf32>
    %6 = math.rsqrt %5 : vector<4x8x1xf32>
    %7 = vector.broadcast %6 : vector<4x8x1xf32> to vector<4x8x32xf32>
    %8 = arith.mulf %0, %7 : vector<4x8x32xf32>
    %cst_3 = arith.constant dense<0.000000e+00> : vector<4x8x8xf32>
    %9 = tpu.matmul %8, %8, %cst_3 {dimension_numbers = #tpu.dot_dimension_numbers<[2], [2], [1], [1], [0, 0, 0, 1, 1, 1], [0], [0]>, precision = #tpu.contract_precision<fp32>} : vector<4x8x32xf32>, vector<4x8x32xf32>, vector<4x8x8xf32> -> vector<4x8x8xf32>
    %10 = tpu.iota {dimensions = array<i32: 2>} : vector<4x8x8xi32>
    %11 = tpu.iota {dimensions = array<i32: 2>} : vector<4x8x128xi32>
    %cst_4 = arith.constant 0.000000e+00 : f32
    %12 = vector.broadcast %cst_4 : f32 to vector<4x8x128xf32>
    %13 = tpu.iota {dimensions = array<i32: 2>} : vector<4x8x128xi32>
    %c0_i32 = arith.constant 0 : i32
    %14 = vector.broadcast %c0_i32 : i32 to vector<4x8x128xi32>
    %cst_5 = arith.constant dense<0xFF800000> : vector<4x8xf32>
    %15 = vector.multi_reduction <maximumf>, %9, %cst_5 [2] : vector<4x8x8xf32> to vector<4x8xf32>
    %16 = vector.shape_cast %15 : vector<4x8xf32> to vector<4x8x1xf32>
    %17 = vector.broadcast %16 : vector<4x8x1xf32> to vector<4x8x8xf32>
    %18 = arith.cmpf oeq, %9, %17 : vector<4x8x8xf32>
    %c8_i32 = arith.constant 8 : i32
    %19 = vector.broadcast %c8_i32 : i32 to vector<4x8x8xi32>
    %20 = arith.select %18, %10, %19 : vector<4x8x8xi1>, vector<4x8x8xi32>
    %cst_6 = arith.constant dense<2147483647> : vector<4x8xi32>
    %21 = vector.multi_reduction <minsi>, %20, %cst_6 [2] : vector<4x8x8xi32> to vector<4x8xi32>
    %22 = vector.shape_cast %21 : vector<4x8xi32> to vector<4x8x1xi32>
    %23 = vector.broadcast %22 : vector<4x8x1xi32> to vector<4x8x128xi32>
    %24 = arith.cmpi eq, %11, %23 : vector<4x8x128xi32>
    %25 = vector.shape_cast %16 : vector<4x8x1xf32> to vector<4x8x1xf32>
    %26 = vector.broadcast %25 : vector<4x8x1xf32> to vector<4x8x128xf32>
    %27 = arith.select %24, %26, %12 : vector<4x8x128xi1>, vector<4x8x128xf32>
    %c0_i32_7 = arith.constant 0 : i32
    %28 = vector.broadcast %c0_i32_7 : i32 to vector<4x8x128xi32>
    %29 = arith.cmpi eq, %13, %28 : vector<4x8x128xi32>
    %30 = vector.shape_cast %22 : vector<4x8x1xi32> to vector<4x8x1xi32>
    %31 = vector.broadcast %30 : vector<4x8x1xi32> to vector<4x8x128xi32>
    %32 = arith.select %29, %31, %14 : vector<4x8x128xi1>, vector<4x8x128xi32>
    %33 = vector.broadcast %22 : vector<4x8x1xi32> to vector<4x8x8xi32>
    %34 = arith.cmpi eq, %10, %33 : vector<4x8x8xi32>
    %cst_8 = arith.constant 0xFF800000 : f32
    %35 = vector.broadcast %cst_8 : f32 to vector<4x8x8xf32>
    %36 = arith.select %34, %35, %9 : vector<4x8x8xi1>, vector<4x8x8xf32>
    %cst_9 = arith.constant dense<0xFF800000> : vector<4x8xf32>
    %37 = vector.multi_reduction <maximumf>, %36, %cst_9 [2] : vector<4x8x8xf32> to vector<4x8xf32>
    %38 = vector.shape_cast %37 : vector<4x8xf32> to vector<4x8x1xf32>
    %39 = vector.broadcast %38 : vector<4x8x1xf32> to vector<4x8x8xf32>
    %40 = arith.cmpf oeq, %36, %39 : vector<4x8x8xf32>
    %c8_i32_10 = arith.constant 8 : i32
    %41 = vector.broadcast %c8_i32_10 : i32 to vector<4x8x8xi32>
    %42 = arith.select %40, %10, %41 : vector<4x8x8xi1>, vector<4x8x8xi32>
    %cst_11 = arith.constant dense<2147483647> : vector<4x8xi32>
    %43 = vector.multi_reduction <minsi>, %42, %cst_11 [2] : vector<4x8x8xi32> to vector<4x8xi32>
    %44 = vector.shape_cast %43 : vector<4x8xi32> to vector<4x8x1xi32>
    %45 = vector.broadcast %44 : vector<4x8x1xi32> to vector<4x8x128xi32>
    %46 = arith.cmpi eq, %11, %45 : vector<4x8x128xi32>
    %47 = vector.shape_cast %38 : vector<4x8x1xf32> to vector<4x8x1xf32>
    %48 = vector.broadcast %47 : vector<4x8x1xf32> to vector<4x8x128xf32>
    %49 = arith.select %46, %48, %27 : vector<4x8x128xi1>, vector<4x8x128xf32>
    %c1_i32 = arith.constant 1 : i32
    %50 = vector.broadcast %c1_i32 : i32 to vector<4x8x128xi32>
    %51 = arith.cmpi eq, %13, %50 : vector<4x8x128xi32>
    %52 = vector.shape_cast %44 : vector<4x8x1xi32> to vector<4x8x1xi32>
    %53 = vector.broadcast %52 : vector<4x8x1xi32> to vector<4x8x128xi32>
    %54 = arith.select %51, %53, %32 : vector<4x8x128xi1>, vector<4x8x128xi32>
    %55 = vector.broadcast %44 : vector<4x8x1xi32> to vector<4x8x8xi32>
    %56 = arith.cmpi eq, %10, %55 : vector<4x8x8xi32>
    %cst_12 = arith.constant 0xFF800000 : f32
    %57 = vector.broadcast %cst_12 : f32 to vector<4x8x8xf32>
    %58 = arith.select %56, %57, %36 : vector<4x8x8xi1>, vector<4x8x8xf32>
    %cst_13 = arith.constant dense<0xFF800000> : vector<4x8xf32>
    %59 = vector.multi_reduction <maximumf>, %58, %cst_13 [2] : vector<4x8x8xf32> to vector<4x8xf32>
    %60 = vector.shape_cast %59 : vector<4x8xf32> to vector<4x8x1xf32>
    %61 = vector.broadcast %60 : vector<4x8x1xf32> to vector<4x8x8xf32>
    %62 = arith.cmpf oeq, %58, %61 : vector<4x8x8xf32>
    %c8_i32_14 = arith.constant 8 : i32
    %63 = vector.broadcast %c8_i32_14 : i32 to vector<4x8x8xi32>
    %64 = arith.select %62, %10, %63 : vector<4x8x8xi1>, vector<4x8x8xi32>
    %cst_15 = arith.constant dense<2147483647> : vector<4x8xi32>
    %65 = vector.multi_reduction <minsi>, %64, %cst_15 [2] : vector<4x8x8xi32> to vector<4x8xi32>
    %66 = vector.shape_cast %65 : vector<4x8xi32> to vector<4x8x1xi32>
    %67 = vector.broadcast %66 : vector<4x8x1xi32> to vector<4x8x128xi32>
    %68 = arith.cmpi eq, %11, %67 : vector<4x8x128xi32>
    %69 = vector.shape_cast %60 : vector<4x8x1xf32> to vector<4x8x1xf32>
    %70 = vector.broadcast %69 : vector<4x8x1xf32> to vector<4x8x128xf32>
    %71 = arith.select %68, %70, %49 : vector<4x8x128xi1>, vector<4x8x128xf32>
    %c2_i32 = arith.constant 2 : i32
    %72 = vector.broadcast %c2_i32 : i32 to vector<4x8x128xi32>
    %73 = arith.cmpi eq, %13, %72 : vector<4x8x128xi32>
    %74 = vector.shape_cast %66 : vector<4x8x1xi32> to vector<4x8x1xi32>
    %75 = vector.broadcast %74 : vector<4x8x1xi32> to vector<4x8x128xi32>
    %76 = arith.select %73, %75, %54 : vector<4x8x128xi1>, vector<4x8x128xi32>
    %c0_16 = arith.constant 0 : index
    %c0_17 = arith.constant 0 : index
    %c0_18 = arith.constant 0 : index
    %77 = vector.load %arg2[%c0_16, %c0_17, %c0_18] : memref<4x8x128xf32, #tpu.memory_space<vmem>>, vector<4x8x128xf32>
    tpu.vector_store %arg2[%c0_16, %c0_17, %c0_18], %71 {strides = array<i32>} : memref<4x8x128xf32, #tpu.memory_space<vmem>>, vector<4x8x128xf32>,
    %c0_19 = arith.constant 0 : index
    %c0_20 = arith.constant 0 : index
    %c0_21 = arith.constant 0 : index
    %78 = vector.load %arg4[%c0_19, %c0_20, %c0_21] : memref<4x8x128xi32, #tpu.memory_space<vmem>>, vector<4x8x128xi32>
    tpu.vector_store %arg4[%c0_19, %c0_20, %c0_21], %76 {strides = array<i32>} : memref<4x8x128xi32, #tpu.memory_space<vmem>>, vector<4x8x128xi32>,
    %79 = vector.extract_strided_slice %8 {offsets = [3, 0, 0], sizes = [1, 8, 32], strides = [1, 1, 1]} : vector<4x8x32xf32> to vector<1x8x32xf32>
    %80 = vector.shape_cast %79 : vector<1x8x32xf32> to vector<8x32xf32>
    %81 = vector.extract_strided_slice %8 {offsets = [0, 0, 0], sizes = [3, 8, 32], strides = [1, 1, 1]} : vector<4x8x32xf32> to vector<3x8x32xf32>
    %82 = vector.shape_cast %81 : vector<3x8x32xf32> to vector<24x32xf32>
    %cst_22 = arith.constant dense<0.000000e+00> : vector<24x8xf32>
    %83 = tpu.matmul %82, %80, %cst_22 {dimension_numbers = #tpu.dot_dimension_numbers<[1], [1], [0], [0], [0, 0, 1, 0], [], []>, precision = #tpu.contract_precision<fp32>} : vector<24x32xf32>, vector<8x32xf32>, vector<24x8xf32> -> vector<24x8xf32>
    %84 = vector.shape_cast %83 : vector<24x8xf32> to vector<3x8x8xf32>
    %85 = tpu.iota {dimensions = array<i32: 2>} : vector<3x8x8xi32>
    %86 = tpu.iota {dimensions = array<i32: 2>} : vector<3x8x128xi32>
    %cst_23 = arith.constant 0.000000e+00 : f32
    %87 = vector.broadcast %cst_23 : f32 to vector<3x8x128xf32>
    %cst_24 = arith.constant dense<0xFF800000> : vector<3x8xf32>
    %88 = vector.multi_reduction <maximumf>, %84, %cst_24 [2] : vector<3x8x8xf32> to vector<3x8xf32>
    %89 = vector.shape_cast %88 : vector<3x8xf32> to vector<3x8x1xf32>
    %90 = vector.broadcast %89 : vector<3x8x1xf32> to vector<3x8x8xf32>
    %91 = arith.cmpf oeq, %84, %90 : vector<3x8x8xf32>
    %c8_i32_25 = arith.constant 8 : i32
    %92 = vector.broadcast %c8_i32_25 : i32 to vector<3x8x8xi32>
    %93 = arith.select %91, %85, %92 : vector<3x8x8xi1>, vector<3x8x8xi32>
    %cst_26 = arith.constant dense<2147483647> : vector<3x8xi32>
    %94 = vector.multi_reduction <minsi>, %93, %cst_26 [2] : vector<3x8x8xi32> to vector<3x8xi32>
    %95 = vector.shape_cast %94 : vector<3x8xi32> to vector<3x8x1xi32>
    %96 = vector.broadcast %95 : vector<3x8x1xi32> to vector<3x8x128xi32>
    %97 = arith.cmpi eq, %86, %96 : vector<3x8x128xi32>
    %98 = vector.shape_cast %89 : vector<3x8x1xf32> to vector<3x8x1xf32>
    %99 = vector.broadcast %98 : vector<3x8x1xf32> to vector<3x8x128xf32>
    %100 = arith.select %97, %99, %87 : vector<3x8x128xi1>, vector<3x8x128xf32>
    %101 = vector.broadcast %95 : vector<3x8x1xi32> to vector<3x8x8xi32>
    %102 = arith.cmpi eq, %85, %101 : vector<3x8x8xi32>
    %cst_27 = arith.constant 0xFF800000 : f32
    %103 = vector.broadcast %cst_27 : f32 to vector<3x8x8xf32>
    %104 = arith.select %102, %103, %84 : vector<3x8x8xi1>, vector<3x8x8xf32>
    %cst_28 = arith.constant dense<0xFF800000> : vector<3x8xf32>
    %105 = vector.multi_reduction <maximumf>, %104, %cst_28 [2] : vector<3x8x8xf32> to vector<3x8xf32>
    %106 = vector.shape_cast %105 : vector<3x8xf32> to vector<3x8x1xf32>
    %107 = vector.broadcast %106 : vector<3x8x1xf32> to vector<3x8x8xf32>
    %108 = arith.cmpf oeq, %104, %107 : vector<3x8x8xf32>
    %c8_i32_29 = arith.constant 8 : i32
    %109 = vector.broadcast %c8_i32_29 : i32 to vector<3x8x8xi32>
    %110 = arith.select %108, %85, %109 : vector<3x8x8xi1>, vector<3x8x8xi32>
    %cst_30 = arith.constant dense<2147483647> : vector<3x8xi32>
    %111 = vector.multi_reduction <minsi>, %110, %cst_30 [2] : vector<3x8x8xi32> to vector<3x8xi32>
    %112 = vector.shape_cast %111 : vector<3x8xi32> to vector<3x8x1xi32>
    %113 = vector.broadcast %112 : vector<3x8x1xi32> to vector<3x8x128xi32>
    %114 = arith.cmpi eq, %86, %113 : vector<3x8x128xi32>
    %115 = vector.shape_cast %106 : vector<3x8x1xf32> to vector<3x8x1xf32>
    %116 = vector.broadcast %115 : vector<3x8x1xf32> to vector<3x8x128xf32>
    %117 = arith.select %114, %116, %100 : vector<3x8x128xi1>, vector<3x8x128xf32>
    %118 = vector.broadcast %112 : vector<3x8x1xi32> to vector<3x8x8xi32>
    %119 = arith.cmpi eq, %85, %118 : vector<3x8x8xi32>
    %cst_31 = arith.constant 0xFF800000 : f32
    %120 = vector.broadcast %cst_31 : f32 to vector<3x8x8xf32>
    %121 = arith.select %119, %120, %104 : vector<3x8x8xi1>, vector<3x8x8xf32>
    %cst_32 = arith.constant dense<0xFF800000> : vector<3x8xf32>
    %122 = vector.multi_reduction <maximumf>, %121, %cst_32 [2] : vector<3x8x8xf32> to vector<3x8xf32>
    %123 = vector.shape_cast %122 : vector<3x8xf32> to vector<3x8x1xf32>
    %124 = vector.broadcast %123 : vector<3x8x1xf32> to vector<3x8x8xf32>
    %125 = arith.cmpf oeq, %121, %124 : vector<3x8x8xf32>
    %c8_i32_33 = arith.constant 8 : i32
    %126 = vector.broadcast %c8_i32_33 : i32 to vector<3x8x8xi32>
    %127 = arith.select %125, %85, %126 : vector<3x8x8xi1>, vector<3x8x8xi32>
    %cst_34 = arith.constant dense<2147483647> : vector<3x8xi32>
    %128 = vector.multi_reduction <minsi>, %127, %cst_34 [2] : vector<3x8x8xi32> to vector<3x8xi32>
    %129 = vector.shape_cast %128 : vector<3x8xi32> to vector<3x8x1xi32>
    %130 = vector.broadcast %129 : vector<3x8x1xi32> to vector<3x8x128xi32>
    %131 = arith.cmpi eq, %86, %130 : vector<3x8x128xi32>
    %132 = vector.shape_cast %123 : vector<3x8x1xf32> to vector<3x8x1xf32>
    %133 = vector.broadcast %132 : vector<3x8x1xf32> to vector<3x8x128xf32>
    %134 = arith.select %131, %133, %117 : vector<3x8x128xi1>, vector<3x8x128xf32>
    %c0_35 = arith.constant 0 : index
    %c0_36 = arith.constant 0 : index
    %c0_37 = arith.constant 0 : index
    %135 = vector.load %arg3[%c0_35, %c0_36, %c0_37] : memref<3x8x128xf32, #tpu.memory_space<vmem>>, vector<3x8x128xf32>
    tpu.vector_store %arg3[%c0_35, %c0_36, %c0_37], %134 {strides = array<i32>} : memref<3x8x128xf32, #tpu.memory_space<vmem>>, vector<3x8x128xf32>,
    return
  }
  func.func @transform_0(%arg0: i32) -> (i32, i32, i32) {
    %c0_i32 = arith.constant 0 : i32
    %c0_i32_0 = arith.constant 0 : i32
    %c0_i32_1 = arith.constant 0 : i32
    %c0_i32_2 = arith.constant 0 : i32
    return %c0_i32, %c0_i32_0, %c0_i32_1 : i32, i32, i32
  }
  func.func @transform_1(%arg0: i32) -> (i32, i32, i32) {
    %c0_i32 = arith.constant 0 : i32
    %c0_i32_0 = arith.constant 0 : i32
    %c0_i32_1 = arith.constant 0 : i32
    %c0_i32_2 = arith.constant 0 : i32
    return %c0_i32, %c0_i32_0, %c0_i32_1 : i32, i32, i32
  }
  func.func @transform_2(%arg0: i32) -> (i32, i32, i32) {
    %c0_i32 = arith.constant 0 : i32
    %c0_i32_0 = arith.constant 0 : i32
    %c0_i32_1 = arith.constant 0 : i32
    %c0_i32_2 = arith.constant 0 : i32
    return %c0_i32, %c0_i32_0, %c0_i32_1 : i32, i32, i32
  }
  func.func @transform_3(%arg0: i32) -> (i32, i32, i32) {
    %c0_i32 = arith.constant 0 : i32
    %c0_i32_0 = arith.constant 0 : i32
    %c0_i32_1 = arith.constant 0 : i32
    %c0_i32_2 = arith.constant 0 : i32
    return %c0_i32, %c0_i32_0, %c0_i32_1 : i32, i32, i32
  }
}

</mosaic_0001>

<llo_original>
// kernel: adjacency_layer.1
$region0: #{adjacency_layer.1}
  #allocation0 [shape = 'u32[]', space=smem, size = 0x4, offset = 0x4, fixed_abs, tag = 'smem constant byte address 0x4 - core index']
  #allocation1 [shape = 'u32[144,128]{1,0:T(1,128)}', space=vmem, size = 0x12000, scoped, tag = 'internal scratch']
  %s0 = inlined_call_operand.vmem [shape: f32[4,8,32], index: 0, kind: input, shape index: {}]
  %s1 = inlined_call_operand.vmem [shape: f32[4,8,128], index: 1, kind: output, shape index: {0}]
  %s2 = inlined_call_operand.vmem [shape: f32[3,8,128], index: 2, kind: output, shape index: {1}]
  %s3 = inlined_call_operand.vmem [shape: s32[4,8,128], index: 3, kind: output, shape index: {2}]
  %4 = xla_tuple %s1, %s2, %s3
  %s5 = sld [smem:[#allocation0]]
  $region30: #{adjacency_layer.1} parent=0
    _
  %s7 = ssub.s32 1, %s5
  %s8 = scalar_select 0, %s7, %s5
  // Predicated region
  $region2: #{adjacency_layer.1} parent=0 // pred_check
    _
  $region3: #{adjacency_layer.1} parent=0 // pred_check_branch
    %10 = sbr.rel (0) target = $region5
  $region4: #{adjacency_layer.1} parent=0 // pred_region
    _
  $region5: #{adjacency_layer.1} parent=0 // pred_fallthru
    _
  %v11 = vld [vmem:[%s0] sm:$0xff]
  %v12 = vld [vmem:[%s0 + $0x8] sm:$0xff]
  %v13 = vld [vmem:[%s0 + $0x10] sm:$0xff]
  %v14 = vld [vmem:[%s0 + $0x18] sm:$0xff]
  %v15 = vmul.f32 %v11, %v11
  %v16 = vmul.f32 %v12, %v12
  %v17 = vmul.f32 %v13, %v13
  %v18 = vmul.f32 %v14, %v14
  %vm19 = vcmask 261120
  %v20 = vsel %vm19, %v15, 0.0
  %21 = vadd.xlane.f32.xlu0 %v20
  %v22 = vpop.xlane.xlu0 %21
  %v23 = vsel %vm19, %v16, 0.0
  %24 = vadd.xlane.f32.xlu0 %v23
  %v25 = vpop.xlane.xlu0 %24
  %v26 = vsel %vm19, %v17, 0.0
  %27 = vadd.xlane.f32.xlu0 %v26
  %v28 = vpop.xlane.xlu0 %27
  %v29 = vsel %vm19, %v18, 0.0
  %30 = vadd.xlane.f32.xlu0 %v29
  %v31 = vpop.xlane.xlu0 %30
  %v32 = vmax.f32 %v22, 1e-24
  %v33 = vmax.f32 %v25, 1e-24
  %v34 = vmax.f32 %v28, 1e-24
  %v35 = vmax.f32 %v31, 1e-24
  %v36 = vrsqrt.pop %v32
  %v37 = vrsqrt.pop %v33
  %v38 = vrsqrt.pop %v34
  %v39 = vrsqrt.pop %v35
  %v40 = vmul.f32 %v11, %v36
  %v41 = vmul.f32 %v12, %v37
  %v42 = vmul.f32 %v13, %v38
  %v43 = vmul.f32 %v14, %v39
  %v45 = vsel %vm19, %v40, 0
  %47 = vmatprep.subr.mxu0 0.0
  %v48 = vand.u32 %v45, 4294901760
  %49 = vmatpush1.xpose.msra.mxu0 %v48
  %50 = vmatprep.subr.mxu0 0.0
  %51 = vmatpush1.xpose.msra.mxu0 0.0
  %52 = vmatprep.subr.mxu0 0.0
  %53 = vmatpush1.xpose.msra.mxu0 0.0
  %54 = vmatprep.subr.mxu0 0.0
  %55 = vmatpush1.xpose.msra.mxu0 0.0
  %56 = vmatprep.subr.mxu0 0.0
  %57 = vmatpush1.xpose.msra.mxu0 0.0
  %58 = vmatprep.subr.mxu0 0.0
  %59 = vmatpush1.xpose.msra.mxu0 0.0
  %60 = vmatprep.subr.mxu0 0.0
  %61 = vmatpush1.xpose.msra.mxu0 0.0
  %62 = vmatprep.subr.mxu0 0.0
  %63 = vmatpush1.xpose.msra.mxu0 0.0
  %64 = vmatprep.subr.mxu0 0.0
  %65 = vmatpush1.xpose.msra.mxu0 0.0
  %66 = vmatprep.subr.mxu0 0.0
  %67 = vmatpush1.xpose.msra.mxu0 0.0
  %68 = vmatprep.subr.mxu0 0.0
  %69 = vmatpush1.xpose.msra.mxu0 0.0
  %70 = vmatprep.subr.mxu0 0.0
  %71 = vmatpush1.xpose.msra.mxu0 0.0
  %72 = vmatprep.subr.mxu0 0.0
  %73 = vmatpush1.xpose.msra.mxu0 0.0
  %74 = vmatprep.subr.mxu0 0.0
  %75 = vmatpush1.xpose.msra.mxu0 0.0
  %76 = vmatprep.subr.mxu0 0.0
  %77 = vmatpush1.xpose.msra.mxu0 0.0
  %78 = vmatprep.subr.mxu0 0.0
  %79 = vmatpush1.xpose.msra.mxu0 0.0
  %80 = vmatprep.subr.mxu0 0.0
  %81 = vmatpush1.xpose.msra.mxu0 0.0
  %82 = vmatprep.subr.mxu0 0.0
  %83 = vmatpush1.xpose.msra.mxu0 0.0
  %84 = vmatprep.subr.mxu0 0.0
  %85 = vmatpush1.xpose.msra.mxu0 0.0
  %86 = vmatprep.subr.mxu0 0.0
  %87 = vmatpush1.xpose.msra.mxu0 0.0
  %88 = vmatprep.subr.mxu0 0.0
  %89 = vmatpush1.xpose.msra.mxu0 0.0
  %90 = vmatprep.subr.mxu0 0.0
  %91 = vmatpush1.xpose.msra.mxu0 0.0
  %92 = vmatprep.subr.mxu0 0.0
  %93 = vmatpush1.xpose.msra.mxu0 0.0
  %94 = vmatprep.subr.mxu0 0.0
  %95 = vmatpush1.xpose.msra.mxu0 0.0
  %96 = vmatprep.subr.mxu0 0.0
  %97 = vmatpush1.xpose.msra.mxu0 0.0
  %98 = vmatprep.subr.mxu0 0.0
  %99 = vmatpush1.xpose.msra.mxu0 0.0
  %100 = vmatprep.subr.mxu0 0.0
  %101 = vmatpush1.xpose.msra.mxu0 0.0
  %102 = vmatprep.subr.mxu0 0.0
  %103 = vmatpush1.xpose.msra.mxu0 0.0
  %104 = vmatprep.subr.mxu0 0.0
  %105 = vmatpush1.xpose.msra.mxu0 0.0
  %106 = vmatprep.subr.mxu0 0.0
  %107 = vmatpush1.xpose.msra.mxu0 0.0
  %108 = vmatprep.subr.mxu0 0.0
  %109 = vmatpush1.xpose.msra.mxu0 0.0
  %110 = vmatprep.subr.mxu0 0.0
  %111 = vmatpush1.xpose.msra.mxu0 0.0
  %112 = vmatprep.mubr.f32.mxu0 0.0
  %v113 = vand.u32 %v45, 4294901760
  %v114 = vsub.f32 %v45, %v113
  %v115 = vand.u32 %v114, 4294901760
  %v116 = vsub.f32 %v114, %v115
  %v117 = vand.u32 %v116, 4294901760
  %118 = vmatmul.mubr.f32.gmra.mrb[0].mxu0 %v117
  %v119 = vpop.f32.mrb[0].mxu0
  %v120 = vadd.f32 0.0, %v119
  %v121 = vpop.f32.mrb[0].mxu0
  %122 = vdwg.mxu0
  %123 = vmatprep.subr.mxu0 0.0
  %v124 = vand.u32 %v45, 4294901760
  %v125 = vsub.f32 %v45, %v124
  %v126 = vand.u32 %v125, 4294901760
  %v127 = vsub.f32 %v125, %v126
  %v128 = vand.u32 %v127, 4294901760
  %129 = vmatpush1.xpose.msra.mxu0 %v128
  %130 = vmatprep.subr.mxu0 0.0
  %131 = vmatpush1.xpose.msra.mxu0 0.0
  %132 = vmatprep.subr.mxu0 0.0
  %133 = vmatpush1.xpose.msra.mxu0 0.0
  %134 = vmatprep.subr.mxu0 0.0
  %135 = vmatpush1.xpose.msra.mxu0 0.0
  %136 = vmatprep.subr.mxu0 0.0
  %137 = vmatpush1.xpose.msra.mxu0 0.0
  %138 = vmatprep.subr.mxu0 0.0
  %139 = vmatpush1.xpose.msra.mxu0 0.0
  %140 = vmatprep.subr.mxu0 0.0
  %141 = vmatpush1.xpose.msra.mxu0 0.0
  %142 = vmatprep.subr.mxu0 0.0
  %143 = vmatpush1.xpose.msra.mxu0 0.0
  %144 = vmatprep.subr.mxu0 0.0
  %145 = vmatpush1.xpose.msra.mxu0 0.0
  %146 = vmatprep.subr.mxu0 0.0
  %147 = vmatpush1.xpose.msra.mxu0 0.0
  %148 = vmatprep.subr.mxu0 0.0
  %149 = vmatpush1.xpose.msra.mxu0 0.0
  %150 = vmatprep.subr.mxu0 0.0
  %151 = vmatpush1.xpose.msra.mxu0 0.0
  %152 = vmatprep.subr.mxu0 0.0
  %153 = vmatpush1.xpose.msra.mxu0 0.0
  %154 = vmatprep.subr.mxu0 0.0
  %155 = vmatpush1.xpose.msra.mxu0 0.0
  %156 = vmatprep.subr.mxu0 0.0
  %157 = vmatpush1.xpose.msra.mxu0 0.0
  %158 = vmatprep.subr.mxu0 0.0
  %159 = vmatpush1.xpose.msra.mxu0 0.0
  %160 = vmatprep.subr.mxu0 0.0
  %161 = vmatpush1.xpose.msra.mxu0 0.0
  %162 = vmatprep.subr.mxu0 0.0
  %163 = vmatpush1.xpose.msra.mxu0 0.0
  %164 = vmatprep.subr.mxu0 0.0
  %165 = vmatpush1.xpose.msra.mxu0 0.0
  %166 = vmatprep.subr.mxu0 0.0
  %167 = vmatpush1.xpose.msra.mxu0 0.0
  %168 = vmatprep.subr.mxu0 0.0
  %169 = vmatpush1.xpose.msra.mxu0 0.0
  %170 = vmatprep.subr.mxu0 0.0
  %171 = vmatpush1.xpose.msra.mxu0 0.0
  %172 = vmatprep.subr.mxu0 0.0
  %173 = vmatpush1.xpose.msra.mxu0 0.0
  %174 = vmatprep.subr.mxu0 0.0
  %175 = vmatpush1.xpose.msra.mxu0 0.0
  %176 = vmatprep.subr.mxu0 0.0
  %177 = vmatpush1.xpose.msra.mxu0 0.0
  %178 = vmatprep.subr.mxu0 0.0
  %179 = vmatpush1.xpose.msra.mxu0 0.0
  %180 = vmatprep.subr.mxu0 0.0
  %181 = vmatpush1.xpose.msra.mxu0 0.0
  %182 = vmatprep.subr.mxu0 0.0
  %183 = vmatpush1.xpose.msra.mxu0 0.0
  %184 = vmatprep.subr.mxu0 0.0
  %185 = vmatpush1.xpose.msra.mxu0 0.0
  %186 = vmatprep.subr.mxu0 0.0
  %187 = vmatpush1.xpose.msra.mxu0 0.0
  %188 = vmatprep.subr.mxu0 0.0
  %189 = vmatpush1.xpose.msra.mxu0 0.0
  %190 = vmatprep.subr.mxu0 0.0
  %191 = vmatpush1.xpose.msra.mxu0 0.0
  %192 = vmatprep.mubr.f32.mxu0 0.0
  %v193 = vand.u32 %v45, 4294901760
  %194 = vmatmul.mubr.f32.gmra.mrb[0].mxu0 %v193
  %v195 = vpop.f32.mrb[0].mxu0
  %v196 = vadd.f32 %v120, %v195
  %v197 = vpop.f32.mrb[0].mxu0
  %198 = vdwg.mxu0
  %199 = vmatprep.subr.mxu0 0.0
  %v200 = vand.u32 %v45, 4294901760
  %v201 = vsub.f32 %v45, %v200
  %202 = vmatpush1.xpose.msra.mxu0 %v201
  %203 = vmatprep.subr.mxu0 0.0
  %204 = vmatpush1.xpose.msra.mxu0 0.0
  %205 = vmatprep.subr.mxu0 0.0
  %206 = vmatpush1.xpose.msra.mxu0 0.0
  %207 = vmatprep.subr.mxu0 0.0
  %208 = vmatpush1.xpose.msra.mxu0 0.0
  %209 = vmatprep.subr.mxu0 0.0
  %210 = vmatpush1.xpose.msra.mxu0 0.0
  %211 = vmatprep.subr.mxu0 0.0
  %212 = vmatpush1.xpose.msra.mxu0 0.0
  %213 = vmatprep.subr.mxu0 0.0
  %214 = vmatpush1.xpose.msra.mxu0 0.0
  %215 = vmatprep.subr.mxu0 0.0
  %216 = vmatpush1.xpose.msra.mxu0 0.0
  %217 = vmatprep.subr.mxu0 0.0
  %218 = vmatpush1.xpose.msra.mxu0 0.0
  %219 = vmatprep.subr.mxu0 0.0
  %220 = vmatpush1.xpose.msra.mxu0 0.0
  %221 = vmatprep.subr.mxu0 0.0
  %222 = vmatpush1.xpose.msra.mxu0 0.0
  %223 = vmatprep.subr.mxu0 0.0
  %224 = vmatpush1.xpose.msra.mxu0 0.0
  %225 = vmatprep.subr.mxu0 0.0
  %226 = vmatpush1.xpose.msra.mxu0 0.0
  %227 = vmatprep.subr.mxu0 0.0
  %228 = vmatpush1.xpose.msra.mxu0 0.0
  %229 = vmatprep.subr.mxu0 0.0
  %230 = vmatpush1.xpose.msra.mxu0 0.0
  %231 = vmatprep.subr.mxu0 0.0
  %232 = vmatpush1.xpose.msra.mxu0 0.0
  %233 = vmatprep.subr.mxu0 0.0
  %234 = vmatpush1.xpose.msra.mxu0 0.0
  %235 = vmatprep.subr.mxu0 0.0
  %236 = vmatpush1.xpose.msra.mxu0 0.0
  %237 = vmatprep.subr.mxu0 0.0
  %238 = vmatpush1.xpose.msra.mxu0 0.0
  %239 = vmatprep.subr.mxu0 0.0
  %240 = vmatpush1.xpose.msra.mxu0 0.0
  %241 = vmatprep.subr.mxu0 0.0
  %242 = vmatpush1.xpose.msra.mxu0 0.0
  %243 = vmatprep.subr.mxu0 0.0
  %244 = vmatpush1.xpose.msra.mxu0 0.0
  %245 = vmatprep.subr.mxu0 0.0
  %246 = vmatpush1.xpose.msra.mxu0 0.0
  %247 = vmatprep.subr.mxu0 0.0
  %248 = vmatpush1.xpose.msra.mxu0 0.0
  %249 = vmatprep.subr.mxu0 0.0
  %250 = vmatpush1.xpose.msra.mxu0 0.0
  %251 = vmatprep.subr.mxu0 0.0
  %252 = vmatpush1.xpose.msra.mxu0 0.0
  %253 = vmatprep.subr.mxu0 0.0
  %254 = vmatpush1.xpose.msra.mxu0 0.0
  %255 = vmatprep.subr.mxu0 0.0
  %256 = vmatpush1.xpose.msra.mxu0 0.0
  %257 = vmatprep.subr.mxu0 0.0
  %258 = vmatpush1.xpose.msra.mxu0 0.0
  %259 = vmatprep.subr.mxu0 0.0
  %260 = vmatpush1.xpose.msra.mxu0 0.0
  %261 = vmatprep.subr.mxu0 0.0
  %262 = vmatpush1.xpose.msra.mxu0 0.0
  %263 = vmatprep.subr.mxu0 0.0
  %264 = vmatpush1.xpose.msra.mxu0 0.0
  %265 = vmatprep.mubr.f32.mxu0 0.0
  %v266 = vand.u32 %v45, 4294901760
  %v267 = vsub.f32 %v45, %v266
  %268 = vmatmul.mubr.f32.gmra.mrb[0].mxu0 %v267
  %v269 = vpop.f32.mrb[0].mxu0
  %v270 = vadd.f32 %v196, %v269
  %v271 = vpop.f32.mrb[0].mxu0
  %272 = vdwg.mxu0
  %273 = vmatprep.subr.mxu0 0.0
  %v274 = vand.u32 %v45, 4294901760
  %275 = vmatpush1.xpose.msra.mxu0 %v274
  %276 = vmatprep.subr.mxu0 0.0
  %277 = vmatpush1.xpose.msra.mxu0 0.0
  %278 = vmatprep.subr.mxu0 0.0
  %279 = vmatpush1.xpose.msra.mxu0 0.0
  %280 = vmatprep.subr.mxu0 0.0
  %281 = vmatpush1.xpose.msra.mxu0 0.0
  %282 = vmatprep.subr.mxu0 0.0
  %283 = vmatpush1.xpose.msra.mxu0 0.0
  %284 = vmatprep.subr.mxu0 0.0
  %285 = vmatpush1.xpose.msra.mxu0 0.0
  %286 = vmatprep.subr.mxu0 0.0
  %287 = vmatpush1.xpose.msra.mxu0 0.0
  %288 = vmatprep.subr.mxu0 0.0
  %289 = vmatpush1.xpose.msra.mxu0 0.0
  %290 = vmatprep.subr.mxu0 0.0
  %291 = vmatpush1.xpose.msra.mxu0 0.0
  %292 = vmatprep.subr.mxu0 0.0
  %293 = vmatpush1.xpose.msra.mxu0 0.0
  %294 = vmatprep.subr.mxu0 0.0
  %295 = vmatpush1.xpose.msra.mxu0 0.0
  %296 = vmatprep.subr.mxu0 0.0
  %297 = vmatpush1.xpose.msra.mxu0 0.0
  %298 = vmatprep.subr.mxu0 0.0
  %299 = vmatpush1.xpose.msra.mxu0 0.0
  %300 = vmatprep.subr.mxu0 0.0
  %301 = vmatpush1.xpose.msra.mxu0 0.0
  %302 = vmatprep.subr.mxu0 0.0
  %303 = vmatpush1.xpose.msra.mxu0 0.0
  %304 = vmatprep.subr.mxu0 0.0
  %305 = vmatpush1.xpose.msra.mxu0 0.0
  %306 = vmatprep.subr.mxu0 0.0
  %307 = vmatpush1.xpose.msra.mxu0 0.0
  %308 = vmatprep.subr.mxu0 0.0
  %309 = vmatpush1.xpose.msra.mxu0 0.0
  %310 = vmatprep.subr.mxu0 0.0
  %311 = vmatpush1.xpose.msra.mxu0 0.0
  %312 = vmatprep.subr.mxu0 0.0
  %313 = vmatpush1.xpose.msra.mxu0 0.0
  %314 = vmatprep.subr.mxu0 0.0
  %315 = vmatpush1.xpose.msra.mxu0 0.0
  %316 = vmatprep.subr.mxu0 0.0
  %317 = vmatpush1.xpose.msra.mxu0 0.0
  %318 = vmatprep.subr.mxu0 0.0
  %319 = vmatpush1.xpose.msra.mxu0 0.0
  %320 = vmatprep.subr.mxu0 0.0
  %321 = vmatpush1.xpose.msra.mxu0 0.0
  %322 = vmatprep.subr.mxu0 0.0
  %323 = vmatpush1.xpose.msra.mxu0 0.0
  %324 = vmatprep.subr.mxu0 0.0
  %325 = vmatpush1.xpose.msra.mxu0 0.0
  %326 = vmatprep.subr.mxu0 0.0
  %327 = vmatpush1.xpose.msra.mxu0 0.0
  %328 = vmatprep.subr.mxu0 0.0
  %329 = vmatpush1.xpose.msra.mxu0 0.0
  %330 = vmatprep.subr.mxu0 0.0
  %331 = vmatpush1.xpose.msra.mxu0 0.0
  %332 = vmatprep.subr.mxu0 0.0
  %333 = vmatpush1.xpose.msra.mxu0 0.0
  %334 = vmatprep.subr.mxu0 0.0
  %335 = vmatpush1.xpose.msra.mxu0 0.0
  %336 = vmatprep.subr.mxu0 0.0
  %337 = vmatpush1.xpose.msra.mxu0 0.0
  %338 = vmatprep.mubr.f32.mxu0 0.0
  %v339 = vand.u32 %v45, 4294901760
  %v340 = vsub.f32 %v45, %v339
  %v341 = vand.u32 %v340, 4294901760
  %342 = vmatmul.mubr.f32.gmra.mrb[0].mxu0 %v341
  %v343 = vpop.f32.mrb[0].mxu0
  %v344 = vadd.f32 %v270, %v343
  %v345 = vpop.f32.mrb[0].mxu0
  %346 = vdwg.mxu0
  %347 = vmatprep.subr.mxu0 0.0
  %v348 = vand.u32 %v45, 4294901760
  %v349 = vsub.f32 %v45, %v348
  %v350 = vand.u32 %v349, 4294901760
  %351 = vmatpush1.xpose.msra.mxu0 %v350
  %352 = vmatprep.subr.mxu0 0.0
  %353 = vmatpush1.xpose.msra.mxu0 0.0
  %354 = vmatprep.subr.mxu0 0.0
  %355 = vmatpush1.xpose.msra.mxu0 0.0
  %356 = vmatprep.subr.mxu0 0.0
  %357 = vmatpush1.xpose.msra.mxu0 0.0
  %358 = vmatprep.subr.mxu0 0.0
  %359 = vmatpush1.xpose.msra.mxu0 0.0
  %360 = vmatprep.subr.mxu0 0.0
  %361 = vmatpush1.xpose.msra.mxu0 0.0
  %362 = vmatprep.subr.mxu0 0.0
  %363 = vmatpush1.xpose.msra.mxu0 0.0
  %364 = vmatprep.subr.mxu0 0.0
  %365 = vmatpush1.xpose.msra.mxu0 0.0
  %366 = vmatprep.subr.mxu0 0.0
  %367 = vmatpush1.xpose.msra.mxu0 0.0
  %368 = vmatprep.subr.mxu0 0.0
  %369 = vmatpush1.xpose.msra.mxu0 0.0
  %370 = vmatprep.subr.mxu0 0.0
  %371 = vmatpush1.xpose.msra.mxu0 0.0
  %372 = vmatprep.subr.mxu0 0.0
  %373 = vmatpush1.xpose.msra.mxu0 0.0
  %374 = vmatprep.subr.mxu0 0.0
  %375 = vmatpush1.xpose.msra.mxu0 0.0
  %376 = vmatprep.subr.mxu0 0.0
  %377 = vmatpush1.xpose.msra.mxu0 0.0
  %378 = vmatprep.subr.mxu0 0.0
  %379 = vmatpush1.xpose.msra.mxu0 0.0
  %380 = vmatprep.subr.mxu0 0.0
  %381 = vmatpush1.xpose.msra.mxu0 0.0
  %382 = vmatprep.subr.mxu0 0.0
  %383 = vmatpush1.xpose.msra.mxu0 0.0
  %384 = vmatprep.subr.mxu0 0.0
  %385 = vmatpush1.xpose.msra.mxu0 0.0
  %386 = vmatprep.subr.mxu0 0.0
  %387 = vmatpush1.xpose.msra.mxu0 0.0
  %388 = vmatprep.subr.mxu0 0.0
  %389 = vmatpush1.xpose.msra.mxu0 0.0
  %390 = vmatprep.subr.mxu0 0.0
  %391 = vmatpush1.xpose.msra.mxu0 0.0
  %392 = vmatprep.subr.mxu0 0.0
  %393 = vmatpush1.xpose.msra.mxu0 0.0
  %394 = vmatprep.subr.mxu0 0.0
  %395 = vmatpush1.xpose.msra.mxu0 0.0
  %396 = vmatprep.subr.mxu0 0.0
  %397 = vmatpush1.xpose.msra.mxu0 0.0
  %398 = vmatprep.subr.mxu0 0.0
  %399 = vmatpush1.xpose.msra.mxu0 0.0
  %400 = vmatprep.subr.mxu0 0.0
  %401 = vmatpush1.xpose.msra.mxu0 0.0
  %402 = vmatprep.subr.mxu0 0.0
  %403 = vmatpush1.xpose.msra.mxu0 0.0
  %404 = vmatprep.subr.mxu0 0.0
  %405 = vmatpush1.xpose.msra.mxu0 0.0
  %406 = vmatprep.subr.mxu0 0.0
  %407 = vmatpush1.xpose.msra.mxu0 0.0
  %408 = vmatprep.subr.mxu0 0.0
  %409 = vmatpush1.xpose.msra.mxu0 0.0
  %410 = vmatprep.subr.mxu0 0.0
  %411 = vmatpush1.xpose.msra.mxu0 0.0
  %412 = vmatprep.subr.mxu0 0.0
  %413 = vmatpush1.xpose.msra.mxu0 0.0
  %414 = vmatprep.mubr.f32.mxu0 0.0
  %v415 = vand.u32 %v45, 4294901760
  %416 = vmatmul.mubr.f32.gmra.mrb[0].mxu0 %v415
  %v417 = vpop.f32.mrb[0].mxu0
  %v418 = vadd.f32 %v344, %v417
  %v419 = vpop.f32.mrb[0].mxu0
  %420 = vdwg.mxu0
  %421 = vmatprep.subr.mxu0 0.0
  %v422 = vand.u32 %v45, 4294901760
  %423 = vmatpush1.xpose.msra.mxu0 %v422
  %424 = vmatprep.subr.mxu0 0.0
  %425 = vmatpush1.xpose.msra.mxu0 0.0
  %426 = vmatprep.subr.mxu0 0.0
  %427 = vmatpush1.xpose.msra.mxu0 0.0
  %428 = vmatprep.subr.mxu0 0.0
  %429 = vmatpush1.xpose.msra.mxu0 0.0
  %430 = vmatprep.subr.mxu0 0.0
  %431 = vmatpush1.xpose.msra.mxu0 0.0
  %432 = vmatprep.subr.mxu0 0.0
  %433 = vmatpush1.xpose.msra.mxu0 0.0
  %434 = vmatprep.subr.mxu0 0.0
  %435 = vmatpush1.xpose.msra.mxu0 0.0
  %436 = vmatprep.subr.mxu0 0.0
  %437 = vmatpush1.xpose.msra.mxu0 0.0
  %438 = vmatprep.subr.mxu0 0.0
  %439 = vmatpush1.xpose.msra.mxu0 0.0
  %440 = vmatprep.subr.mxu0 0.0
  %441 = vmatpush1.xpose.msra.mxu0 0.0
  %442 = vmatprep.subr.mxu0 0.0
  %443 = vmatpush1.xpose.msra.mxu0 0.0
  %444 = vmatprep.subr.mxu0 0.0
  %445 = vmatpush1.xpose.msra.mxu0 0.0
  %446 = vmatprep.subr.mxu0 0.0
  %447 = vmatpush1.xpose.msra.mxu0 0.0
  %448 = vmatprep.subr.mxu0 0.0
  %449 = vmatpush1.xpose.msra.mxu0 0.0
  %450 = vmatprep.subr.mxu0 0.0
  %451 = vmatpush1.xpose.msra.mxu0 0.0
  %452 = vmatprep.subr.mxu0 0.0
  %453 = vmatpush1.xpose.msra.mxu0 0.0
  %454 = vmatprep.subr.mxu0 0.0
  %455 = vmatpush1.xpose.msra.mxu0 0.0
  %456 = vmatprep.subr.mxu0 0.0
  %457 = vmatpush1.xpose.msra.mxu0 0.0
  %458 = vmatprep.subr.mxu0 0.0
  %459 = vmatpush1.xpose.msra.mxu0 0.0
  %460 = vmatprep.subr.mxu0 0.0
  %461 = vmatpush1.xpose.msra.mxu0 0.0
  %462 = vmatprep.subr.mxu0 0.0
  %463 = vmatpush1.xpose.msra.mxu0 0.0
  %464 = vmatprep.subr.mxu0 0.0
  %465 = vmatpush1.xpose.msra.mxu0 0.0
  %466 = vmatprep.subr.mxu0 0.0
  %467 = vmatpush1.xpose.msra.mxu0 0.0
  %468 = vmatprep.subr.mxu0 0.0
  %469 = vmatpush1.xpose.msra.mxu0 0.0
  %470 = vmatprep.subr.mxu0 0.0
  %471 = vmatpush1.xpose.msra.mxu0 0.0
  %472 = vmatprep.subr.mxu0 0.0
  %473 = vmatpush1.xpose.msra.mxu0 0.0
  %474 = vmatprep.subr.mxu0 0.0
  %475 = vmatpush1.xpose.msra.mxu0 0.0
  %476 = vmatprep.subr.mxu0 0.0
  %477 = vmatpush1.xpose.msra.mxu0 0.0
  %478 = vmatprep.subr.mxu0 0.0
  %479 = vmatpush1.xpose.msra.mxu0 0.0
  %480 = vmatprep.subr.mxu0 0.0
  %481 = vmatpush1.xpose.msra.mxu0 0.0
  %482 = vmatprep.subr.mxu0 0.0
  %483 = vmatpush1.xpose.msra.mxu0 0.0
  %484 = vmatprep.subr.mxu0 0.0
  %485 = vmatpush1.xpose.msra.mxu0 0.0
  %486 = vmatprep.mubr.f32.mxu0 0.0
  %v487 = vand.u32 %v45, 4294901760
  %488 = vmatmul.mubr.f32.gmra.mrb[0].mxu0 %v487
  %v489 = vpop.f32.mrb[0].mxu0
  %v490 = vadd.f32 %v418, %v489
  %v491 = vpop.f32.mrb[0].mxu0
  %492 = vdwg.mxu0
  %v494 = vsel %vm19, %v41, 0
  %496 = vmatprep.subr.mxu0 0.0
  %v497 = vand.u32 %v494, 4294901760
  %498 = vmatpush1.xpose.msra.mxu0 %v497
  %499 = vmatprep.subr.mxu0 0.0
  %500 = vmatpush1.xpose.msra.mxu0 0.0
  %501 = vmatprep.subr.mxu0 0.0
  %502 = vmatpush1.xpose.msra.mxu0 0.0
  %503 = vmatprep.subr.mxu0 0.0
  %504 = vmatpush1.xpose.msra.mxu0 0.0
  %505 = vmatprep.subr.mxu0 0.0
  %506 = vmatpush1.xpose.msra.mxu0 0.0
  %507 = vmatprep.subr.mxu0 0.0
  %508 = vmatpush1.xpose.msra.mxu0 0.0
  %509 = vmatprep.subr.mxu0 0.0
  %510 = vmatpush1.xpose.msra.mxu0 0.0
  %511 = vmatprep.subr.mxu0 0.0
  %512 = vmatpush1.xpose.msra.mxu0 0.0
  %513 = vmatprep.subr.mxu0 0.0
  %514 = vmatpush1.xpose.msra.mxu0 0.0
  %515 = vmatprep.subr.mxu0 0.0
  %516 = vmatpush1.xpose.msra.mxu0 0.0
  %517 = vmatprep.subr.mxu0 0.0
  %518 = vmatpush1.xpose.msra.mxu0 0.0
  %519 = vmatprep.subr.mxu0 0.0
  %520 = vmatpush1.xpose.msra.mxu0 0.0
  %521 = vmatprep.subr.mxu0 0.0
  %522 = vmatpush1.xpose.msra.mxu0 0.0
  %523 = vmatprep.subr.mxu0 0.0
  %524 = vmatpush1.xpose.msra.mxu0 0.0
  %525 = vmatprep.subr.mxu0 0.0
  %526 = vmatpush1.xpose.msra.mxu0 0.0
  %527 = vmatprep.subr.mxu0 0.0
  %528 = vmatpush1.xpose.msra.mxu0 0.0
  %529 = vmatprep.subr.mxu0 0.0
  %530 = vmatpush1.xpose.msra.mxu0 0.0
  %531 = vmatprep.subr.mxu0 0.0
  %532 = vmatpush1.xpose.msra.mxu0 0.0
  %533 = vmatprep.subr.mxu0 0.0
  %534 = vmatpush1.xpose.msra.mxu0 0.0
  %535 = vmatprep.subr.mxu0 0.0
  %536 = vmatpush1.xpose.msra.mxu0 0.0
  %537 = vmatprep.subr.mxu0 0.0
  %538 = vmatpush1.xpose.msra.mxu0 0.0
  %539 = vmatprep.subr.mxu0 0.0
  %540 = vmatpush1.xpose.msra.mxu0 0.0
  %541 = vmatprep.subr.mxu0 0.0
  %542 = vmatpush1.xpose.msra.mxu0 0.0
  %543 = vmatprep.subr.mxu0 0.0
  %544 = vmatpush1.xpose.msra.mxu0 0.0
  %545 = vmatprep.subr.mxu0 0.0
  %546 = vmatpush1.xpose.msra.mxu0 0.0
  %547 = vmatprep.subr.mxu0 0.0
  %548 = vmatpush1.xpose.msra.mxu0 0.0
  %549 = vmatprep.subr.mxu0 0.0
  %550 = vmatpush1.xpose.msra.mxu0 0.0
  %551 = vmatprep.subr.mxu0 0.0
  %552 = vmatpush1.xpose.msra.mxu0 0.0
  %553 = vmatprep.subr.mxu0 0.0
  %554 = vmatpush1.xpose.msra.mxu0 0.0
  %555 = vmatprep.subr.mxu0 0.0
  %556 = vmatpush1.xpose.msra.mxu0 0.0
  %557 = vmatprep.subr.mxu0 0.0
  %558 = vmatpush1.xpose.msra.mxu0 0.0
  %559 = vmatprep.subr.mxu0 0.0
  %560 = vmatpush1.xpose.msra.mxu0 0.0
  %561 = vmatprep.mubr.f32.mxu0 0.0
  %v562 = vand.u32 %v494, 4294901760
  %v563 = vsub.f32 %v494, %v562
  %v564 = vand.u32 %v563, 4294901760
  %v565 = vsub.f32 %v563, %v564
  %v566 = vand.u32 %v565, 4294901760
  %567 = vmatmul.mubr.f32.gmra.mrb[0].mxu0 %v566
  %v568 = vpop.f32.mrb[0].mxu0
  %v569 = vadd.f32 0.0, %v568
  %v570 = vpop.f32.mrb[0].mxu0
  %571 = vdwg.mxu0
  %572 = vmatprep.subr.mxu0 0.0
  %v573 = vand.u32 %v494, 4294901760
  %v574 = vsub.f32 %v494, %v573
  %v575 = vand.u32 %v574, 4294901760
  %v576 = vsub.f32 %v574, %v575
  %v577 = vand.u32 %v576, 4294901760
  %578 = vmatpush1.xpose.msra.mxu0 %v577
  %579 = vmatprep.subr.mxu0 0.0
  %580 = vmatpush1.xpose.msra.mxu0 0.0
  %581 = vmatprep.subr.mxu0 0.0
  %582 = vmatpush1.xpose.msra.mxu0 0.0
  %583 = vmatprep.subr.mxu0 0.0
  %584 = vmatpush1.xpose.msra.mxu0 0.0
  %585 = vmatprep.subr.mxu0 0.0
  %586 = vmatpush1.xpose.msra.mxu0 0.0
  %587 = vmatprep.subr.mxu0 0.0
  %588 = vmatpush1.xpose.msra.mxu0 0.0
  %589 = vmatprep.subr.mxu0 0.0
  %590 = vmatpush1.xpose.msra.mxu0 0.0
  %591 = vmatprep.subr.mxu0 0.0
  %592 = vmatpush1.xpose.msra.mxu0 0.0
  %593 = vmatprep.subr.mxu0 0.0
  %594 = vmatpush1.xpose.msra.mxu0 0.0
  %595 = vmatprep.subr.mxu0 0.0
  %596 = vmatpush1.xpose.msra.mxu0 0.0
  %597 = vmatprep.subr.mxu0 0.0
  %598 = vmatpush1.xpose.msra.mxu0 0.0
  %599 = vmatprep.subr.mxu0 0.0
  %600 = vmatpush1.xpose.msra.mxu0 0.0
  %601 = vmatprep.subr.mxu0 0.0
  %602 = vmatpush1.xpose.msra.mxu0 0.0
  %603 = vmatprep.subr.mxu0 0.0
  %604 = vmatpush1.xpose.msra.mxu0 0.0
  %605 = vmatprep.subr.mxu0 0.0
  %606 = vmatpush1.xpose.msra.mxu0 0.0
  %607 = vmatprep.subr.mxu0 0.0
  %608 = vmatpush1.xpose.msra.mxu0 0.0
  %609 = vmatprep.subr.mxu0 0.0
  %610 = vmatpush1.xpose.msra.mxu0 0.0
  %611 = vmatprep.subr.mxu0 0.0
  %612 = vmatpush1.xpose.msra.mxu0 0.0
  %613 = vmatprep.subr.mxu0 0.0
  %614 = vmatpush1.xpose.msra.mxu0 0.0
  %615 = vmatprep.subr.mxu0 0.0
  %616 = vmatpush1.xpose.msra.mxu0 0.0
  %617 = vmatprep.subr.mxu0 0.0
  %618 = vmatpush1.xpose.msra.mxu0 0.0
  %619 = vmatprep.subr.mxu0 0.0
  %620 = vmatpush1.xpose.msra.mxu0 0.0
  %621 = vmatprep.subr.mxu0 0.0
  %622 = vmatpush1.xpose.msra.mxu0 0.0
  %623 = vmatprep.subr.mxu0 0.0
  %624 = vmatpush1.xpose.msra.mxu0 0.0
  %625 = vmatprep.subr.mxu0 0.0
  %626 = vmatpush1.xpose.msra.mxu0 0.0
  %627 = vmatprep.subr.mxu0 0.0
  %628 = vmatpush1.xpose.msra.mxu0 0.0
  %629 = vmatprep.subr.mxu0 0.0
  %630 = vmatpush1.xpose.msra.mxu0 0.0
  %631 = vmatprep.subr.mxu0 0.0
  %632 = vmatpush1.xpose.msra.mxu0 0.0
  %633 = vmatprep.subr.mxu0 0.0
  %634 = vmatpush1.xpose.msra.mxu0 0.0
  %635 = vmatprep.subr.mxu0 0.0
  %636 = vmatpush1.xpose.msra.mxu0 0.0
  %637 = vmatprep.subr.mxu0 0.0
  %638 = vmatpush1.xpose.msra.mxu0 0.0
  %639 = vmatprep.subr.mxu0 0.0
  %640 = vmatpush1.xpose.msra.mxu0 0.0
  %641 = vmatprep.mubr.f32.mxu0 0.0
  %v642 = vand.u32 %v494, 4294901760
  %643 = vmatmul.mubr.f32.gmra.mrb[0].mxu0 %v642
  %v644 = vpop.f32.mrb[0].mxu0
  %v645 = vadd.f32 %v569, %v644
  %v646 = vpop.f32.mrb[0].mxu0
  %647 = vdwg.mxu0
  %648 = vmatprep.subr.mxu0 0.0
  %v649 = vand.u32 %v494, 4294901760
  %v650 = vsub.f32 %v494, %v649
  %651 = vmatpush1.xpose.msra.mxu0 %v650
  %652 = vmatprep.subr.mxu0 0.0
  %653 = vmatpush1.xpose.msra.mxu0 0.0
  %654 = vmatprep.subr.mxu0 0.0
  %655 = vmatpush1.xpose.msra.mxu0 0.0
  %656 = vmatprep.subr.mxu0 0.0
  %657 = vmatpush1.xpose.msra.mxu0 0.0
  %658 = vmatprep.subr.mxu0 0.0
  %659 = vmatpush1.xpose.msra.mxu0 0.0
  %660 = vmatprep.subr.mxu0 0.0
  %661 = vmatpush1.xpose.msra.mxu0 0.0
  %662 = vmatprep.subr.mxu0 0.0
  %663 = vmatpush1.xpose.msra.mxu0 0.0
  %664 = vmatprep.subr.mxu0 0.0
  %665 = vmatpush1.xpose.msra.mxu0 0.0
  %666 = vmatprep.subr.mxu0 0.0
  %667 = vmatpush1.xpose.msra.mxu0 0.0
  %668 = vmatprep.subr.mxu0 0.0
  %669 = vmatpush1.xpose.msra.mxu0 0.0
  %670 = vmatprep.subr.mxu0 0.0
  %671 = vmatpush1.xpose.msra.mxu0 0.0
  %672 = vmatprep.subr.mxu0 0.0
  %673 = vmatpush1.xpose.msra.mxu0 0.0
  %674 = vmatprep.subr.mxu0 0.0
  %675 = vmatpush1.xpose.msra.mxu0 0.0
  %676 = vmatprep.subr.mxu0 0.0
  %677 = vmatpush1.xpose.msra.mxu0 0.0
  %678 = vmatprep.subr.mxu0 0.0
  %679 = vmatpush1.xpose.msra.mxu0 0.0
  %680 = vmatprep.subr.mxu0 0.0
  %681 = vmatpush1.xpose.msra.mxu0 0.0
  %682 = vmatprep.subr.mxu0 0.0
  %683 = vmatpush1.xpose.msra.mxu0 0.0
  %684 = vmatprep.subr.mxu0 0.0
  %685 = vmatpush1.xpose.msra.mxu0 0.0
  %686 = vmatprep.subr.mxu0 0.0
  %687 = vmatpush1.xpose.msra.mxu0 0.0
  %688 = vmatprep.subr.mxu0 0.0
  %689 = vmatpush1.xpose.msra.mxu0 0.0
  %690 = vmatprep.subr.mxu0 0.0
  %691 = vmatpush1.xpose.msra.mxu0 0.0
  %692 = vmatprep.subr.mxu0 0.0
  %693 = vmatpush1.xpose.msra.mxu0 0.0
  %694 = vmatprep.subr.mxu0 0.0
  %695 = vmatpush1.xpose.msra.mxu0 0.0
  %696 = vmatprep.subr.mxu0 0.0
  %697 = vmatpush1.xpose.msra.mxu0 0.0
  %698 = vmatprep.subr.mxu0 0.0
  %699 = vmatpush1.xpose.msra.mxu0 0.0
  %700 = vmatprep.subr.mxu0 0.0
  %701 = vmatpush1.xpose.msra.mxu0 0.0
  %702 = vmatprep.subr.mxu0 0.0
  %703 = vmatpush1.xpose.msra.mxu0 0.0
  %704 = vmatprep.subr.mxu0 0.0
  %705 = vmatpush1.xpose.msra.mxu0 0.0
  %706 = vmatprep.subr.mxu0 0.0
  %707 = vmatpush1.xpose.msra.mxu0 0.0
  %708 = vmatprep.subr.mxu0 0.0
  %709 = vmatpush1.xpose.msra.mxu0 0.0
  %710 = vmatprep.subr.mxu0 0.0
  %711 = vmatpush1.xpose.msra.mxu0 0.0
  %712 = vmatprep.subr.mxu0 0.0
  %713 = vmatpush1.xpose.msra.mxu0 0.0
  %714 = vmatprep.mubr.f32.mxu0 0.0
  %v715 = vand.u32 %v494, 4294901760
  %v716 = vsub.f32 %v494, %v715
  %717 = vmatmul.mubr.f32.gmra.mrb[0].mxu0 %v716
  %v718 = vpop.f32.mrb[0].mxu0
  %v719 = vadd.f32 %v645, %v718
  %v720 = vpop.f32.mrb[0].mxu0
  %721 = vdwg.mxu0
  %722 = vmatprep.subr.mxu0 0.0
  %v723 = vand.u32 %v494, 4294901760
  %724 = vmatpush1.xpose.msra.mxu0 %v723
  %725 = vmatprep.subr.mxu0 0.0
  %726 = vmatpush1.xpose.msra.mxu0 0.0
  %727 = vmatprep.subr.mxu0 0.0
  %728 = vmatpush1.xpose.msra.mxu0 0.0
  %729 = vmatprep.subr.mxu0 0.0
  %730 = vmatpush1.xpose.msra.mxu0 0.0
  %731 = vmatprep.subr.mxu0 0.0
  %732 = vmatpush1.xpose.msra.mxu0 0.0
  %733 = vmatprep.subr.mxu0 0.0
  %734 = vmatpush1.xpose.msra.mxu0 0.0
  %735 = vmatprep.subr.mxu0 0.0
  %736 = vmatpush1.xpose.msra.mxu0 0.0
  %737 = vmatprep.subr.mxu0 0.0
  %738 = vmatpush1.xpose.msra.mxu0 0.0
  %739 = vmatprep.subr.mxu0 0.0
  %740 = vmatpush1.xpose.msra.mxu0 0.0
  %741 = vmatprep.subr.mxu0 0.0
  %742 = vmatpush1.xpose.msra.mxu0 0.0
  %743 = vmatprep.subr.mxu0 0.0
  %744 = vmatpush1.xpose.msra.mxu0 0.0
  %745 = vmatprep.subr.mxu0 0.0
  %746 = vmatpush1.xpose.msra.mxu0 0.0
  %747 = vmatprep.subr.mxu0 0.0
  %748 = vmatpush1.xpose.msra.mxu0 0.0
  %749 = vmatprep.subr.mxu0 0.0
  %750 = vmatpush1.xpose.msra.mxu0 0.0
  %751 = vmatprep.subr.mxu0 0.0
  %752 = vmatpush1.xpose.msra.mxu0 0.0
  %753 = vmatprep.subr.mxu0 0.0
  %754 = vmatpush1.xpose.msra.mxu0 0.0
  %755 = vmatprep.subr.mxu0 0.0
  %756 = vmatpush1.xpose.msra.mxu0 0.0
  %757 = vmatprep.subr.mxu0 0.0
  %758 = vmatpush1.xpose.msra.mxu0 0.0
  %759 = vmatprep.subr.mxu0 0.0
  %760 = vmatpush1.xpose.msra.mxu0 0.0
  %761 = vmatprep.subr.mxu0 0.0
  %762 = vmatpush1.xpose.msra.mxu0 0.0
  %763 = vmatprep.subr.mxu0 0.0
  %764 = vmatpush1.xpose.msra.mxu0 0.0
  %765 = vmatprep.subr.mxu0 0.0
  %766 = vmatpush1.xpose.msra.mxu0 0.0
  %767 = vmatprep.subr.mxu0 0.0
  %768 = vmatpush1.xpose.msra.mxu0 0.0
  %769 = vmatprep.subr.mxu0 0.0
  %770 = vmatpush1.xpose.msra.mxu0 0.0
  %771 = vmatprep.subr.mxu0 0.0
  %772 = vmatpush1.xpose.msra.mxu0 0.0
  %773 = vmatprep.subr.mxu0 0.0
  %774 = vmatpush1.xpose.msra.mxu0 0.0
  %775 = vmatprep.subr.mxu0 0.0
  %776 = vmatpush1.xpose.msra.mxu0 0.0
  %777 = vmatprep.subr.mxu0 0.0
  %778 = vmatpush1.xpose.msra.mxu0 0.0
  %779 = vmatprep.subr.mxu0 0.0
  %780 = vmatpush1.xpose.msra.mxu0 0.0
  %781 = vmatprep.subr.mxu0 0.0
  %782 = vmatpush1.xpose.msra.mxu0 0.0
  %783 = vmatprep.subr.mxu0 0.0
  %784 = vmatpush1.xpose.msra.mxu0 0.0
  %785 = vmatprep.subr.mxu0 0.0
  %786 = vmatpush1.xpose.msra.mxu0 0.0
  %787 = vmatprep.mubr.f32.mxu0 0.0
  %v788 = vand.u32 %v494, 4294901760
  %v789 = vsub.f32 %v494, %v788
  %v790 = vand.u32 %v789, 4294901760
  %791 = vmatmul.mubr.f32.gmra.mrb[0].mxu0 %v790
  %v792 = vpop.f32.mrb[0].mxu0
  %v793 = vadd.f32 %v719, %v792
  %v794 = vpop.f32.mrb[0].mxu0
  %795 = vdwg.mxu0
  %796 = vmatprep.subr.mxu0 0.0
  %v797 = vand.u32 %v494, 4294901760
  %v798 = vsub.f32 %v494, %v797
  %v799 = vand.u32 %v798, 4294901760
  %800 = vmatpush1.xpose.msra.mxu0 %v799
  %801 = vmatprep.subr.mxu0 0.0
  %802 = vmatpush1.xpose.msra.mxu0 0.0
  %803 = vmatprep.subr.mxu0 0.0
  %804 = vmatpush1.xpose.msra.mxu0 0.0
  %805 = vmatprep.subr.mxu0 0.0
  %806 = vmatpush1.xpose.msra.mxu0 0.0
  %807 = vmatprep.subr.mxu0 0.0
  %808 = vmatpush1.xpose.msra.mxu0 0.0
  %809 = vmatprep.subr.mxu0 0.0
  %810 = vmatpush1.xpose.msra.mxu0 0.0
  %811 = vmatprep.subr.mxu0 0.0
  %812 = vmatpush1.xpose.msra.mxu0 0.0
  %813 = vmatprep.subr.mxu0 0.0
  %814 = vmatpush1.xpose.msra.mxu0 0.0
  %815 = vmatprep.subr.mxu0 0.0
  %816 = vmatpush1.xpose.msra.mxu0 0.0
  %817 = vmatprep.subr.mxu0 0.0
  %818 = vmatpush1.xpose.msra.mxu0 0.0
  %819 = vmatprep.subr.mxu0 0.0
  %820 = vmatpush1.xpose.msra.mxu0 0.0
  %821 = vmatprep.subr.mxu0 0.0
  %822 = vmatpush1.xpose.msra.mxu0 0.0
  %823 = vmatprep.subr.mxu0 0.0
  %824 = vmatpush1.xpose.msra.mxu0 0.0
  %825 = vmatprep.subr.mxu0 0.0
  %826 = vmatpush1.xpose.msra.mxu0 0.0
  %827 = vmatprep.subr.mxu0 0.0
  %828 = vmatpush1.xpose.msra.mxu0 0.0
  %829 = vmatprep.subr.mxu0 0.0
  %830 = vmatpush1.xpose.msra.mxu0 0.0
  %831 = vmatprep.subr.mxu0 0.0
  %832 = vmatpush1.xpose.msra.mxu0 0.0
  %833 = vmatprep.subr.mxu0 0.0
  %834 = vmatpush1.xpose.msra.mxu0 0.0
  %835 = vmatprep.subr.mxu0 0.0
  %836 = vmatpush1.xpose.msra.mxu0 0.0
  %837 = vmatprep.subr.mxu0 0.0
  %838 = vmatpush1.xpose.msra.mxu0 0.0
  %839 = vmatprep.subr.mxu0 0.0
  %840 = vmatpush1.xpose.msra.mxu0 0.0
  %841 = vmatprep.subr.mxu0 0.0
  %842 = vmatpush1.xpose.msra.mxu0 0.0
  %843 = vmatprep.subr.mxu0 0.0
  %844 = vmatpush1.xpose.msra.mxu0 0.0
  %845 = vmatprep.subr.mxu0 0.0
  %846 = vmatpush1.xpose.msra.mxu0 0.0
  %847 = vmatprep.subr.mxu0 0.0
  %848 = vmatpush1.xpose.msra.mxu0 0.0
  %849 = vmatprep.subr.mxu0 0.0
  %850 = vmatpush1.xpose.msra.mxu0 0.0
  %851 = vmatprep.subr.mxu0 0.0
  %852 = vmatpush1.xpose.msra.mxu0 0.0
  %853 = vmatprep.subr.mxu0 0.0
  %854 = vmatpush1.xpose.msra.mxu0 0.0
  %855 = vmatprep.subr.mxu0 0.0
  %856 = vmatpush1.xpose.msra.mxu0 0.0
  %857 = vmatprep.subr.mxu0 0.0
  %858 = vmatpush1.xpose.msra.mxu0 0.0
  %859 = vmatprep.subr.mxu0 0.0
  %860 = vmatpush1.xpose.msra.mxu0 0.0
  %861 = vmatprep.subr.mxu0 0.0
  %862 = vmatpush1.xpose.msra.mxu0 0.0
  %863 = vmatprep.mubr.f32.mxu0 0.0
  %v864 = vand.u32 %v494, 4294901760
  %865 = vmatmul.mubr.f32.gmra.mrb[0].mxu0 %v864
  %v866 = vpop.f32.mrb[0].mxu0
  %v867 = vadd.f32 %v793, %v866
  %v868 = vpop.f32.mrb[0].mxu0
  %869 = vdwg.mxu0
  %870 = vmatprep.subr.mxu0 0.0
  %v871 = vand.u32 %v494, 4294901760
  %872 = vmatpush1.xpose.msra.mxu0 %v871
  %873 = vmatprep.subr.mxu0 0.0
  %874 = vmatpush1.xpose.msra.mxu0 0.0
  %875 = vmatprep.subr.mxu0 0.0
  %876 = vmatpush1.xpose.msra.mxu0 0.0
  %877 = vmatprep.subr.mxu0 0.0
  %878 = vmatpush1.xpose.msra.mxu0 0.0
  %879 = vmatprep.subr.mxu0 0.0
  %880 = vmatpush1.xpose.msra.mxu0 0.0
  %881 = vmatprep.subr.mxu0 0.0
  %882 = vmatpush1.xpose.msra.mxu0 0.0
  %883 = vmatprep.subr.mxu0 0.0
  %884 = vmatpush1.xpose.msra.mxu0 0.0
  %885 = vmatprep.subr.mxu0 0.0
  %886 = vmatpush1.xpose.msra.mxu0 0.0
  %887 = vmatprep.subr.mxu0 0.0
  %888 = vmatpush1.xpose.msra.mxu0 0.0
  %889 = vmatprep.subr.mxu0 0.0
  %890 = vmatpush1.xpose.msra.mxu0 0.0
  %891 = vmatprep.subr.mxu0 0.0
  %892 = vmatpush1.xpose.msra.mxu0 0.0
  %893 = vmatprep.subr.mxu0 0.0
  %894 = vmatpush1.xpose.msra.mxu0 0.0
  %895 = vmatprep.subr.mxu0 0.0
  %896 = vmatpush1.xpose.msra.mxu0 0.0
  %897 = vmatprep.subr.mxu0 0.0
  %898 = vmatpush1.xpose.msra.mxu0 0.0
  %899 = vmatprep.subr.mxu0 0.0
  %900 = vmatpush1.xpose.msra.mxu0 0.0
  %901 = vmatprep.subr.mxu0 0.0
  %902 = vmatpush1.xpose.msra.mxu0 0.0
  %903 = vmatprep.subr.mxu0 0.0
  %904 = vmatpush1.xpose.msra.mxu0 0.0
  %905 = vmatprep.subr.mxu0 0.0
  %906 = vmatpush1.xpose.msra.mxu0 0.0
  %907 = vmatprep.subr.mxu0 0.0
  %908 = vmatpush1.xpose.msra.mxu0 0.0
  %909 = vmatprep.subr.mxu0 0.0
  %910 = vmatpush1.xpose.msra.mxu0 0.0
  %911 = vmatprep.subr.mxu0 0.0
  %912 = vmatpush1.xpose.msra.mxu0 0.0
  %913 = vmatprep.subr.mxu0 0.0
  %914 = vmatpush1.xpose.msra.mxu0 0.0
  %915 = vmatprep.subr.mxu0 0.0
  %916 = vmatpush1.xpose.msra.mxu0 0.0
  %917 = vmatprep.subr.mxu0 0.0
  %918 = vmatpush1.xpose.msra.mxu0 0.0
  %919 = vmatprep.subr.mxu0 0.0
  %920 = vmatpush1.xpose.msra.mxu0 0.0
  %921 = vmatprep.subr.mxu0 0.0
  %922 = vmatpush1.xpose.msra.mxu0 0.0
  %923 = vmatprep.subr.mxu0 0.0
  %924 = vmatpush1.xpose.msra.mxu0 0.0
  %925 = vmatprep.subr.mxu0 0.0
  %926 = vmatpush1.xpose.msra.mxu0 0.0
  %927 = vmatprep.subr.mxu0 0.0
  %928 = vmatpush1.xpose.msra.mxu0 0.0
  %929 = vmatprep.subr.mxu0 0.0
  %930 = vmatpush1.xpose.msra.mxu0 0.0
  %931 = vmatprep.subr.mxu0 0.0
  %932 = vmatpush1.xpose.msra.mxu0 0.0
  %933 = vmatprep.subr.mxu0 0.0
  %934 = vmatpush1.xpose.msra.mxu0 0.0
  %935 = vmatprep.mubr.f32.mxu0 0.0
  %v936 = vand.u32 %v494, 4294901760
  %937 = vmatmul.mubr.f32.gmra.mrb[0].mxu0 %v936
  %v938 = vpop.f32.mrb[0].mxu0
  %v939 = vadd.f32 %v867, %v938
  %v940 = vpop.f32.mrb[0].mxu0
  %941 = vdwg.mxu0
  %v943 = vsel %vm19, %v42, 0
  %945 = vmatprep.subr.mxu0 0.0
  %v946 = vand.u32 %v943, 4294901760
  %947 = vmatpush1.xpose.msra.mxu0 %v946
  %948 = vmatprep.subr.mxu0 0.0
  %949 = vmatpush1.xpose.msra.mxu0 0.0
  %950 = vmatprep.subr.mxu0 0.0
  %951 = vmatpush1.xpose.msra.mxu0 0.0
  %952 = vmatprep.subr.mxu0 0.0
  %953 = vmatpush1.xpose.msra.mxu0 0.0
  %954 = vmatprep.subr.mxu0 0.0
  %955 = vmatpush1.xpose.msra.mxu0 0.0
  %956 = vmatprep.subr.mxu0 0.0
  %957 = vmatpush1.xpose.msra.mxu0 0.0
  %958 = vmatprep.subr.mxu0 0.0
  %959 = vmatpush1.xpose.msra.mxu0 0.0
  %960 = vmatprep.subr.mxu0 0.0
  %961 = vmatpush1.xpose.msra.mxu0 0.0
  %962 = vmatprep.subr.mxu0 0.0
  %963 = vmatpush1.xpose.msra.mxu0 0.0
  %964 = vmatprep.subr.mxu0 0.0
  %965 = vmatpush1.xpose.msra.mxu0 0.0
  %966 = vmatprep.subr.mxu0 0.0
  %967 = vmatpush1.xpose.msra.mxu0 0.0
  %968 = vmatprep.subr.mxu0 0.0
  %969 = vmatpush1.xpose.msra.mxu0 0.0
  %970 = vmatprep.subr.mxu0 0.0
  %971 = vmatpush1.xpose.msra.mxu0 0.0
  %972 = vmatprep.subr.mxu0 0.0
  %973 = vmatpush1.xpose.msra.mxu0 0.0
  %974 = vmatprep.subr.mxu0 0.0
  %975 = vmatpush1.xpose.msra.mxu0 0.0
  %976 = vmatprep.subr.mxu0 0.0
  %977 = vmatpush1.xpose.msra.mxu0 0.0
  %978 = vmatprep.subr.mxu0 0.0
  %979 = vmatpush1.xpose.msra.mxu0 0.0
  %980 = vmatprep.subr.mxu0 0.0
  %981 = vmatpush1.xpose.msra.mxu0 0.0
  %982 = vmatprep.subr.mxu0 0.0
  %983 = vmatpush1.xpose.msra.mxu0 0.0
  %984 = vmatprep.subr.mxu0 0.0
  %985 = vmatpush1.xpose.msra.mxu0 0.0
  %986 = vmatprep.subr.mxu0 0.0
  %987 = vmatpush1.xpose.msra.mxu0 0.0
  %988 = vmatprep.subr.mxu0 0.0
  %989 = vmatpush1.xpose.msra.mxu0 0.0
  %990 = vmatprep.subr.mxu0 0.0
  %991 = vmatpush1.xpose.msra.mxu0 0.0
  %992 = vmatprep.subr.mxu0 0.0
  %993 = vmatpush1.xpose.msra.mxu0 0.0
  %994 = vmatprep.subr.mxu0 0.0
  %995 = vmatpush1.xpose.msra.mxu0 0.0
  %996 = vmatprep.subr.mxu0 0.0
  %997 = vmatpush1.xpose.msra.mxu0 0.0
  %998 = vmatprep.subr.mxu0 0.0
  %999 = vmatpush1.xpose.msra.mxu0 0.0
  %1000 = vmatprep.subr.mxu0 0.0
  %1001 = vmatpush1.xpose.msra.mxu0 0.0
  %1002 = vmatprep.subr.mxu0 0.0
  %1003 = vmatpush1.xpose.msra.mxu0 0.0
  %1004 = vmatprep.subr.mxu0 0.0
  %1005 = vmatpush1.xpose.msra.mxu0 0.0
  %1006 = vmatprep.subr.mxu0 0.0
  %1007 = vmatpush1.xpose.msra.mxu0 0.0
  %1008 = vmatprep.subr.mxu0 0.0
  %1009 = vmatpush1.xpose.msra.mxu0 0.0
  %1010 = vmatprep.mubr.f32.mxu0 0.0
  %v1011 = vand.u32 %v943, 4294901760
  %v1012 = vsub.f32 %v943, %v1011
  %v1013 = vand.u32 %v1012, 4294901760
  %v1014 = vsub.f32 %v1012, %v1013
  %v1015 = vand.u32 %v1014, 4294901760
  %1016 = vmatmul.mubr.f32.gmra.mrb[0].mxu0 %v1015
  %v1017 = vpop.f32.mrb[0].mxu0
  %v1018 = vadd.f32 0.0, %v1017
  %v1019 = vpop.f32.mrb[0].mxu0
  %1020 = vdwg.mxu0
  %1021 = vmatprep.subr.mxu0 0.0
  %v1022 = vand.u32 %v943, 4294901760
  %v1023 = vsub.f32 %v943, %v1022
  %v1024 = vand.u32 %v1023, 4294901760
  %v1025 = vsub.f32 %v1023, %v1024
  %v1026 = vand.u32 %v1025, 4294901760
  %1027 = vmatpush1.xpose.msra.mxu0 %v1026
  %1028 = vmatprep.subr.mxu0 0.0
  %1029 = vmatpush1.xpose.msra.mxu0 0.0
  %1030 = vmatprep.subr.mxu0 0.0
  %1031 = vmatpush1.xpose.msra.mxu0 0.0
  %1032 = vmatprep.subr.mxu0 0.0
  %1033 = vmatpush1.xpose.msra.mxu0 0.0
  %1034 = vmatprep.subr.mxu0 0.0
  %1035 = vmatpush1.xpose.msra.mxu0 0.0
  %1036 = vmatprep.subr.mxu0 0.0
  %1037 = vmatpush1.xpose.msra.mxu0 0.0
  %1038 = vmatprep.subr.mxu0 0.0
  %1039 = vmatpush1.xpose.msra.mxu0 0.0
  %1040 = vmatprep.subr.mxu0 0.0
  %1041 = vmatpush1.xpose.msra.mxu0 0.0
  %1042 = vmatprep.subr.mxu0 0.0
  %1043 = vmatpush1.xpose.msra.mxu0 0.0
  %1044 = vmatprep.subr.mxu0 0.0
  %1045 = vmatpush1.xpose.msra.mxu0 0.0
  %1046 = vmatprep.subr.mxu0 0.0
  %1047 = vmatpush1.xpose.msra.mxu0 0.0
  %1048 = vmatprep.subr.mxu0 0.0
  %1049 = vmatpush1.xpose.msra.mxu0 0.0
  %1050 = vmatprep.subr.mxu0 0.0
  %1051 = vmatpush1.xpose.msra.mxu0 0.0
  %1052 = vmatprep.subr.mxu0 0.0
  %1053 = vmatpush1.xpose.msra.mxu0 0.0
  %1054 = vmatprep.subr.mxu0 0.0
  %1055 = vmatpush1.xpose.msra.mxu0 0.0
  %1056 = vmatprep.subr.mxu0 0.0
  %1057 = vmatpush1.xpose.msra.mxu0 0.0
  %1058 = vmatprep.subr.mxu0 0.0
  %1059 = vmatpush1.xpose.msra.mxu0 0.0
  %1060 = vmatprep.subr.mxu0 0.0
  %1061 = vmatpush1.xpose.msra.mxu0 0.0
  %1062 = vmatprep.subr.mxu0 0.0
  %1063 = vmatpush1.xpose.msra.mxu0 0.0
  %1064 = vmatprep.subr.mxu0 0.0
  %1065 = vmatpush1.xpose.msra.mxu0 0.0
  %1066 = vmatprep.subr.mxu0 0.0
  %1067 = vmatpush1.xpose.msra.mxu0 0.0
  %1068 = vmatprep.subr.mxu0 0.0
  %1069 = vmatpush1.xpose.msra.mxu0 0.0
  %1070 = vmatprep.subr.mxu0 0.0
  %1071 = vmatpush1.xpose.msra.mxu0 0.0
  %1072 = vmatprep.subr.mxu0 0.0
  %1073 = vmatpush1.xpose.msra.mxu0 0.0
  %1074 = vmatprep.subr.mxu0 0.0
  %1075 = vmatpush1.xpose.msra.mxu0 0.0
  %1076 = vmatprep.subr.mxu0 0.0
  %1077 = vmatpush1.xpose.msra.mxu0 0.0
  %1078 = vmatprep.subr.mxu0 0.0
  %1079 = vmatpush1.xpose.msra.mxu0 0.0
  %1080 = vmatprep.subr.mxu0 0.0
  %1081 = vmatpush1.xpose.msra.mxu0 0.0
  %1082 = vmatprep.subr.mxu0 0.0
  %1083 = vmatpush1.xpose.msra.mxu0 0.0
  %1084 = vmatprep.subr.mxu0 0.0
  %1085 = vmatpush1.xpose.msra.mxu0 0.0
  %1086 = vmatprep.subr.mxu0 0.0
  %1087 = vmatpush1.xpose.msra.mxu0 0.0
  %1088 = vmatprep.subr.mxu0 0.0
  %1089 = vmatpush1.xpose.msra.mxu0 0.0
  %1090 = vmatprep.mubr.f32.mxu0 0.0
  %v1091 = vand.u32 %v943, 4294901760
  %1092 = vmatmul.mubr.f32.gmra.mrb[0].mxu0 %v1091
  %v1093 = vpop.f32.mrb[0].mxu0
  %v1094 = vadd.f32 %v1018, %v1093
  %v1095 = vpop.f32.mrb[0].mxu0
  %1096 = vdwg.mxu0
  %1097 = vmatprep.subr.mxu0 0.0
  %v1098 = vand.u32 %v943, 4294901760
  %v1099 = vsub.f32 %v943, %v1098
  %1100 = vmatpush1.xpose.msra.mxu0 %v1099
  %1101 = vmatprep.subr.mxu0 0.0
  %1102 = vmatpush1.xpose.msra.mxu0 0.0
  %1103 = vmatprep.subr.mxu0 0.0
  %1104 = vmatpush1.xpose.msra.mxu0 0.0
  %1105 = vmatprep.subr.mxu0 0.0
  %1106 = vmatpush1.xpose.msra.mxu0 0.0
  %1107 = vmatprep.subr.mxu0 0.0
  %1108 = vmatpush1.xpose.msra.mxu0 0.0
  %1109 = vmatprep.subr.mxu0 0.0
  %1110 = vmatpush1.xpose.msra.mxu0 0.0
  %1111 = vmatprep.subr.mxu0 0.0
  %1112 = vmatpush1.xpose.msra.mxu0 0.0
  %1113 = vmatprep.subr.mxu0 0.0
  %1114 = vmatpush1.xpose.msra.mxu0 0.0
  %1115 = vmatprep.subr.mxu0 0.0
  %1116 = vmatpush1.xpose.msra.mxu0 0.0
  %1117 = vmatprep.subr.mxu0 0.0
  %1118 = vmatpush1.xpose.msra.mxu0 0.0
  %1119 = vmatprep.subr.mxu0 0.0
  %1120 = vmatpush1.xpose.msra.mxu0 0.0
  %1121 = vmatprep.subr.mxu0 0.0
  %1122 = vmatpush1.xpose.msra.mxu0 0.0
  %1123 = vmatprep.subr.mxu0 0.0
  %1124 = vmatpush1.xpose.msra.mxu0 0.0
  %1125 = vmatprep.subr.mxu0 0.0
  %1126 = vmatpush1.xpose.msra.mxu0 0.0
  %1127 = vmatprep.subr.mxu0 0.0
  %1128 = vmatpush1.xpose.msra.mxu0 0.0
  %1129 = vmatprep.subr.mxu0 0.0
  %1130 = vmatpush1.xpose.msra.mxu0 0.0
  %1131 = vmatprep.subr.mxu0 0.0
  %1132 = vmatpush1.xpose.msra.mxu0 0.0
  %1133 = vmatprep.subr.mxu0 0.0
  %1134 = vmatpush1.xpose.msra.mxu0 0.0
  %1135 = vmatprep.subr.mxu0 0.0
  %1136 = vmatpush1.xpose.msra.mxu0 0.0
  %1137 = vmatprep.subr.mxu0 0.0
  %1138 = vmatpush1.xpose.msra.mxu0 0.0
  %1139 = vmatprep.subr.mxu0 0.0
  %1140 = vmatpush1.xpose.msra.mxu0 0.0
  %1141 = vmatprep.subr.mxu0 0.0
  %1142 = vmatpush1.xpose.msra.mxu0 0.0
  %1143 = vmatprep.subr.mxu0 0.0
  %1144 = vmatpush1.xpose.msra.mxu0 0.0
  %1145 = vmatprep.subr.mxu0 0.0
  %1146 = vmatpush1.xpose.msra.mxu0 0.0
  %1147 = vmatprep.subr.mxu0 0.0
  %1148 = vmatpush1.xpose.msra.mxu0 0.0
  %1149 = vmatprep.subr.mxu0 0.0
  %1150 = vmatpush1.xpose.msra.mxu0 0.0
  %1151 = vmatprep.subr.mxu0 0.0
  %1152 = vmatpush1.xpose.msra.mxu0 0.0
  %1153 = vmatprep.subr.mxu0 0.0
  %1154 = vmatpush1.xpose.msra.mxu0 0.0
  %1155 = vmatprep.subr.mxu0 0.0
  %1156 = vmatpush1.xpose.msra.mxu0 0.0
  %1157 = vmatprep.subr.mxu0 0.0
  %1158 = vmatpush1.xpose.msra.mxu0 0.0
  %1159 = vmatprep.subr.mxu0 0.0
  %1160 = vmatpush1.xpose.msra.mxu0 0.0
  %1161 = vmatprep.subr.mxu0 0.0
  %1162 = vmatpush1.xpose.msra.mxu0 0.0
  %1163 = vmatprep.mubr.f32.mxu0 0.0
  %v1164 = vand.u32 %v943, 4294901760
  %v1165 = vsub.f32 %v943, %v1164
  %1166 = vmatmul.mubr.f32.gmra.mrb[0].mxu0 %v1165
  %v1167 = vpop.f32.mrb[0].mxu0
  %v1168 = vadd.f32 %v1094, %v1167
  %v1169 = vpop.f32.mrb[0].mxu0
  %1170 = vdwg.mxu0
  %1171 = vmatprep.subr.mxu0 0.0
  %v1172 = vand.u32 %v943, 4294901760
  %1173 = vmatpush1.xpose.msra.mxu0 %v1172
  %1174 = vmatprep.subr.mxu0 0.0
  %1175 = vmatpush1.xpose.msra.mxu0 0.0
  %1176 = vmatprep.subr.mxu0 0.0
  %1177 = vmatpush1.xpose.msra.mxu0 0.0
  %1178 = vmatprep.subr.mxu0 0.0
  %1179 = vmatpush1.xpose.msra.mxu0 0.0
  %1180 = vmatprep.subr.mxu0 0.0
  %1181 = vmatpush1.xpose.msra.mxu0 0.0
  %1182 = vmatprep.subr.mxu0 0.0
  %1183 = vmatpush1.xpose.msra.mxu0 0.0
  %1184 = vmatprep.subr.mxu0 0.0
  %1185 = vmatpush1.xpose.msra.mxu0 0.0
  %1186 = vmatprep.subr.mxu0 0.0
  %1187 = vmatpush1.xpose.msra.mxu0 0.0
  %1188 = vmatprep.subr.mxu0 0.0
  %1189 = vmatpush1.xpose.msra.mxu0 0.0
  %1190 = vmatprep.subr.mxu0 0.0
  %1191 = vmatpush1.xpose.msra.mxu0 0.0
  %1192 = vmatprep.subr.mxu0 0.0
  %1193 = vmatpush1.xpose.msra.mxu0 0.0
  %1194 = vmatprep.subr.mxu0 0.0
  %1195 = vmatpush1.xpose.msra.mxu0 0.0
  %1196 = vmatprep.subr.mxu0 0.0
  %1197 = vmatpush1.xpose.msra.mxu0 0.0
  %1198 = vmatprep.subr.mxu0 0.0
  %1199 = vmatpush1.xpose.msra.mxu0 0.0
  %1200 = vmatprep.subr.mxu0 0.0
  %1201 = vmatpush1.xpose.msra.mxu0 0.0
  %1202 = vmatprep.subr.mxu0 0.0
  %1203 = vmatpush1.xpose.msra.mxu0 0.0
  %1204 = vmatprep.subr.mxu0 0.0
  %1205 = vmatpush1.xpose.msra.mxu0 0.0
  %1206 = vmatprep.subr.mxu0 0.0
  %1207 = vmatpush1.xpose.msra.mxu0 0.0
  %1208 = vmatprep.subr.mxu0 0.0
  %1209 = vmatpush1.xpose.msra.mxu0 0.0
  %1210 = vmatprep.subr.mxu0 0.0
  %1211 = vmatpush1.xpose.msra.mxu0 0.0
  %1212 = vmatprep.subr.mxu0 0.0
  %1213 = vmatpush1.xpose.msra.mxu0 0.0
  %1214 = vmatprep.subr.mxu0 0.0
  %1215 = vmatpush1.xpose.msra.mxu0 0.0
  %1216 = vmatprep.subr.mxu0 0.0
  %1217 = vmatpush1.xpose.msra.mxu0 0.0
  %1218 = vmatprep.subr.mxu0 0.0
  %1219 = vmatpush1.xpose.msra.mxu0 0.0
  %1220 = vmatprep.subr.mxu0 0.0
  %1221 = vmatpush1.xpose.msra.mxu0 0.0
  %1222 = vmatprep.subr.mxu0 0.0
  %1223 = vmatpush1.xpose.msra.mxu0 0.0
  %1224 = vmatprep.subr.mxu0 0.0
  %1225 = vmatpush1.xpose.msra.mxu0 0.0
  %1226 = vmatprep.subr.mxu0 0.0
  %1227 = vmatpush1.xpose.msra.mxu0 0.0
  %1228 = vmatprep.subr.mxu0 0.0
  %1229 = vmatpush1.xpose.msra.mxu0 0.0
  %1230 = vmatprep.subr.mxu0 0.0
  %1231 = vmatpush1.xpose.msra.mxu0 0.0
  %1232 = vmatprep.subr.mxu0 0.0
  %1233 = vmatpush1.xpose.msra.mxu0 0.0
  %1234 = vmatprep.subr.mxu0 0.0
  %1235 = vmatpush1.xpose.msra.mxu0 0.0
  %1236 = vmatprep.mubr.f32.mxu0 0.0
  %v1237 = vand.u32 %v943, 4294901760
  %v1238 = vsub.f32 %v943, %v1237
  %v1239 = vand.u32 %v1238, 4294901760
  %1240 = vmatmul.mubr.f32.gmra.mrb[0].mxu0 %v1239
  %v1241 = vpop.f32.mrb[0].mxu0
  %v1242 = vadd.f32 %v1168, %v1241
  %v1243 = vpop.f32.mrb[0].mxu0
  %1244 = vdwg.mxu0
  %1245 = vmatprep.subr.mxu0 0.0
  %v1246 = vand.u32 %v943, 4294901760
  %v1247 = vsub.f32 %v943, %v1246
  %v1248 = vand.u32 %v1247, 4294901760
  %1249 = vmatpush1.xpose.msra.mxu0 %v1248
  %1250 = vmatprep.subr.mxu0 0.0
  %1251 = vmatpush1.xpose.msra.mxu0 0.0
  %1252 = vmatprep.subr.mxu0 0.0
  %1253 = vmatpush1.xpose.msra.mxu0 0.0
  %1254 = vmatprep.subr.mxu0 0.0
  %1255 = vmatpush1.xpose.msra.mxu0 0.0
  %1256 = vmatprep.subr.mxu0 0.0
  %1257 = vmatpush1.xpose.msra.mxu0 0.0
  %1258 = vmatprep.subr.mxu0 0.0
  %1259 = vmatpush1.xpose.msra.mxu0 0.0
  %1260 = vmatprep.subr.mxu0 0.0
  %1261 = vmatpush1.xpose.msra.mxu0 0.0
  %1262 = vmatprep.subr.mxu0 0.0
  %1263 = vmatpush1.xpose.msra.mxu0 0.0
  %1264 = vmatprep.subr.mxu0 0.0
  %1265 = vmatpush1.xpose.msra.mxu0 0.0
  %1266 = vmatprep.subr.mxu0 0.0
  %1267 = vmatpush1.xpose.msra.mxu0 0.0
  %1268 = vmatprep.subr.mxu0 0.0
  %1269 = vmatpush1.xpose.msra.mxu0 0.0
  %1270 = vmatprep.subr.mxu0 0.0
  %1271 = vmatpush1.xpose.msra.mxu0 0.0
  %1272 = vmatprep.subr.mxu0 0.0
  %1273 = vmatpush1.xpose.msra.mxu0 0.0
  %1274 = vmatprep.subr.mxu0 0.0
  %1275 = vmatpush1.xpose.msra.mxu0 0.0
  %1276 = vmatprep.subr.mxu0 0.0
  %1277 = vmatpush1.xpose.msra.mxu0 0.0
  %1278 = vmatprep.subr.mxu0 0.0
  %1279 = vmatpush1.xpose.msra.mxu0 0.0
  %1280 = vmatprep.subr.mxu0 0.0
  %1281 = vmatpush1.xpose.msra.mxu0 0.0
  %1282 = vmatprep.subr.mxu0 0.0
  %1283 = vmatpush1.xpose.msra.mxu0 0.0
  %1284 = vmatprep.subr.mxu0 0.0
  %1285 = vmatpush1.xpose.msra.mxu0 0.0
  %1286 = vmatprep.subr.mxu0 0.0
  %1287 = vmatpush1.xpose.msra.mxu0 0.0
  %1288 = vmatprep.subr.mxu0 0.0
  %1289 = vmatpush1.xpose.msra.mxu0 0.0
  %1290 = vmatprep.subr.mxu0 0.0
  %1291 = vmatpush1.xpose.msra.mxu0 0.0
  %1292 = vmatprep.subr.mxu0 0.0
  %1293 = vmatpush1.xpose.msra.mxu0 0.0
  %1294 = vmatprep.subr.mxu0 0.0
  %1295 = vmatpush1.xpose.msra.mxu0 0.0
  %1296 = vmatprep.subr.mxu0 0.0
  %1297 = vmatpush1.xpose.msra.mxu0 0.0
  %1298 = vmatprep.subr.mxu0 0.0
  %1299 = vmatpush1.xpose.msra.mxu0 0.0
  %1300 = vmatprep.subr.mxu0 0.0
  %1301 = vmatpush1.xpose.msra.mxu0 0.0
  %1302 = vmatprep.subr.mxu0 0.0
  %1303 = vmatpush1.xpose.msra.mxu0 0.0
  %1304 = vmatprep.subr.mxu0 0.0
  %1305 = vmatpush1.xpose.msra.mxu0 0.0
  %1306 = vmatprep.subr.mxu0 0.0
  %1307 = vmatpush1.xpose.msra.mxu0 0.0
  %1308 = vmatprep.subr.mxu0 0.0
  %1309 = vmatpush1.xpose.msra.mxu0 0.0
  %1310 = vmatprep.subr.mxu0 0.0
  %1311 = vmatpush1.xpose.msra.mxu0 0.0
  %1312 = vmatprep.mubr.f32.mxu0 0.0
  %v1313 = vand.u32 %v943, 4294901760
  %1314 = vmatmul.mubr.f32.gmra.mrb[0].mxu0 %v1313
  %v1315 = vpop.f32.mrb[0].mxu0
  %v1316 = vadd.f32 %v1242, %v1315
  %v1317 = vpop.f32.mrb[0].mxu0
  %1318 = vdwg.mxu0
  %1319 = vmatprep.subr.mxu0 0.0
  %v1320 = vand.u32 %v943, 4294901760
  %1321 = vmatpush1.xpose.msra.mxu0 %v1320
  %1322 = vmatprep.subr.mxu0 0.0
  %1323 = vmatpush1.xpose.msra.mxu0 0.0
  %1324 = vmatprep.subr.mxu0 0.0
  %1325 = vmatpush1.xpose.msra.mxu0 0.0
  %1326 = vmatprep.subr.mxu0 0.0
  %1327 = vmatpush1.xpose.msra.mxu0 0.0
  %1328 = vmatprep.subr.mxu0 0.0
  %1329 = vmatpush1.xpose.msra.mxu0 0.0
  %1330 = vmatprep.subr.mxu0 0.0
  %1331 = vmatpush1.xpose.msra.mxu0 0.0
  %1332 = vmatprep.subr.mxu0 0.0
  %1333 = vmatpush1.xpose.msra.mxu0 0.0
  %1334 = vmatprep.subr.mxu0 0.0
  %1335 = vmatpush1.xpose.msra.mxu0 0.0
  %1336 = vmatprep.subr.mxu0 0.0
  %1337 = vmatpush1.xpose.msra.mxu0 0.0
  %1338 = vmatprep.subr.mxu0 0.0
  %1339 = vmatpush1.xpose.msra.mxu0 0.0
  %1340 = vmatprep.subr.mxu0 0.0
  %1341 = vmatpush1.xpose.msra.mxu0 0.0
  %1342 = vmatprep.subr.mxu0 0.0
  %1343 = vmatpush1.xpose.msra.mxu0 0.0
  %1344 = vmatprep.subr.mxu0 0.0
  %1345 = vmatpush1.xpose.msra.mxu0 0.0
  %1346 = vmatprep.subr.mxu0 0.0
  %1347 = vmatpush1.xpose.msra.mxu0 0.0
  %1348 = vmatprep.subr.mxu0 0.0
  %1349 = vmatpush1.xpose.msra.mxu0 0.0
  %1350 = vmatprep.subr.mxu0 0.0
  %1351 = vmatpush1.xpose.msra.mxu0 0.0
  %1352 = vmatprep.subr.mxu0 0.0
  %1353 = vmatpush1.xpose.msra.mxu0 0.0
  %1354 = vmatprep.subr.mxu0 0.0
  %1355 = vmatpush1.xpose.msra.mxu0 0.0
  %1356 = vmatprep.subr.mxu0 0.0
  %1357 = vmatpush1.xpose.msra.mxu0 0.0
  %1358 = vmatprep.subr.mxu0 0.0
  %1359 = vmatpush1.xpose.msra.mxu0 0.0
  %1360 = vmatprep.subr.mxu0 0.0
  %1361 = vmatpush1.xpose.msra.mxu0 0.0
  %1362 = vmatprep.subr.mxu0 0.0
  %1363 = vmatpush1.xpose.msra.mxu0 0.0
  %1364 = vmatprep.subr.mxu0 0.0
  %1365 = vmatpush1.xpose.msra.mxu0 0.0
  %1366 = vmatprep.subr.mxu0 0.0
  %1367 = vmatpush1.xpose.msra.mxu0 0.0
  %1368 = vmatprep.subr.mxu0 0.0
  %1369 = vmatpush1.xpose.msra.mxu0 0.0
  %1370 = vmatprep.subr.mxu0 0.0
  %1371 = vmatpush1.xpose.msra.mxu0 0.0
  %1372 = vmatprep.subr.mxu0 0.0
  %1373 = vmatpush1.xpose.msra.mxu0 0.0
  %1374 = vmatprep.subr.mxu0 0.0
  %1375 = vmatpush1.xpose.msra.mxu0 0.0
  %1376 = vmatprep.subr.mxu0 0.0
  %1377 = vmatpush1.xpose.msra.mxu0 0.0
  %1378 = vmatprep.subr.mxu0 0.0
  %1379 = vmatpush1.xpose.msra.mxu0 0.0
  %1380 = vmatprep.subr.mxu0 0.0
  %1381 = vmatpush1.xpose.msra.mxu0 0.0
  %1382 = vmatprep.subr.mxu0 0.0
  %1383 = vmatpush1.xpose.msra.mxu0 0.0
  %1384 = vmatprep.mubr.f32.mxu0 0.0
  %v1385 = vand.u32 %v943, 4294901760
  %1386 = vmatmul.mubr.f32.gmra.mrb[0].mxu0 %v1385
  %v1387 = vpop.f32.mrb[0].mxu0
  %v1388 = vadd.f32 %v1316, %v1387
  %v1389 = vpop.f32.mrb[0].mxu0
  %1390 = vdwg.mxu0
  %v1392 = vsel %vm19, %v43, 0
  %1394 = vmatprep.subr.mxu0 0.0
  %v1395 = vand.u32 %v1392, 4294901760
  %1396 = vmatpush1.xpose.msra.mxu0 %v1395
  %1397 = vmatprep.subr.mxu0 0.0
  %1398 = vmatpush1.xpose.msra.mxu0 0.0
  %1399 = vmatprep.subr.mxu0 0.0
  %1400 = vmatpush1.xpose.msra.mxu0 0.0
  %1401 = vmatprep.subr.mxu0 0.0
  %1402 = vmatpush1.xpose.msra.mxu0 0.0
  %1403 = vmatprep.subr.mxu0 0.0
  %1404 = vmatpush1.xpose.msra.mxu0 0.0
  %1405 = vmatprep.subr.mxu0 0.0
  %1406 = vmatpush1.xpose.msra.mxu0 0.0
  %1407 = vmatprep.subr.mxu0 0.0
  %1408 = vmatpush1.xpose.msra.mxu0 0.0
  %1409 = vmatprep.subr.mxu0 0.0
  %1410 = vmatpush1.xpose.msra.mxu0 0.0
  %1411 = vmatprep.subr.mxu0 0.0
  %1412 = vmatpush1.xpose.msra.mxu0 0.0
  %1413 = vmatprep.subr.mxu0 0.0
  %1414 = vmatpush1.xpose.msra.mxu0 0.0
  %1415 = vmatprep.subr.mxu0 0.0
  %1416 = vmatpush1.xpose.msra.mxu0 0.0
  %1417 = vmatprep.subr.mxu0 0.0
  %1418 = vmatpush1.xpose.msra.mxu0 0.0
  %1419 = vmatprep.subr.mxu0 0.0
  %1420 = vmatpush1.xpose.msra.mxu0 0.0
  %1421 = vmatprep.subr.mxu0 0.0
  %1422 = vmatpush1.xpose.msra.mxu0 0.0
  %1423 = vmatprep.subr.mxu0 0.0
  %1424 = vmatpush1.xpose.msra.mxu0 0.0
  %1425 = vmatprep.subr.mxu0 0.0
  %1426 = vmatpush1.xpose.msra.mxu0 0.0
  %1427 = vmatprep.subr.mxu0 0.0
  %1428 = vmatpush1.xpose.msra.mxu0 0.0
  %1429 = vmatprep.subr.mxu0 0.0
  %1430 = vmatpush1.xpose.msra.mxu0 0.0
  %1431 = vmatprep.subr.mxu0 0.0
  %1432 = vmatpush1.xpose.msra.mxu0 0.0
  %1433 = vmatprep.subr.mxu0 0.0
  %1434 = vmatpush1.xpose.msra.mxu0 0.0
  %1435 = vmatprep.subr.mxu0 0.0
  %1436 = vmatpush1.xpose.msra.mxu0 0.0
  %1437 = vmatprep.subr.mxu0 0.0
  %1438 = vmatpush1.xpose.msra.mxu0 0.0
  %1439 = vmatprep.subr.mxu0 0.0
  %1440 = vmatpush1.xpose.msra.mxu0 0.0
  %1441 = vmatprep.subr.mxu0 0.0
  %1442 = vmatpush1.xpose.msra.mxu0 0.0
  %1443 = vmatprep.subr.mxu0 0.0
  %1444 = vmatpush1.xpose.msra.mxu0 0.0
  %1445 = vmatprep.subr.mxu0 0.0
  %1446 = vmatpush1.xpose.msra.mxu0 0.0
  %1447 = vmatprep.subr.mxu0 0.0
  %1448 = vmatpush1.xpose.msra.mxu0 0.0
  %1449 = vmatprep.subr.mxu0 0.0
  %1450 = vmatpush1.xpose.msra.mxu0 0.0
  %1451 = vmatprep.subr.mxu0 0.0
  %1452 = vmatpush1.xpose.msra.mxu0 0.0
  %1453 = vmatprep.subr.mxu0 0.0
  %1454 = vmatpush1.xpose.msra.mxu0 0.0
  %1455 = vmatprep.subr.mxu0 0.0
  %1456 = vmatpush1.xpose.msra.mxu0 0.0
  %1457 = vmatprep.subr.mxu0 0.0
  %1458 = vmatpush1.xpose.msra.mxu0 0.0
  %1459 = vmatprep.mubr.f32.mxu0 0.0
  %v1460 = vand.u32 %v1392, 4294901760
  %v1461 = vsub.f32 %v1392, %v1460
  %v1462 = vand.u32 %v1461, 4294901760
  %v1463 = vsub.f32 %v1461, %v1462
  %v1464 = vand.u32 %v1463, 4294901760
  %1465 = vmatmul.mubr.f32.gmra.mrb[0].mxu0 %v1464
  %v1466 = vpop.f32.mrb[0].mxu0
  %v1467 = vadd.f32 0.0, %v1466
  %v1468 = vpop.f32.mrb[0].mxu0
  %1469 = vdwg.mxu0
  %1470 = vmatprep.subr.mxu0 0.0
  %v1471 = vand.u32 %v1392, 4294901760
  %v1472 = vsub.f32 %v1392, %v1471
  %v1473 = vand.u32 %v1472, 4294901760
  %v1474 = vsub.f32 %v1472, %v1473
  %v1475 = vand.u32 %v1474, 4294901760
  %1476 = vmatpush1.xpose.msra.mxu0 %v1475
  %1477 = vmatprep.subr.mxu0 0.0
  %1478 = vmatpush1.xpose.msra.mxu0 0.0
  %1479 = vmatprep.subr.mxu0 0.0
  %1480 = vmatpush1.xpose.msra.mxu0 0.0
  %1481 = vmatprep.subr.mxu0 0.0
  %1482 = vmatpush1.xpose.msra.mxu0 0.0
  %1483 = vmatprep.subr.mxu0 0.0
  %1484 = vmatpush1.xpose.msra.mxu0 0.0
  %1485 = vmatprep.subr.mxu0 0.0
  %1486 = vmatpush1.xpose.msra.mxu0 0.0
  %1487 = vmatprep.subr.mxu0 0.0
  %1488 = vmatpush1.xpose.msra.mxu0 0.0
  %1489 = vmatprep.subr.mxu0 0.0
  %1490 = vmatpush1.xpose.msra.mxu0 0.0
  %1491 = vmatprep.subr.mxu0 0.0
  %1492 = vmatpush1.xpose.msra.mxu0 0.0
  %1493 = vmatprep.subr.mxu0 0.0
  %1494 = vmatpush1.xpose.msra.mxu0 0.0
  %1495 = vmatprep.subr.mxu0 0.0
  %1496 = vmatpush1.xpose.msra.mxu0 0.0
  %1497 = vmatprep.subr.mxu0 0.0
  %1498 = vmatpush1.xpose.msra.mxu0 0.0
  %1499 = vmatprep.subr.mxu0 0.0
  %1500 = vmatpush1.xpose.msra.mxu0 0.0
  %1501 = vmatprep.subr.mxu0 0.0
  %1502 = vmatpush1.xpose.msra.mxu0 0.0
  %1503 = vmatprep.subr.mxu0 0.0
  %1504 = vmatpush1.xpose.msra.mxu0 0.0
  %1505 = vmatprep.subr.mxu0 0.0
  %1506 = vmatpush1.xpose.msra.mxu0 0.0
  %1507 = vmatprep.subr.mxu0 0.0
  %1508 = vmatpush1.xpose.msra.mxu0 0.0
  %1509 = vmatprep.subr.mxu0 0.0
  %1510 = vmatpush1.xpose.msra.mxu0 0.0
  %1511 = vmatprep.subr.mxu0 0.0
  %1512 = vmatpush1.xpose.msra.mxu0 0.0
  %1513 = vmatprep.subr.mxu0 0.0
  %1514 = vmatpush1.xpose.msra.mxu0 0.0
  %1515 = vmatprep.subr.mxu0 0.0
  %1516 = vmatpush1.xpose.msra.mxu0 0.0
  %1517 = vmatprep.subr.mxu0 0.0
  %1518 = vmatpush1.xpose.msra.mxu0 0.0
  %1519 = vmatprep.subr.mxu0 0.0
  %1520 = vmatpush1.xpose.msra.mxu0 0.0
  %1521 = vmatprep.subr.mxu0 0.0
  %1522 = vmatpush1.xpose.msra.mxu0 0.0
  %1523 = vmatprep.subr.mxu0 0.0
  %1524 = vmatpush1.xpose.msra.mxu0 0.0
  %1525 = vmatprep.subr.mxu0 0.0
  %1526 = vmatpush1.xpose.msra.mxu0 0.0
  %1527 = vmatprep.subr.mxu0 0.0
  %1528 = vmatpush1.xpose.msra.mxu0 0.0
  %1529 = vmatprep.subr.mxu0 0.0
  %1530 = vmatpush1.xpose.msra.mxu0 0.0
  %1531 = vmatprep.subr.mxu0 0.0
  %1532 = vmatpush1.xpose.msra.mxu0 0.0
  %1533 = vmatprep.subr.mxu0 0.0
  %1534 = vmatpush1.xpose.msra.mxu0 0.0
  %1535 = vmatprep.subr.mxu0 0.0
  %1536 = vmatpush1.xpose.msra.mxu0 0.0
  %1537 = vmatprep.subr.mxu0 0.0
  %1538 = vmatpush1.xpose.msra.mxu0 0.0
  %1539 = vmatprep.mubr.f32.mxu0 0.0
  %v1540 = vand.u32 %v1392, 4294901760
  %1541 = vmatmul.mubr.f32.gmra.mrb[0].mxu0 %v1540
  %v1542 = vpop.f32.mrb[0].mxu0
  %v1543 = vadd.f32 %v1467, %v1542
  %v1544 = vpop.f32.mrb[0].mxu0
  %1545 = vdwg.mxu0
  %1546 = vmatprep.subr.mxu0 0.0
  %v1547 = vand.u32 %v1392, 4294901760
  %v1548 = vsub.f32 %v1392, %v1547
  %1549 = vmatpush1.xpose.msra.mxu0 %v1548
  %1550 = vmatprep.subr.mxu0 0.0
  %1551 = vmatpush1.xpose.msra.mxu0 0.0
  %1552 = vmatprep.subr.mxu0 0.0
  %1553 = vmatpush1.xpose.msra.mxu0 0.0
  %1554 = vmatprep.subr.mxu0 0.0
  %1555 = vmatpush1.xpose.msra.mxu0 0.0
  %1556 = vmatprep.subr.mxu0 0.0
  %1557 = vmatpush1.xpose.msra.mxu0 0.0
  %1558 = vmatprep.subr.mxu0 0.0
  %1559 = vmatpush1.xpose.msra.mxu0 0.0
  %1560 = vmatprep.subr.mxu0 0.0
  %1561 = vmatpush1.xpose.msra.mxu0 0.0
  %1562 = vmatprep.subr.mxu0 0.0
  %1563 = vmatpush1.xpose.msra.mxu0 0.0
  %1564 = vmatprep.subr.mxu0 0.0
  %1565 = vmatpush1.xpose.msra.mxu0 0.0
  %1566 = vmatprep.subr.mxu0 0.0
  %1567 = vmatpush1.xpose.msra.mxu0 0.0
  %1568 = vmatprep.subr.mxu0 0.0
  %1569 = vmatpush1.xpose.msra.mxu0 0.0
  %1570 = vmatprep.subr.mxu0 0.0
  %1571 = vmatpush1.xpose.msra.mxu0 0.0
  %1572 = vmatprep.subr.mxu0 0.0
  %1573 = vmatpush1.xpose.msra.mxu0 0.0
  %1574 = vmatprep.subr.mxu0 0.0
  %1575 = vmatpush1.xpose.msra.mxu0 0.0
  %1576 = vmatprep.subr.mxu0 0.0
  %1577 = vmatpush1.xpose.msra.mxu0 0.0
  %1578 = vmatprep.subr.mxu0 0.0
  %1579 = vmatpush1.xpose.msra.mxu0 0.0
  %1580 = vmatprep.subr.mxu0 0.0
  %1581 = vmatpush1.xpose.msra.mxu0 0.0
  %1582 = vmatprep.subr.mxu0 0.0
  %1583 = vmatpush1.xpose.msra.mxu0 0.0
  %1584 = vmatprep.subr.mxu0 0.0
  %1585 = vmatpush1.xpose.msra.mxu0 0.0
  %1586 = vmatprep.subr.mxu0 0.0
  %1587 = vmatpush1.xpose.msra.mxu0 0.0
  %1588 = vmatprep.subr.mxu0 0.0
  %1589 = vmatpush1.xpose.msra.mxu0 0.0
  %1590 = vmatprep.subr.mxu0 0.0
  %1591 = vmatpush1.xpose.msra.mxu0 0.0
  %1592 = vmatprep.subr.mxu0 0.0
  %1593 = vmatpush1.xpose.msra.mxu0 0.0
  %1594 = vmatprep.subr.mxu0 0.0
  %1595 = vmatpush1.xpose.msra.mxu0 0.0
  %1596 = vmatprep.subr.mxu0 0.0
  %1597 = vmatpush1.xpose.msra.mxu0 0.0
  %1598 = vmatprep.subr.mxu0 0.0
  %1599 = vmatpush1.xpose.msra.mxu0 0.0
  %1600 = vmatprep.subr.mxu0 0.0
  %1601 = vmatpush1.xpose.msra.mxu0 0.0
  %1602 = vmatprep.subr.mxu0 0.0
  %1603 = vmatpush1.xpose.msra.mxu0 0.0
  %1604 = vmatprep.subr.mxu0 0.0
  %1605 = vmatpush1.xpose.msra.mxu0 0.0
  %1606 = vmatprep.subr.mxu0 0.0
  %1607 = vmatpush1.xpose.msra.mxu0 0.0
  %1608 = vmatprep.subr.mxu0 0.0
  %1609 = vmatpush1.xpose.msra.mxu0 0.0
  %1610 = vmatprep.subr.mxu0 0.0
  %1611 = vmatpush1.xpose.msra.mxu0 0.0
  %1612 = vmatprep.mubr.f32.mxu0 0.0
  %v1613 = vand.u32 %v1392, 4294901760
  %v1614 = vsub.f32 %v1392, %v1613
  %1615 = vmatmul.mubr.f32.gmra.mrb[0].mxu0 %v1614
  %v1616 = vpop.f32.mrb[0].mxu0
  %v1617 = vadd.f32 %v1543, %v1616
  %v1618 = vpop.f32.mrb[0].mxu0
  %1619 = vdwg.mxu0
  %1620 = vmatprep.subr.mxu0 0.0
  %v1621 = vand.u32 %v1392, 4294901760
  %1622 = vmatpush1.xpose.msra.mxu0 %v1621
  %1623 = vmatprep.subr.mxu0 0.0
  %1624 = vmatpush1.xpose.msra.mxu0 0.0
  %1625 = vmatprep.subr.mxu0 0.0
  %1626 = vmatpush1.xpose.msra.mxu0 0.0
  %1627 = vmatprep.subr.mxu0 0.0
  %1628 = vmatpush1.xpose.msra.mxu0 0.0
  %1629 = vmatprep.subr.mxu0 0.0
  %1630 = vmatpush1.xpose.msra.mxu0 0.0
  %1631 = vmatprep.subr.mxu0 0.0
  %1632 = vmatpush1.xpose.msra.mxu0 0.0
  %1633 = vmatprep.subr.mxu0 0.0
  %1634 = vmatpush1.xpose.msra.mxu0 0.0
  %1635 = vmatprep.subr.mxu0 0.0
  %1636 = vmatpush1.xpose.msra.mxu0 0.0
  %1637 = vmatprep.subr.mxu0 0.0
  %1638 = vmatpush1.xpose.msra.mxu0 0.0
  %1639 = vmatprep.subr.mxu0 0.0
  %1640 = vmatpush1.xpose.msra.mxu0 0.0
  %1641 = vmatprep.subr.mxu0 0.0
  %1642 = vmatpush1.xpose.msra.mxu0 0.0
  %1643 = vmatprep.subr.mxu0 0.0
  %1644 = vmatpush1.xpose.msra.mxu0 0.0
  %1645 = vmatprep.subr.mxu0 0.0
  %1646 = vmatpush1.xpose.msra.mxu0 0.0
  %1647 = vmatprep.subr.mxu0 0.0
  %1648 = vmatpush1.xpose.msra.mxu0 0.0
  %1649 = vmatprep.subr.mxu0 0.0
  %1650 = vmatpush1.xpose.msra.mxu0 0.0
  %1651 = vmatprep.subr.mxu0 0.0
  %1652 = vmatpush1.xpose.msra.mxu0 0.0
  %1653 = vmatprep.subr.mxu0 0.0
  %1654 = vmatpush1.xpose.msra.mxu0 0.0
  %1655 = vmatprep.subr.mxu0 0.0
  %1656 = vmatpush1.xpose.msra.mxu0 0.0
  %1657 = vmatprep.subr.mxu0 0.0
  %1658 = vmatpush1.xpose.msra.mxu0 0.0
  %1659 = vmatprep.subr.mxu0 0.0
  %1660 = vmatpush1.xpose.msra.mxu0 0.0
  %1661 = vmatprep.subr.mxu0 0.0
  %1662 = vmatpush1.xpose.msra.mxu0 0.0
  %1663 = vmatprep.subr.mxu0 0.0
  %1664 = vmatpush1.xpose.msra.mxu0 0.0
  %1665 = vmatprep.subr.mxu0 0.0
  %1666 = vmatpush1.xpose.msra.mxu0 0.0
  %1667 = vmatprep.subr.mxu0 0.0
  %1668 = vmatpush1.xpose.msra.mxu0 0.0
  %1669 = vmatprep.subr.mxu0 0.0
  %1670 = vmatpush1.xpose.msra.mxu0 0.0
  %1671 = vmatprep.subr.mxu0 0.0
  %1672 = vmatpush1.xpose.msra.mxu0 0.0
  %1673 = vmatprep.subr.mxu0 0.0
  %1674 = vmatpush1.xpose.msra.mxu0 0.0
  %1675 = vmatprep.subr.mxu0 0.0
  %1676 = vmatpush1.xpose.msra.mxu0 0.0
  %1677 = vmatprep.subr.mxu0 0.0
  %1678 = vmatpush1.xpose.msra.mxu0 0.0
  %1679 = vmatprep.subr.mxu0 0.0
  %1680 = vmatpush1.xpose.msra.mxu0 0.0
  %1681 = vmatprep.subr.mxu0 0.0
  %1682 = vmatpush1.xpose.msra.mxu0 0.0
  %1683 = vmatprep.subr.mxu0 0.0
  %1684 = vmatpush1.xpose.msra.mxu0 0.0
  %1685 = vmatprep.mubr.f32.mxu0 0.0
  %v1686 = vand.u32 %v1392, 4294901760
  %v1687 = vsub.f32 %v1392, %v1686
  %v1688 = vand.u32 %v1687, 4294901760
  %1689 = vmatmul.mubr.f32.gmra.mrb[0].mxu0 %v1688
  %v1690 = vpop.f32.mrb[0].mxu0
  %v1691 = vadd.f32 %v1617, %v1690
  %v1692 = vpop.f32.mrb[0].mxu0
  %1693 = vdwg.mxu0
  %1694 = vmatprep.subr.mxu0 0.0
  %v1695 = vand.u32 %v1392, 4294901760
  %v1696 = vsub.f32 %v1392, %v1695
  %v1697 = vand.u32 %v1696, 4294901760
  %1698 = vmatpush1.xpose.msra.mxu0 %v1697
  %1699 = vmatprep.subr.mxu0 0.0
  %1700 = vmatpush1.xpose.msra.mxu0 0.0
  %1701 = vmatprep.subr.mxu0 0.0
  %1702 = vmatpush1.xpose.msra.mxu0 0.0
  %1703 = vmatprep.subr.mxu0 0.0
  %1704 = vmatpush1.xpose.msra.mxu0 0.0
  %1705 = vmatprep.subr.mxu0 0.0
  %1706 = vmatpush1.xpose.msra.mxu0 0.0
  %1707 = vmatprep.subr.mxu0 0.0
  %1708 = vmatpush1.xpose.msra.mxu0 0.0
  %1709 = vmatprep.subr.mxu0 0.0
  %1710 = vmatpush1.xpose.msra.mxu0 0.0
  %1711 = vmatprep.subr.mxu0 0.0
  %1712 = vmatpush1.xpose.msra.mxu0 0.0
  %1713 = vmatprep.subr.mxu0 0.0
  %1714 = vmatpush1.xpose.msra.mxu0 0.0
  %1715 = vmatprep.subr.mxu0 0.0
  %1716 = vmatpush1.xpose.msra.mxu0 0.0
  %1717 = vmatprep.subr.mxu0 0.0
  %1718 = vmatpush1.xpose.msra.mxu0 0.0
  %1719 = vmatprep.subr.mxu0 0.0
  %1720 = vmatpush1.xpose.msra.mxu0 0.0
  %1721 = vmatprep.subr.mxu0 0.0
  %1722 = vmatpush1.xpose.msra.mxu0 0.0
  %1723 = vmatprep.subr.mxu0 0.0
  %1724 = vmatpush1.xpose.msra.mxu0 0.0
  %1725 = vmatprep.subr.mxu0 0.0
  %1726 = vmatpush1.xpose.msra.mxu0 0.0
  %1727 = vmatprep.subr.mxu0 0.0
  %1728 = vmatpush1.xpose.msra.mxu0 0.0
  %1729 = vmatprep.subr.mxu0 0.0
  %1730 = vmatpush1.xpose.msra.mxu0 0.0
  %1731 = vmatprep.subr.mxu0 0.0
  %1732 = vmatpush1.xpose.msra.mxu0 0.0
  %1733 = vmatprep.subr.mxu0 0.0
  %1734 = vmatpush1.xpose.msra.mxu0 0.0
  %1735 = vmatprep.subr.mxu0 0.0
  %1736 = vmatpush1.xpose.msra.mxu0 0.0
  %1737 = vmatprep.subr.mxu0 0.0
  %1738 = vmatpush1.xpose.msra.mxu0 0.0
  %1739 = vmatprep.subr.mxu0 0.0
  %1740 = vmatpush1.xpose.msra.mxu0 0.0
  %1741 = vmatprep.subr.mxu0 0.0
  %1742 = vmatpush1.xpose.msra.mxu0 0.0
  %1743 = vmatprep.subr.mxu0 0.0
  %1744 = vmatpush1.xpose.msra.mxu0 0.0
  %1745 = vmatprep.subr.mxu0 0.0
  %1746 = vmatpush1.xpose.msra.mxu0 0.0
  %1747 = vmatprep.subr.mxu0 0.0
  %1748 = vmatpush1.xpose.msra.mxu0 0.0
  %1749 = vmatprep.subr.mxu0 0.0
  %1750 = vmatpush1.xpose.msra.mxu0 0.0
  %1751 = vmatprep.subr.mxu0 0.0
  %1752 = vmatpush1.xpose.msra.mxu0 0.0
  %1753 = vmatprep.subr.mxu0 0.0
  %1754 = vmatpush1.xpose.msra.mxu0 0.0
  %1755 = vmatprep.subr.mxu0 0.0
  %1756 = vmatpush1.xpose.msra.mxu0 0.0
  %1757 = vmatprep.subr.mxu0 0.0
  %1758 = vmatpush1.xpose.msra.mxu0 0.0
  %1759 = vmatprep.subr.mxu0 0.0
  %1760 = vmatpush1.xpose.msra.mxu0 0.0
  %1761 = vmatprep.mubr.f32.mxu0 0.0
  %v1762 = vand.u32 %v1392, 4294901760
  %1763 = vmatmul.mubr.f32.gmra.mrb[0].mxu0 %v1762
  %v1764 = vpop.f32.mrb[0].mxu0
  %v1765 = vadd.f32 %v1691, %v1764
  %v1766 = vpop.f32.mrb[0].mxu0
  %1767 = vdwg.mxu0
  %1768 = vmatprep.subr.mxu0 0.0
  %v1769 = vand.u32 %v1392, 4294901760
  %1770 = vmatpush1.xpose.msra.mxu0 %v1769
  %1771 = vmatprep.subr.mxu0 0.0
  %1772 = vmatpush1.xpose.msra.mxu0 0.0
  %1773 = vmatprep.subr.mxu0 0.0
  %1774 = vmatpush1.xpose.msra.mxu0 0.0
  %1775 = vmatprep.subr.mxu0 0.0
  %1776 = vmatpush1.xpose.msra.mxu0 0.0
  %1777 = vmatprep.subr.mxu0 0.0
  %1778 = vmatpush1.xpose.msra.mxu0 0.0
  %1779 = vmatprep.subr.mxu0 0.0
  %1780 = vmatpush1.xpose.msra.mxu0 0.0
  %1781 = vmatprep.subr.mxu0 0.0
  %1782 = vmatpush1.xpose.msra.mxu0 0.0
  %1783 = vmatprep.subr.mxu0 0.0
  %1784 = vmatpush1.xpose.msra.mxu0 0.0
  %1785 = vmatprep.subr.mxu0 0.0
  %1786 = vmatpush1.xpose.msra.mxu0 0.0
  %1787 = vmatprep.subr.mxu0 0.0
  %1788 = vmatpush1.xpose.msra.mxu0 0.0
  %1789 = vmatprep.subr.mxu0 0.0
  %1790 = vmatpush1.xpose.msra.mxu0 0.0
  %1791 = vmatprep.subr.mxu0 0.0
  %1792 = vmatpush1.xpose.msra.mxu0 0.0
  %1793 = vmatprep.subr.mxu0 0.0
  %1794 = vmatpush1.xpose.msra.mxu0 0.0
  %1795 = vmatprep.subr.mxu0 0.0
  %1796 = vmatpush1.xpose.msra.mxu0 0.0
  %1797 = vmatprep.subr.mxu0 0.0
  %1798 = vmatpush1.xpose.msra.mxu0 0.0
  %1799 = vmatprep.subr.mxu0 0.0
  %1800 = vmatpush1.xpose.msra.mxu0 0.0
  %1801 = vmatprep.subr.mxu0 0.0
  %1802 = vmatpush1.xpose.msra.mxu0 0.0
  %1803 = vmatprep.subr.mxu0 0.0
  %1804 = vmatpush1.xpose.msra.mxu0 0.0
  %1805 = vmatprep.subr.mxu0 0.0
  %1806 = vmatpush1.xpose.msra.mxu0 0.0
  %1807 = vmatprep.subr.mxu0 0.0
  %1808 = vmatpush1.xpose.msra.mxu0 0.0
  %1809 = vmatprep.subr.mxu0 0.0
  %1810 = vmatpush1.xpose.msra.mxu0 0.0
  %1811 = vmatprep.subr.mxu0 0.0
  %1812 = vmatpush1.xpose.msra.mxu0 0.0
  %1813 = vmatprep.subr.mxu0 0.0
  %1814 = vmatpush1.xpose.msra.mxu0 0.0
  %1815 = vmatprep.subr.mxu0 0.0
  %1816 = vmatpush1.xpose.msra.mxu0 0.0
  %1817 = vmatprep.subr.mxu0 0.0
  %1818 = vmatpush1.xpose.msra.mxu0 0.0
  %1819 = vmatprep.subr.mxu0 0.0
  %1820 = vmatpush1.xpose.msra.mxu0 0.0
  %1821 = vmatprep.subr.mxu0 0.0
  %1822 = vmatpush1.xpose.msra.mxu0 0.0
  %1823 = vmatprep.subr.mxu0 0.0
  %1824 = vmatpush1.xpose.msra.mxu0 0.0
  %1825 = vmatprep.subr.mxu0 0.0
  %1826 = vmatpush1.xpose.msra.mxu0 0.0
  %1827 = vmatprep.subr.mxu0 0.0
  %1828 = vmatpush1.xpose.msra.mxu0 0.0
  %1829 = vmatprep.subr.mxu0 0.0
  %1830 = vmatpush1.xpose.msra.mxu0 0.0
  %1831 = vmatprep.subr.mxu0 0.0
  %1832 = vmatpush1.xpose.msra.mxu0 0.0
  %1833 = vmatprep.mubr.f32.mxu0 0.0
  %v1834 = vand.u32 %v1392, 4294901760
  %1835 = vmatmul.mubr.f32.gmra.mrb[0].mxu0 %v1834
  %v1836 = vpop.f32.mrb[0].mxu0
  %v1837 = vadd.f32 %v1765, %v1836
  %v1838 = vpop.f32.mrb[0].mxu0
  %1839 = vdwg.mxu0
  %v1840 = vlaneseq
  %v1841 = vand.u32 %v1840, 127
  %vm1842 = vcmask 64512
  %v1843 = vsel %vm1842, %v490, -inf
  %1844 = vmax.xlane.f32.xlu0 %v1843
  %v1845 = vpop.xlane.xlu0 %1844
  %v1846 = vsel %vm1842, %v939, -inf
  %1847 = vmax.xlane.f32.xlu0 %v1846
  %v1848 = vpop.xlane.xlu0 %1847
  %v1849 = vsel %vm1842, %v1388, -inf
  %1850 = vmax.xlane.f32.xlu0 %v1849
  %v1851 = vpop.xlane.xlu0 %1850
  %v1852 = vsel %vm1842, %v1837, -inf
  %1853 = vmax.xlane.f32.xlu0 %v1852
  %v1854 = vpop.xlane.xlu0 %1853
  %vm1855 = vcmp.eq.f32.partialorder %v490, %v1845
  %vm1856 = vcmp.eq.f32.partialorder %v939, %v1848
  %vm1857 = vcmp.eq.f32.partialorder %v1388, %v1851
  %vm1858 = vcmp.eq.f32.partialorder %v1837, %v1854
  %v1859 = vsel %vm1855, %v1841, 8
  %v1860 = vsel %vm1856, %v1841, 8
  %v1861 = vsel %vm1857, %v1841, 8
  %v1862 = vsel %vm1858, %v1841, 8
  %v1863 = vsel %vm1842, %v1859, 2147483647
  %v1864 = vand.u32 %v1863, 65535
  %v1865 = vshra.s32 %v1863, 16
  %v1866 = vcvt.s32.f32 %v1864
  %v1867 = vcvt.s32.f32 %v1865
  %1868 = vmin.xlane.f32.xlu0 %v1867
  %v1869 = vpop.xlane.xlu0 %1868
  %vm1870 = vcmp.eq.f32.partialorder %v1867, %v1869
  %v1871 = vsel %vm1870, %v1866, inf
  %1872 = vmin.xlane.f32.xlu0 %v1871
  %v1873 = vpop.xlane.xlu0 %1872
  %v1874 = vcvt.f32.s32 %v1873
  %v1875 = vcvt.f32.s32 %v1869
  %v1876 = vshll.u32 %v1875, 16
  %v1877 = vadd.s32 %v1876, %v1874
  %v1878 = vsel %vm1842, %v1860, 2147483647
  %v1879 = vand.u32 %v1878, 65535
  %v1880 = vshra.s32 %v1878, 16
  %v1881 = vcvt.s32.f32 %v1879
  %v1882 = vcvt.s32.f32 %v1880
  %1883 = vmin.xlane.f32.xlu0 %v1882
  %v1884 = vpop.xlane.xlu0 %1883
  %vm1885 = vcmp.eq.f32.partialorder %v1882, %v1884
  %v1886 = vsel %vm1885, %v1881, inf
  %1887 = vmin.xlane.f32.xlu0 %v1886
  %v1888 = vpop.xlane.xlu0 %1887
  %v1889 = vcvt.f32.s32 %v1888
  %v1890 = vcvt.f32.s32 %v1884
  %v1891 = vshll.u32 %v1890, 16
  %v1892 = vadd.s32 %v1891, %v1889
  %v1893 = vsel %vm1842, %v1861, 2147483647
  %v1894 = vand.u32 %v1893, 65535
  %v1895 = vshra.s32 %v1893, 16
  %v1896 = vcvt.s32.f32 %v1894
  %v1897 = vcvt.s32.f32 %v1895
  %1898 = vmin.xlane.f32.xlu0 %v1897
  %v1899 = vpop.xlane.xlu0 %1898
  %vm1900 = vcmp.eq.f32.partialorder %v1897, %v1899
  %v1901 = vsel %vm1900, %v1896, inf
  %1902 = vmin.xlane.f32.xlu0 %v1901
  %v1903 = vpop.xlane.xlu0 %1902
  %v1904 = vcvt.f32.s32 %v1903
  %v1905 = vcvt.f32.s32 %v1899
  %v1906 = vshll.u32 %v1905, 16
  %v1907 = vadd.s32 %v1906, %v1904
  %v1908 = vsel %vm1842, %v1862, 2147483647
  %v1909 = vand.u32 %v1908, 65535
  %v1910 = vshra.s32 %v1908, 16
  %v1911 = vcvt.s32.f32 %v1909
  %v1912 = vcvt.s32.f32 %v1910
  %1913 = vmin.xlane.f32.xlu0 %v1912
  %v1914 = vpop.xlane.xlu0 %1913
  %vm1915 = vcmp.eq.f32.partialorder %v1912, %v1914
  %v1916 = vsel %vm1915, %v1911, inf
  %1917 = vmin.xlane.f32.xlu0 %v1916
  %v1918 = vpop.xlane.xlu0 %1917
  %v1919 = vcvt.f32.s32 %v1918
  %v1920 = vcvt.f32.s32 %v1914
  %v1921 = vshll.u32 %v1920, 16
  %v1922 = vadd.s32 %v1921, %v1919
  %vm1923 = vcmp.eq.s32.totalorder %v1841, %v1877
  %vm1924 = vcmp.eq.s32.totalorder %v1841, %v1892
  %vm1925 = vcmp.eq.s32.totalorder %v1841, %v1907
  %vm1926 = vcmp.eq.s32.totalorder %v1841, %v1922
  %v1927 = vsel %vm1923, %v1845, 0.0
  %v1928 = vsel %vm1924, %v1848, 0.0
  %v1929 = vsel %vm1925, %v1851, 0.0
  %v1930 = vsel %vm1926, %v1854, 0.0
  %vm1931 = vcmp.eq.s32.totalorder %v1841, 0
  %v1932 = vsel %vm1931, %v1877, 0
  %v1933 = vsel %vm1931, %v1892, 0
  %v1934 = vsel %vm1931, %v1907, 0
  %v1935 = vsel %vm1931, %v1922, 0
  %v1936 = vsel %vm1923, -inf, %v490
  %v1937 = vsel %vm1924, -inf, %v939
  %v1938 = vsel %vm1925, -inf, %v1388
  %v1939 = vsel %vm1926, -inf, %v1837
  %v1940 = vsel %vm1842, %v1936, -inf
  %1941 = vmax.xlane.f32.xlu0 %v1940
  %v1942 = vpop.xlane.xlu0 %1941
  %v1943 = vsel %vm1842, %v1937, -inf
  %1944 = vmax.xlane.f32.xlu0 %v1943
  %v1945 = vpop.xlane.xlu0 %1944
  %v1946 = vsel %vm1842, %v1938, -inf
  %1947 = vmax.xlane.f32.xlu0 %v1946
  %v1948 = vpop.xlane.xlu0 %1947
  %v1949 = vsel %vm1842, %v1939, -inf
  %1950 = vmax.xlane.f32.xlu0 %v1949
  %v1951 = vpop.xlane.xlu0 %1950
  %vm1952 = vcmp.eq.f32.partialorder %v1936, %v1942
  %vm1953 = vcmp.eq.f32.partialorder %v1937, %v1945
  %vm1954 = vcmp.eq.f32.partialorder %v1938, %v1948
  %vm1955 = vcmp.eq.f32.partialorder %v1939, %v1951
  %v1956 = vsel %vm1952, %v1841, 8
  %v1957 = vsel %vm1953, %v1841, 8
  %v1958 = vsel %vm1954, %v1841, 8
  %v1959 = vsel %vm1955, %v1841, 8
  %v1960 = vsel %vm1842, %v1956, 2147483647
  %v1961 = vand.u32 %v1960, 65535
  %v1962 = vshra.s32 %v1960, 16
  %v1963 = vcvt.s32.f32 %v1961
  %v1964 = vcvt.s32.f32 %v1962
  %1965 = vmin.xlane.f32.xlu0 %v1964
  %v1966 = vpop.xlane.xlu0 %1965
  %vm1967 = vcmp.eq.f32.partialorder %v1964, %v1966
  %v1968 = vsel %vm1967, %v1963, inf
  %1969 = vmin.xlane.f32.xlu0 %v1968
  %v1970 = vpop.xlane.xlu0 %1969
  %v1971 = vcvt.f32.s32 %v1970
  %v1972 = vcvt.f32.s32 %v1966
  %v1973 = vshll.u32 %v1972, 16
  %v1974 = vadd.s32 %v1973, %v1971
  %v1975 = vsel %vm1842, %v1957, 2147483647
  %v1976 = vand.u32 %v1975, 65535
  %v1977 = vshra.s32 %v1975, 16
  %v1978 = vcvt.s32.f32 %v1976
  %v1979 = vcvt.s32.f32 %v1977
  %1980 = vmin.xlane.f32.xlu0 %v1979
  %v1981 = vpop.xlane.xlu0 %1980
  %vm1982 = vcmp.eq.f32.partialorder %v1979, %v1981
  %v1983 = vsel %vm1982, %v1978, inf
  %1984 = vmin.xlane.f32.xlu0 %v1983
  %v1985 = vpop.xlane.xlu0 %1984
  %v1986 = vcvt.f32.s32 %v1985
  %v1987 = vcvt.f32.s32 %v1981
  %v1988 = vshll.u32 %v1987, 16
  %v1989 = vadd.s32 %v1988, %v1986
  %v1990 = vsel %vm1842, %v1958, 2147483647
  %v1991 = vand.u32 %v1990, 65535
  %v1992 = vshra.s32 %v1990, 16
  %v1993 = vcvt.s32.f32 %v1991
  %v1994 = vcvt.s32.f32 %v1992
  %1995 = vmin.xlane.f32.xlu0 %v1994
  %v1996 = vpop.xlane.xlu0 %1995
  %vm1997 = vcmp.eq.f32.partialorder %v1994, %v1996
  %v1998 = vsel %vm1997, %v1993, inf
  %1999 = vmin.xlane.f32.xlu0 %v1998
  %v2000 = vpop.xlane.xlu0 %1999
  %v2001 = vcvt.f32.s32 %v2000
  %v2002 = vcvt.f32.s32 %v1996
  %v2003 = vshll.u32 %v2002, 16
  %v2004 = vadd.s32 %v2003, %v2001
  %v2005 = vsel %vm1842, %v1959, 2147483647
  %v2006 = vand.u32 %v2005, 65535
  %v2007 = vshra.s32 %v2005, 16
  %v2008 = vcvt.s32.f32 %v2006
  %v2009 = vcvt.s32.f32 %v2007
  %2010 = vmin.xlane.f32.xlu0 %v2009
  %v2011 = vpop.xlane.xlu0 %2010
  %vm2012 = vcmp.eq.f32.partialorder %v2009, %v2011
  %v2013 = vsel %vm2012, %v2008, inf
  %2014 = vmin.xlane.f32.xlu0 %v2013
  %v2015 = vpop.xlane.xlu0 %2014
  %v2016 = vcvt.f32.s32 %v2015
  %v2017 = vcvt.f32.s32 %v2011
  %v2018 = vshll.u32 %v2017, 16
  %v2019 = vadd.s32 %v2018, %v2016
  %vm2020 = vcmp.eq.s32.totalorder %v1841, %v1974
  %vm2021 = vcmp.eq.s32.totalorder %v1841, %v1989
  %vm2022 = vcmp.eq.s32.totalorder %v1841, %v2004
  %vm2023 = vcmp.eq.s32.totalorder %v1841, %v2019
  %v2024 = vsel %vm2020, %v1942, %v1927
  %v2025 = vsel %vm2021, %v1945, %v1928
  %v2026 = vsel %vm2022, %v1948, %v1929
  %v2027 = vsel %vm2023, %v1951, %v1930
  %vm2028 = vcmp.eq.s32.totalorder %v1841, 1
  %v2029 = vsel %vm2028, %v1974, %v1932
  %v2030 = vsel %vm2028, %v1989, %v1933
  %v2031 = vsel %vm2028, %v2004, %v1934
  %v2032 = vsel %vm2028, %v2019, %v1935
  %v2033 = vsel %vm2020, -inf, %v1936
  %v2034 = vsel %vm2021, -inf, %v1937
  %v2035 = vsel %vm2022, -inf, %v1938
  %v2036 = vsel %vm2023, -inf, %v1939
  %v2037 = vsel %vm1842, %v2033, -inf
  %2038 = vmax.xlane.f32.xlu0 %v2037
  %v2039 = vpop.xlane.xlu0 %2038
  %v2040 = vsel %vm1842, %v2034, -inf
  %2041 = vmax.xlane.f32.xlu0 %v2040
  %v2042 = vpop.xlane.xlu0 %2041
  %v2043 = vsel %vm1842, %v2035, -inf
  %2044 = vmax.xlane.f32.xlu0 %v2043
  %v2045 = vpop.xlane.xlu0 %2044
  %v2046 = vsel %vm1842, %v2036, -inf
  %2047 = vmax.xlane.f32.xlu0 %v2046
  %v2048 = vpop.xlane.xlu0 %2047
  %vm2049 = vcmp.eq.f32.partialorder %v2033, %v2039
  %vm2050 = vcmp.eq.f32.partialorder %v2034, %v2042
  %vm2051 = vcmp.eq.f32.partialorder %v2035, %v2045
  %vm2052 = vcmp.eq.f32.partialorder %v2036, %v2048
  %v2053 = vsel %vm2049, %v1841, 8
  %v2054 = vsel %vm2050, %v1841, 8
  %v2055 = vsel %vm2051, %v1841, 8
  %v2056 = vsel %vm2052, %v1841, 8
  %v2057 = vsel %vm1842, %v2053, 2147483647
  %v2058 = vand.u32 %v2057, 65535
  %v2059 = vshra.s32 %v2057, 16
  %v2060 = vcvt.s32.f32 %v2058
  %v2061 = vcvt.s32.f32 %v2059
  %2062 = vmin.xlane.f32.xlu0 %v2061
  %v2063 = vpop.xlane.xlu0 %2062
  %vm2064 = vcmp.eq.f32.partialorder %v2061, %v2063
  %v2065 = vsel %vm2064, %v2060, inf
  %2066 = vmin.xlane.f32.xlu0 %v2065
  %v2067 = vpop.xlane.xlu0 %2066
  %v2068 = vcvt.f32.s32 %v2067
  %v2069 = vcvt.f32.s32 %v2063
  %v2070 = vshll.u32 %v2069, 16
  %v2071 = vadd.s32 %v2070, %v2068
  %v2072 = vsel %vm1842, %v2054, 2147483647
  %v2073 = vand.u32 %v2072, 65535
  %v2074 = vshra.s32 %v2072, 16
  %v2075 = vcvt.s32.f32 %v2073
  %v2076 = vcvt.s32.f32 %v2074
  %2077 = vmin.xlane.f32.xlu0 %v2076
  %v2078 = vpop.xlane.xlu0 %2077
  %vm2079 = vcmp.eq.f32.partialorder %v2076, %v2078
  %v2080 = vsel %vm2079, %v2075, inf
  %2081 = vmin.xlane.f32.xlu0 %v2080
  %v2082 = vpop.xlane.xlu0 %2081
  %v2083 = vcvt.f32.s32 %v2082
  %v2084 = vcvt.f32.s32 %v2078
  %v2085 = vshll.u32 %v2084, 16
  %v2086 = vadd.s32 %v2085, %v2083
  %v2087 = vsel %vm1842, %v2055, 2147483647
  %v2088 = vand.u32 %v2087, 65535
  %v2089 = vshra.s32 %v2087, 16
  %v2090 = vcvt.s32.f32 %v2088
  %v2091 = vcvt.s32.f32 %v2089
  %2092 = vmin.xlane.f32.xlu0 %v2091
  %v2093 = vpop.xlane.xlu0 %2092
  %vm2094 = vcmp.eq.f32.partialorder %v2091, %v2093
  %v2095 = vsel %vm2094, %v2090, inf
  %2096 = vmin.xlane.f32.xlu0 %v2095
  %v2097 = vpop.xlane.xlu0 %2096
  %v2098 = vcvt.f32.s32 %v2097
  %v2099 = vcvt.f32.s32 %v2093
  %v2100 = vshll.u32 %v2099, 16
  %v2101 = vadd.s32 %v2100, %v2098
  %v2102 = vsel %vm1842, %v2056, 2147483647
  %v2103 = vand.u32 %v2102, 65535
  %v2104 = vshra.s32 %v2102, 16
  %v2105 = vcvt.s32.f32 %v2103
  %v2106 = vcvt.s32.f32 %v2104
  %2107 = vmin.xlane.f32.xlu0 %v2106
  %v2108 = vpop.xlane.xlu0 %2107
  %vm2109 = vcmp.eq.f32.partialorder %v2106, %v2108
  %v2110 = vsel %vm2109, %v2105, inf
  %2111 = vmin.xlane.f32.xlu0 %v2110
  %v2112 = vpop.xlane.xlu0 %2111
  %v2113 = vcvt.f32.s32 %v2112
  %v2114 = vcvt.f32.s32 %v2108
  %v2115 = vshll.u32 %v2114, 16
  %v2116 = vadd.s32 %v2115, %v2113
  %vm2117 = vcmp.eq.s32.totalorder %v1841, %v2071
  %vm2118 = vcmp.eq.s32.totalorder %v1841, %v2086
  %vm2119 = vcmp.eq.s32.totalorder %v1841, %v2101
  %vm2120 = vcmp.eq.s32.totalorder %v1841, %v2116
  %v2121 = vsel %vm2117, %v2039, %v2024
  %v2122 = vsel %vm2118, %v2042, %v2025
  %v2123 = vsel %vm2119, %v2045, %v2026
  %v2124 = vsel %vm2120, %v2048, %v2027
  %vm2125 = vcmp.eq.s32.totalorder %v1841, 2
  %v2126 = vsel %vm2125, %v2071, %v2029
  %v2127 = vsel %vm2125, %v2086, %v2030
  %v2128 = vsel %vm2125, %v2101, %v2031
  %v2129 = vsel %vm2125, %v2116, %v2032
  %2130 = vst [vmem:[%s1] sm:$0xff] %v2121
  %2131 = vst [vmem:[%s1 + $0x8] sm:$0xff] %v2122
  %2132 = vst [vmem:[%s1 + $0x10] sm:$0xff] %v2123
  %2133 = vst [vmem:[%s1 + $0x18] sm:$0xff] %v2124
  %2134 = vst [vmem:[%s3] sm:$0xff] %v2126
  %2135 = vst [vmem:[%s3 + $0x8] sm:$0xff] %v2127
  %2136 = vst [vmem:[%s3 + $0x10] sm:$0xff] %v2128
  %2137 = vst [vmem:[%s3 + $0x18] sm:$0xff] %v2129
  %2138 = vmatprep.subr.mxu0 0.0
  %v2139 = vand.u32 %v1392, 4294901760
  %2140 = vmatpush1.xpose.msra.mxu0 %v2139
  %2141 = vmatprep.subr.mxu0 0.0
  %2142 = vmatpush1.xpose.msra.mxu0 0.0
  %2143 = vmatprep.subr.mxu0 0.0
  %2144 = vmatpush1.xpose.msra.mxu0 0.0
  %2145 = vmatprep.subr.mxu0 0.0
  %2146 = vmatpush1.xpose.msra.mxu0 0.0
  %2147 = vmatprep.subr.mxu0 0.0
  %2148 = vmatpush1.xpose.msra.mxu0 0.0
  %2149 = vmatprep.subr.mxu0 0.0
  %2150 = vmatpush1.xpose.msra.mxu0 0.0
  %2151 = vmatprep.subr.mxu0 0.0
  %2152 = vmatpush1.xpose.msra.mxu0 0.0
  %2153 = vmatprep.subr.mxu0 0.0
  %2154 = vmatpush1.xpose.msra.mxu0 0.0
  %2155 = vmatprep.subr.mxu0 0.0
  %2156 = vmatpush1.xpose.msra.mxu0 0.0
  %2157 = vmatprep.subr.mxu0 0.0
  %2158 = vmatpush1.xpose.msra.mxu0 0.0
  %2159 = vmatprep.subr.mxu0 0.0
  %2160 = vmatpush1.xpose.msra.mxu0 0.0
  %2161 = vmatprep.subr.mxu0 0.0
  %2162 = vmatpush1.xpose.msra.mxu0 0.0
  %2163 = vmatprep.subr.mxu0 0.0
  %2164 = vmatpush1.xpose.msra.mxu0 0.0
  %2165 = vmatprep.subr.mxu0 0.0
  %2166 = vmatpush1.xpose.msra.mxu0 0.0
  %2167 = vmatprep.subr.mxu0 0.0
  %2168 = vmatpush1.xpose.msra.mxu0 0.0
  %2169 = vmatprep.subr.mxu0 0.0
  %2170 = vmatpush1.xpose.msra.mxu0 0.0
  %2171 = vmatprep.subr.mxu0 0.0
  %2172 = vmatpush1.xpose.msra.mxu0 0.0
  %2173 = vmatprep.subr.mxu0 0.0
  %2174 = vmatpush1.xpose.msra.mxu0 0.0
  %2175 = vmatprep.subr.mxu0 0.0
  %2176 = vmatpush1.xpose.msra.mxu0 0.0
  %2177 = vmatprep.subr.mxu0 0.0
  %2178 = vmatpush1.xpose.msra.mxu0 0.0
  %2179 = vmatprep.subr.mxu0 0.0
  %2180 = vmatpush1.xpose.msra.mxu0 0.0
  %2181 = vmatprep.subr.mxu0 0.0
  %2182 = vmatpush1.xpose.msra.mxu0 0.0
  %2183 = vmatprep.subr.mxu0 0.0
  %2184 = vmatpush1.xpose.msra.mxu0 0.0
  %2185 = vmatprep.subr.mxu0 0.0
  %2186 = vmatpush1.xpose.msra.mxu0 0.0
  %2187 = vmatprep.subr.mxu0 0.0
  %2188 = vmatpush1.xpose.msra.mxu0 0.0
  %2189 = vmatprep.subr.mxu0 0.0
  %2190 = vmatpush1.xpose.msra.mxu0 0.0
  %2191 = vmatprep.subr.mxu0 0.0
  %2192 = vmatpush1.xpose.msra.mxu0 0.0
  %2193 = vmatprep.subr.mxu0 0.0
  %2194 = vmatpush1.xpose.msra.mxu0 0.0
  %2195 = vmatprep.subr.mxu0 0.0
  %2196 = vmatpush1.xpose.msra.mxu0 0.0
  %2197 = vmatprep.subr.mxu0 0.0
  %2198 = vmatpush1.xpose.msra.mxu0 0.0
  %2199 = vmatprep.subr.mxu0 0.0
  %2200 = vmatpush1.xpose.msra.mxu0 0.0
  %2201 = vmatprep.subr.mxu0 0.0
  %2202 = vmatpush1.xpose.msra.mxu0 0.0
  %2203 = vmatprep.mubr.f32.mxu0 0.0
  %v2204 = vand.u32 %v45, 4294901760
  %v2205 = vsub.f32 %v45, %v2204
  %v2206 = vand.u32 %v2205, 4294901760
  %v2207 = vsub.f32 %v2205, %v2206
  %v2208 = vand.u32 %v2207, 4294901760
  %2209 = vmatmul.mubr.f32.gmra.mrb[0].mxu0 %v2208
  %v2210 = vpop.f32.mrb[0].mxu0
  %v2211 = vadd.f32 0.0, %v2210
  %v2212 = vpop.f32.mrb[0].mxu0
  %2213 = vmatprep.mubr.f32.mxu0 0.0
  %v2214 = vand.u32 %v494, 4294901760
  %v2215 = vsub.f32 %v494, %v2214
  %v2216 = vand.u32 %v2215, 4294901760
  %v2217 = vsub.f32 %v2215, %v2216
  %v2218 = vand.u32 %v2217, 4294901760
  %2219 = vmatmul.mubr.f32.gmra.mrb[0].mxu0 %v2218
  %v2220 = vpop.f32.mrb[0].mxu0
  %v2221 = vadd.f32 0.0, %v2220
  %v2222 = vpop.f32.mrb[0].mxu0
  %2223 = vmatprep.mubr.f32.mxu0 0.0
  %v2224 = vand.u32 %v943, 4294901760
  %v2225 = vsub.f32 %v943, %v2224
  %v2226 = vand.u32 %v2225, 4294901760
  %v2227 = vsub.f32 %v2225, %v2226
  %v2228 = vand.u32 %v2227, 4294901760
  %2229 = vmatmul.mubr.f32.gmra.mrb[0].mxu0 %v2228
  %v2230 = vpop.f32.mrb[0].mxu0
  %v2231 = vadd.f32 0.0, %v2230
  %v2232 = vpop.f32.mrb[0].mxu0
  %2233 = vdwg.mxu0
  %2234 = vmatprep.subr.mxu0 0.0
  %v2235 = vand.u32 %v1392, 4294901760
  %v2236 = vsub.f32 %v1392, %v2235
  %v2237 = vand.u32 %v2236, 4294901760
  %v2238 = vsub.f32 %v2236, %v2237
  %v2239 = vand.u32 %v2238, 4294901760
  %2240 = vmatpush1.xpose.msra.mxu0 %v2239
  %2241 = vmatprep.subr.mxu0 0.0
  %2242 = vmatpush1.xpose.msra.mxu0 0.0
  %2243 = vmatprep.subr.mxu0 0.0
  %2244 = vmatpush1.xpose.msra.mxu0 0.0
  %2245 = vmatprep.subr.mxu0 0.0
  %2246 = vmatpush1.xpose.msra.mxu0 0.0
  %2247 = vmatprep.subr.mxu0 0.0
  %2248 = vmatpush1.xpose.msra.mxu0 0.0
  %2249 = vmatprep.subr.mxu0 0.0
  %2250 = vmatpush1.xpose.msra.mxu0 0.0
  %2251 = vmatprep.subr.mxu0 0.0
  %2252 = vmatpush1.xpose.msra.mxu0 0.0
  %2253 = vmatprep.subr.mxu0 0.0
  %2254 = vmatpush1.xpose.msra.mxu0 0.0
  %2255 = vmatprep.subr.mxu0 0.0
  %2256 = vmatpush1.xpose.msra.mxu0 0.0
  %2257 = vmatprep.subr.mxu0 0.0
  %2258 = vmatpush1.xpose.msra.mxu0 0.0
  %2259 = vmatprep.subr.mxu0 0.0
  %2260 = vmatpush1.xpose.msra.mxu0 0.0
  %2261 = vmatprep.subr.mxu0 0.0
  %2262 = vmatpush1.xpose.msra.mxu0 0.0
  %2263 = vmatprep.subr.mxu0 0.0
  %2264 = vmatpush1.xpose.msra.mxu0 0.0
  %2265 = vmatprep.subr.mxu0 0.0
  %2266 = vmatpush1.xpose.msra.mxu0 0.0
  %2267 = vmatprep.subr.mxu0 0.0
  %2268 = vmatpush1.xpose.msra.mxu0 0.0
  %2269 = vmatprep.subr.mxu0 0.0
  %2270 = vmatpush1.xpose.msra.mxu0 0.0
  %2271 = vmatprep.subr.mxu0 0.0
  %2272 = vmatpush1.xpose.msra.mxu0 0.0
  %2273 = vmatprep.subr.mxu0 0.0
  %2274 = vmatpush1.xpose.msra.mxu0 0.0
  %2275 = vmatprep.subr.mxu0 0.0
  %2276 = vmatpush1.xpose.msra.mxu0 0.0
  %2277 = vmatprep.subr.mxu0 0.0
  %2278 = vmatpush1.xpose.msra.mxu0 0.0
  %2279 = vmatprep.subr.mxu0 0.0
  %2280 = vmatpush1.xpose.msra.mxu0 0.0
  %2281 = vmatprep.subr.mxu0 0.0
  %2282 = vmatpush1.xpose.msra.mxu0 0.0
  %2283 = vmatprep.subr.mxu0 0.0
  %2284 = vmatpush1.xpose.msra.mxu0 0.0
  %2285 = vmatprep.subr.mxu0 0.0
  %2286 = vmatpush1.xpose.msra.mxu0 0.0
  %2287 = vmatprep.subr.mxu0 0.0
  %2288 = vmatpush1.xpose.msra.mxu0 0.0
  %2289 = vmatprep.subr.mxu0 0.0
  %2290 = vmatpush1.xpose.msra.mxu0 0.0
  %2291 = vmatprep.subr.mxu0 0.0
  %2292 = vmatpush1.xpose.msra.mxu0 0.0
  %2293 = vmatprep.subr.mxu0 0.0
  %2294 = vmatpush1.xpose.msra.mxu0 0.0
  %2295 = vmatprep.subr.mxu0 0.0
  %2296 = vmatpush1.xpose.msra.mxu0 0.0
  %2297 = vmatprep.subr.mxu0 0.0
  %2298 = vmatpush1.xpose.msra.mxu0 0.0
  %2299 = vmatprep.subr.mxu0 0.0
  %2300 = vmatpush1.xpose.msra.mxu0 0.0
  %2301 = vmatprep.subr.mxu0 0.0
  %2302 = vmatpush1.xpose.msra.mxu0 0.0
  %2303 = vmatprep.mubr.f32.mxu0 0.0
  %v2304 = vand.u32 %v45, 4294901760
  %2305 = vmatmul.mubr.f32.gmra.mrb[0].mxu0 %v2304
  %v2306 = vpop.f32.mrb[0].mxu0
  %v2307 = vadd.f32 %v2211, %v2306
  %v2308 = vpop.f32.mrb[0].mxu0
  %2309 = vmatprep.mubr.f32.mxu0 0.0
  %v2310 = vand.u32 %v494, 4294901760
  %2311 = vmatmul.mubr.f32.gmra.mrb[0].mxu0 %v2310
  %v2312 = vpop.f32.mrb[0].mxu0
  %v2313 = vadd.f32 %v2221, %v2312
  %v2314 = vpop.f32.mrb[0].mxu0
  %2315 = vmatprep.mubr.f32.mxu0 0.0
  %v2316 = vand.u32 %v943, 4294901760
  %2317 = vmatmul.mubr.f32.gmra.mrb[0].mxu0 %v2316
  %v2318 = vpop.f32.mrb[0].mxu0
  %v2319 = vadd.f32 %v2231, %v2318
  %v2320 = vpop.f32.mrb[0].mxu0
  %2321 = vdwg.mxu0
  %2322 = vmatprep.subr.mxu0 0.0
  %v2323 = vand.u32 %v1392, 4294901760
  %v2324 = vsub.f32 %v1392, %v2323
  %2325 = vmatpush1.xpose.msra.mxu0 %v2324
  %2326 = vmatprep.subr.mxu0 0.0
  %2327 = vmatpush1.xpose.msra.mxu0 0.0
  %2328 = vmatprep.subr.mxu0 0.0
  %2329 = vmatpush1.xpose.msra.mxu0 0.0
  %2330 = vmatprep.subr.mxu0 0.0
  %2331 = vmatpush1.xpose.msra.mxu0 0.0
  %2332 = vmatprep.subr.mxu0 0.0
  %2333 = vmatpush1.xpose.msra.mxu0 0.0
  %2334 = vmatprep.subr.mxu0 0.0
  %2335 = vmatpush1.xpose.msra.mxu0 0.0
  %2336 = vmatprep.subr.mxu0 0.0
  %2337 = vmatpush1.xpose.msra.mxu0 0.0
  %2338 = vmatprep.subr.mxu0 0.0
  %2339 = vmatpush1.xpose.msra.mxu0 0.0
  %2340 = vmatprep.subr.mxu0 0.0
  %2341 = vmatpush1.xpose.msra.mxu0 0.0
  %2342 = vmatprep.subr.mxu0 0.0
  %2343 = vmatpush1.xpose.msra.mxu0 0.0
  %2344 = vmatprep.subr.mxu0 0.0
  %2345 = vmatpush1.xpose.msra.mxu0 0.0
  %2346 = vmatprep.subr.mxu0 0.0
  %2347 = vmatpush1.xpose.msra.mxu0 0.0
  %2348 = vmatprep.subr.mxu0 0.0
  %2349 = vmatpush1.xpose.msra.mxu0 0.0
  %2350 = vmatprep.subr.mxu0 0.0
  %2351 = vmatpush1.xpose.msra.mxu0 0.0
  %2352 = vmatprep.subr.mxu0 0.0
  %2353 = vmatpush1.xpose.msra.mxu0 0.0
  %2354 = vmatprep.subr.mxu0 0.0
  %2355 = vmatpush1.xpose.msra.mxu0 0.0
  %2356 = vmatprep.subr.mxu0 0.0
  %2357 = vmatpush1.xpose.msra.mxu0 0.0
  %2358 = vmatprep.subr.mxu0 0.0
  %2359 = vmatpush1.xpose.msra.mxu0 0.0
  %2360 = vmatprep.subr.mxu0 0.0
  %2361 = vmatpush1.xpose.msra.mxu0 0.0
  %2362 = vmatprep.subr.mxu0 0.0
  %2363 = vmatpush1.xpose.msra.mxu0 0.0
  %2364 = vmatprep.subr.mxu0 0.0
  %2365 = vmatpush1.xpose.msra.mxu0 0.0
  %2366 = vmatprep.subr.mxu0 0.0
  %2367 = vmatpush1.xpose.msra.mxu0 0.0
  %2368 = vmatprep.subr.mxu0 0.0
  %2369 = vmatpush1.xpose.msra.mxu0 0.0
  %2370 = vmatprep.subr.mxu0 0.0
  %2371 = vmatpush1.xpose.msra.mxu0 0.0
  %2372 = vmatprep.subr.mxu0 0.0
  %2373 = vmatpush1.xpose.msra.mxu0 0.0
  %2374 = vmatprep.subr.mxu0 0.0
  %2375 = vmatpush1.xpose.msra.mxu0 0.0
  %2376 = vmatprep.subr.mxu0 0.0
  %2377 = vmatpush1.xpose.msra.mxu0 0.0
  %2378 = vmatprep.subr.mxu0 0.0
  %2379 = vmatpush1.xpose.msra.mxu0 0.0
  %2380 = vmatprep.subr.mxu0 0.0
  %2381 = vmatpush1.xpose.msra.mxu0 0.0
  %2382 = vmatprep.subr.mxu0 0.0
  %2383 = vmatpush1.xpose.msra.mxu0 0.0
  %2384 = vmatprep.subr.mxu0 0.0
  %2385 = vmatpush1.xpose.msra.mxu0 0.0
  %2386 = vmatprep.subr.mxu0 0.0
  %2387 = vmatpush1.xpose.msra.mxu0 0.0
  %2388 = vmatprep.mubr.f32.mxu0 0.0
  %v2389 = vand.u32 %v45, 4294901760
  %v2390 = vsub.f32 %v45, %v2389
  %2391 = vmatmul.mubr.f32.gmra.mrb[0].mxu0 %v2390
  %v2392 = vpop.f32.mrb[0].mxu0
  %v2393 = vadd.f32 %v2307, %v2392
  %v2394 = vpop.f32.mrb[0].mxu0
  %2395 = vmatprep.mubr.f32.mxu0 0.0
  %v2396 = vand.u32 %v494, 4294901760
  %v2397 = vsub.f32 %v494, %v2396
  %2398 = vmatmul.mubr.f32.gmra.mrb[0].mxu0 %v2397
  %v2399 = vpop.f32.mrb[0].mxu0
  %v2400 = vadd.f32 %v2313, %v2399
  %v2401 = vpop.f32.mrb[0].mxu0
  %2402 = vmatprep.mubr.f32.mxu0 0.0
  %v2403 = vand.u32 %v943, 4294901760
  %v2404 = vsub.f32 %v943, %v2403
  %2405 = vmatmul.mubr.f32.gmra.mrb[0].mxu0 %v2404
  %v2406 = vpop.f32.mrb[0].mxu0
  %v2407 = vadd.f32 %v2319, %v2406
  %v2408 = vpop.f32.mrb[0].mxu0
  %2409 = vdwg.mxu0
  %2410 = vmatprep.subr.mxu0 0.0
  %v2411 = vand.u32 %v1392, 4294901760
  %2412 = vmatpush1.xpose.msra.mxu0 %v2411
  %2413 = vmatprep.subr.mxu0 0.0
  %2414 = vmatpush1.xpose.msra.mxu0 0.0
  %2415 = vmatprep.subr.mxu0 0.0
  %2416 = vmatpush1.xpose.msra.mxu0 0.0
  %2417 = vmatprep.subr.mxu0 0.0
  %2418 = vmatpush1.xpose.msra.mxu0 0.0
  %2419 = vmatprep.subr.mxu0 0.0
  %2420 = vmatpush1.xpose.msra.mxu0 0.0
  %2421 = vmatprep.subr.mxu0 0.0
  %2422 = vmatpush1.xpose.msra.mxu0 0.0
  %2423 = vmatprep.subr.mxu0 0.0
  %2424 = vmatpush1.xpose.msra.mxu0 0.0
  %2425 = vmatprep.subr.mxu0 0.0
  %2426 = vmatpush1.xpose.msra.mxu0 0.0
  %2427 = vmatprep.subr.mxu0 0.0
  %2428 = vmatpush1.xpose.msra.mxu0 0.0
  %2429 = vmatprep.subr.mxu0 0.0
  %2430 = vmatpush1.xpose.msra.mxu0 0.0
  %2431 = vmatprep.subr.mxu0 0.0
  %2432 = vmatpush1.xpose.msra.mxu0 0.0
  %2433 = vmatprep.subr.mxu0 0.0
  %2434 = vmatpush1.xpose.msra.mxu0 0.0
  %2435 = vmatprep.subr.mxu0 0.0
  %2436 = vmatpush1.xpose.msra.mxu0 0.0
  %2437 = vmatprep.subr.mxu0 0.0
  %2438 = vmatpush1.xpose.msra.mxu0 0.0
  %2439 = vmatprep.subr.mxu0 0.0
  %2440 = vmatpush1.xpose.msra.mxu0 0.0
  %2441 = vmatprep.subr.mxu0 0.0
  %2442 = vmatpush1.xpose.msra.mxu0 0.0
  %2443 = vmatprep.subr.mxu0 0.0
  %2444 = vmatpush1.xpose.msra.mxu0 0.0
  %2445 = vmatprep.subr.mxu0 0.0
  %2446 = vmatpush1.xpose.msra.mxu0 0.0
  %2447 = vmatprep.subr.mxu0 0.0
  %2448 = vmatpush1.xpose.msra.mxu0 0.0
  %2449 = vmatprep.subr.mxu0 0.0
  %2450 = vmatpush1.xpose.msra.mxu0 0.0
  %2451 = vmatprep.subr.mxu0 0.0
  %2452 = vmatpush1.xpose.msra.mxu0 0.0
  %2453 = vmatprep.subr.mxu0 0.0
  %2454 = vmatpush1.xpose.msra.mxu0 0.0
  %2455 = vmatprep.subr.mxu0 0.0
  %2456 = vmatpush1.xpose.msra.mxu0 0.0
  %2457 = vmatprep.subr.mxu0 0.0
  %2458 = vmatpush1.xpose.msra.mxu0 0.0
  %2459 = vmatprep.subr.mxu0 0.0
  %2460 = vmatpush1.xpose.msra.mxu0 0.0
  %2461 = vmatprep.subr.mxu0 0.0
  %2462 = vmatpush1.xpose.msra.mxu0 0.0
  %2463 = vmatprep.subr.mxu0 0.0
  %2464 = vmatpush1.xpose.msra.mxu0 0.0
  %2465 = vmatprep.subr.mxu0 0.0
  %2466 = vmatpush1.xpose.msra.mxu0 0.0
  %2467 = vmatprep.subr.mxu0 0.0
  %2468 = vmatpush1.xpose.msra.mxu0 0.0
  %2469 = vmatprep.subr.mxu0 0.0
  %2470 = vmatpush1.xpose.msra.mxu0 0.0
  %2471 = vmatprep.subr.mxu0 0.0
  %2472 = vmatpush1.xpose.msra.mxu0 0.0
  %2473 = vmatprep.subr.mxu0 0.0
  %2474 = vmatpush1.xpose.msra.mxu0 0.0
  %2475 = vmatprep.mubr.f32.mxu0 0.0
  %v2476 = vand.u32 %v45, 4294901760
  %v2477 = vsub.f32 %v45, %v2476
  %v2478 = vand.u32 %v2477, 4294901760
  %2479 = vmatmul.mubr.f32.gmra.mrb[0].mxu0 %v2478
  %v2480 = vpop.f32.mrb[0].mxu0
  %v2481 = vadd.f32 %v2393, %v2480
  %v2482 = vpop.f32.mrb[0].mxu0
  %2483 = vmatprep.mubr.f32.mxu0 0.0
  %v2484 = vand.u32 %v494, 4294901760
  %v2485 = vsub.f32 %v494, %v2484
  %v2486 = vand.u32 %v2485, 4294901760
  %2487 = vmatmul.mubr.f32.gmra.mrb[0].mxu0 %v2486
  %v2488 = vpop.f32.mrb[0].mxu0
  %v2489 = vadd.f32 %v2400, %v2488
  %v2490 = vpop.f32.mrb[0].mxu0
  %2491 = vmatprep.mubr.f32.mxu0 0.0
  %v2492 = vand.u32 %v943, 4294901760
  %v2493 = vsub.f32 %v943, %v2492
  %v2494 = vand.u32 %v2493, 4294901760
  %2495 = vmatmul.mubr.f32.gmra.mrb[0].mxu0 %v2494
  %v2496 = vpop.f32.mrb[0].mxu0
  %v2497 = vadd.f32 %v2407, %v2496
  %v2498 = vpop.f32.mrb[0].mxu0
  %2499 = vdwg.mxu0
  %2500 = vmatprep.subr.mxu0 0.0
  %v2501 = vand.u32 %v1392, 4294901760
  %v2502 = vsub.f32 %v1392, %v2501
  %v2503 = vand.u32 %v2502, 4294901760
  %2504 = vmatpush1.xpose.msra.mxu0 %v2503
  %2505 = vmatprep.subr.mxu0 0.0
  %2506 = vmatpush1.xpose.msra.mxu0 0.0
  %2507 = vmatprep.subr.mxu0 0.0
  %2508 = vmatpush1.xpose.msra.mxu0 0.0
  %2509 = vmatprep.subr.mxu0 0.0
  %2510 = vmatpush1.xpose.msra.mxu0 0.0
  %2511 = vmatprep.subr.mxu0 0.0
  %2512 = vmatpush1.xpose.msra.mxu0 0.0
  %2513 = vmatprep.subr.mxu0 0.0
  %2514 = vmatpush1.xpose.msra.mxu0 0.0
  %2515 = vmatprep.subr.mxu0 0.0
  %2516 = vmatpush1.xpose.msra.mxu0 0.0
  %2517 = vmatprep.subr.mxu0 0.0
  %2518 = vmatpush1.xpose.msra.mxu0 0.0
  %2519 = vmatprep.subr.mxu0 0.0
  %2520 = vmatpush1.xpose.msra.mxu0 0.0
  %2521 = vmatprep.subr.mxu0 0.0
  %2522 = vmatpush1.xpose.msra.mxu0 0.0
  %2523 = vmatprep.subr.mxu0 0.0
  %2524 = vmatpush1.xpose.msra.mxu0 0.0
  %2525 = vmatprep.subr.mxu0 0.0
  %2526 = vmatpush1.xpose.msra.mxu0 0.0
  %2527 = vmatprep.subr.mxu0 0.0
  %2528 = vmatpush1.xpose.msra.mxu0 0.0
  %2529 = vmatprep.subr.mxu0 0.0
  %2530 = vmatpush1.xpose.msra.mxu0 0.0
  %2531 = vmatprep.subr.mxu0 0.0
  %2532 = vmatpush1.xpose.msra.mxu0 0.0
  %2533 = vmatprep.subr.mxu0 0.0
  %2534 = vmatpush1.xpose.msra.mxu0 0.0
  %2535 = vmatprep.subr.mxu0 0.0
  %2536 = vmatpush1.xpose.msra.mxu0 0.0
  %2537 = vmatprep.subr.mxu0 0.0
  %2538 = vmatpush1.xpose.msra.mxu0 0.0
  %2539 = vmatprep.subr.mxu0 0.0
  %2540 = vmatpush1.xpose.msra.mxu0 0.0
  %2541 = vmatprep.subr.mxu0 0.0
  %2542 = vmatpush1.xpose.msra.mxu0 0.0
  %2543 = vmatprep.subr.mxu0 0.0
  %2544 = vmatpush1.xpose.msra.mxu0 0.0
  %2545 = vmatprep.subr.mxu0 0.0
  %2546 = vmatpush1.xpose.msra.mxu0 0.0
  %2547 = vmatprep.subr.mxu0 0.0
  %2548 = vmatpush1.xpose.msra.mxu0 0.0
  %2549 = vmatprep.subr.mxu0 0.0
  %2550 = vmatpush1.xpose.msra.mxu0 0.0
  %2551 = vmatprep.subr.mxu0 0.0
  %2552 = vmatpush1.xpose.msra.mxu0 0.0
  %2553 = vmatprep.subr.mxu0 0.0
  %2554 = vmatpush1.xpose.msra.mxu0 0.0
  %2555 = vmatprep.subr.mxu0 0.0
  %2556 = vmatpush1.xpose.msra.mxu0 0.0
  %2557 = vmatprep.subr.mxu0 0.0
  %2558 = vmatpush1.xpose.msra.mxu0 0.0
  %2559 = vmatprep.subr.mxu0 0.0
  %2560 = vmatpush1.xpose.msra.mxu0 0.0
  %2561 = vmatprep.subr.mxu0 0.0
  %2562 = vmatpush1.xpose.msra.mxu0 0.0
  %2563 = vmatprep.subr.mxu0 0.0
  %2564 = vmatpush1.xpose.msra.mxu0 0.0
  %2565 = vmatprep.subr.mxu0 0.0
  %2566 = vmatpush1.xpose.msra.mxu0 0.0
  %2567 = vmatprep.mubr.f32.mxu0 0.0
  %v2568 = vand.u32 %v45, 4294901760
  %2569 = vmatmul.mubr.f32.gmra.mrb[0].mxu0 %v2568
  %v2570 = vpop.f32.mrb[0].mxu0
  %v2571 = vadd.f32 %v2481, %v2570
  %v2572 = vpop.f32.mrb[0].mxu0
  %2573 = vmatprep.mubr.f32.mxu0 0.0
  %v2574 = vand.u32 %v494, 4294901760
  %2575 = vmatmul.mubr.f32.gmra.mrb[0].mxu0 %v2574
  %v2576 = vpop.f32.mrb[0].mxu0
  %v2577 = vadd.f32 %v2489, %v2576
  %v2578 = vpop.f32.mrb[0].mxu0
  %2579 = vmatprep.mubr.f32.mxu0 0.0
  %v2580 = vand.u32 %v943, 4294901760
  %2581 = vmatmul.mubr.f32.gmra.mrb[0].mxu0 %v2580
  %v2582 = vpop.f32.mrb[0].mxu0
  %v2583 = vadd.f32 %v2497, %v2582
  %v2584 = vpop.f32.mrb[0].mxu0
  %2585 = vdwg.mxu0
  %2586 = vmatprep.subr.mxu0 0.0
  %v2587 = vand.u32 %v1392, 4294901760
  %2588 = vmatpush1.xpose.msra.mxu0 %v2587
  %2589 = vmatprep.subr.mxu0 0.0
  %2590 = vmatpush1.xpose.msra.mxu0 0.0
  %2591 = vmatprep.subr.mxu0 0.0
  %2592 = vmatpush1.xpose.msra.mxu0 0.0
  %2593 = vmatprep.subr.mxu0 0.0
  %2594 = vmatpush1.xpose.msra.mxu0 0.0
  %2595 = vmatprep.subr.mxu0 0.0
  %2596 = vmatpush1.xpose.msra.mxu0 0.0
  %2597 = vmatprep.subr.mxu0 0.0
  %2598 = vmatpush1.xpose.msra.mxu0 0.0
  %2599 = vmatprep.subr.mxu0 0.0
  %2600 = vmatpush1.xpose.msra.mxu0 0.0
  %2601 = vmatprep.subr.mxu0 0.0
  %2602 = vmatpush1.xpose.msra.mxu0 0.0
  %2603 = vmatprep.subr.mxu0 0.0
  %2604 = vmatpush1.xpose.msra.mxu0 0.0
  %2605 = vmatprep.subr.mxu0 0.0
  %2606 = vmatpush1.xpose.msra.mxu0 0.0
  %2607 = vmatprep.subr.mxu0 0.0
  %2608 = vmatpush1.xpose.msra.mxu0 0.0
  %2609 = vmatprep.subr.mxu0 0.0
  %2610 = vmatpush1.xpose.msra.mxu0 0.0
  %2611 = vmatprep.subr.mxu0 0.0
  %2612 = vmatpush1.xpose.msra.mxu0 0.0
  %2613 = vmatprep.subr.mxu0 0.0
  %2614 = vmatpush1.xpose.msra.mxu0 0.0
  %2615 = vmatprep.subr.mxu0 0.0
  %2616 = vmatpush1.xpose.msra.mxu0 0.0
  %2617 = vmatprep.subr.mxu0 0.0
  %2618 = vmatpush1.xpose.msra.mxu0 0.0
  %2619 = vmatprep.subr.mxu0 0.0
  %2620 = vmatpush1.xpose.msra.mxu0 0.0
  %2621 = vmatprep.subr.mxu0 0.0
  %2622 = vmatpush1.xpose.msra.mxu0 0.0
  %2623 = vmatprep.subr.mxu0 0.0
  %2624 = vmatpush1.xpose.msra.mxu0 0.0
  %2625 = vmatprep.subr.mxu0 0.0
  %2626 = vmatpush1.xpose.msra.mxu0 0.0
  %2627 = vmatprep.subr.mxu0 0.0
  %2628 = vmatpush1.xpose.msra.mxu0 0.0
  %2629 = vmatprep.subr.mxu0 0.0
  %2630 = vmatpush1.xpose.msra.mxu0 0.0
  %2631 = vmatprep.subr.mxu0 0.0
  %2632 = vmatpush1.xpose.msra.mxu0 0.0
  %2633 = vmatprep.subr.mxu0 0.0
  %2634 = vmatpush1.xpose.msra.mxu0 0.0
  %2635 = vmatprep.subr.mxu0 0.0
  %2636 = vmatpush1.xpose.msra.mxu0 0.0
  %2637 = vmatprep.subr.mxu0 0.0
  %2638 = vmatpush1.xpose.msra.mxu0 0.0
  %2639 = vmatprep.subr.mxu0 0.0
  %2640 = vmatpush1.xpose.msra.mxu0 0.0
  %2641 = vmatprep.subr.mxu0 0.0
  %2642 = vmatpush1.xpose.msra.mxu0 0.0
  %2643 = vmatprep.subr.mxu0 0.0
  %2644 = vmatpush1.xpose.msra.mxu0 0.0
  %2645 = vmatprep.subr.mxu0 0.0
  %2646 = vmatpush1.xpose.msra.mxu0 0.0
  %2647 = vmatprep.subr.mxu0 0.0
  %2648 = vmatpush1.xpose.msra.mxu0 0.0
  %2649 = vmatprep.subr.mxu0 0.0
  %2650 = vmatpush1.xpose.msra.mxu0 0.0
  %2651 = vmatprep.mubr.f32.mxu0 0.0
  %v2652 = vand.u32 %v45, 4294901760
  %2653 = vmatmul.mubr.f32.gmra.mrb[0].mxu0 %v2652
  %v2654 = vpop.f32.mrb[0].mxu0
  %v2655 = vadd.f32 %v2571, %v2654
  %v2656 = vpop.f32.mrb[0].mxu0
  %2657 = vmatprep.mubr.f32.mxu0 0.0
  %v2658 = vand.u32 %v494, 4294901760
  %2659 = vmatmul.mubr.f32.gmra.mrb[0].mxu0 %v2658
  %v2660 = vpop.f32.mrb[0].mxu0
  %v2661 = vadd.f32 %v2577, %v2660
  %v2662 = vpop.f32.mrb[0].mxu0
  %2663 = vmatprep.mubr.f32.mxu0 0.0
  %v2664 = vand.u32 %v943, 4294901760
  %2665 = vmatmul.mubr.f32.gmra.mrb[0].mxu0 %v2664
  %v2666 = vpop.f32.mrb[0].mxu0
  %v2667 = vadd.f32 %v2583, %v2666
  %v2668 = vpop.f32.mrb[0].mxu0
  %2669 = vdwg.mxu0
  %v2670 = vsel %vm1842, %v2655, -inf
  %2671 = vmax.xlane.f32.xlu0 %v2670
  %v2672 = vpop.xlane.xlu0 %2671
  %v2673 = vsel %vm1842, %v2661, -inf
  %2674 = vmax.xlane.f32.xlu0 %v2673
  %v2675 = vpop.xlane.xlu0 %2674
  %v2676 = vsel %vm1842, %v2667, -inf
  %2677 = vmax.xlane.f32.xlu0 %v2676
  %v2678 = vpop.xlane.xlu0 %2677
  %vm2679 = vcmp.eq.f32.partialorder %v2655, %v2672
  %vm2680 = vcmp.eq.f32.partialorder %v2661, %v2675
  %vm2681 = vcmp.eq.f32.partialorder %v2667, %v2678
  %v2682 = vsel %vm2679, %v1841, 8
  %v2683 = vsel %vm2680, %v1841, 8
  %v2684 = vsel %vm2681, %v1841, 8
  %v2685 = vsel %vm1842, %v2682, 2147483647
  %v2686 = vand.u32 %v2685, 65535
  %v2687 = vshra.s32 %v2685, 16
  %v2688 = vcvt.s32.f32 %v2686
  %v2689 = vcvt.s32.f32 %v2687
  %2690 = vmin.xlane.f32.xlu0 %v2689
  %v2691 = vpop.xlane.xlu0 %2690
  %vm2692 = vcmp.eq.f32.partialorder %v2689, %v2691
  %v2693 = vsel %vm2692, %v2688, inf
  %2694 = vmin.xlane.f32.xlu0 %v2693
  %v2695 = vpop.xlane.xlu0 %2694
  %v2696 = vcvt.f32.s32 %v2695
  %v2697 = vcvt.f32.s32 %v2691
  %v2698 = vshll.u32 %v2697, 16
  %v2699 = vadd.s32 %v2698, %v2696
  %v2700 = vsel %vm1842, %v2683, 2147483647
  %v2701 = vand.u32 %v2700, 65535
  %v2702 = vshra.s32 %v2700, 16
  %v2703 = vcvt.s32.f32 %v2701
  %v2704 = vcvt.s32.f32 %v2702
  %2705 = vmin.xlane.f32.xlu0 %v2704
  %v2706 = vpop.xlane.xlu0 %2705
  %vm2707 = vcmp.eq.f32.partialorder %v2704, %v2706
  %v2708 = vsel %vm2707, %v2703, inf
  %2709 = vmin.xlane.f32.xlu0 %v2708
  %v2710 = vpop.xlane.xlu0 %2709
  %v2711 = vcvt.f32.s32 %v2710
  %v2712 = vcvt.f32.s32 %v2706
  %v2713 = vshll.u32 %v2712, 16
  %v2714 = vadd.s32 %v2713, %v2711
  %v2715 = vsel %vm1842, %v2684, 2147483647
  %v2716 = vand.u32 %v2715, 65535
  %v2717 = vshra.s32 %v2715, 16
  %v2718 = vcvt.s32.f32 %v2716
  %v2719 = vcvt.s32.f32 %v2717
  %2720 = vmin.xlane.f32.xlu0 %v2719
  %v2721 = vpop.xlane.xlu0 %2720
  %vm2722 = vcmp.eq.f32.partialorder %v2719, %v2721
  %v2723 = vsel %vm2722, %v2718, inf
  %2724 = vmin.xlane.f32.xlu0 %v2723
  %v2725 = vpop.xlane.xlu0 %2724
  %v2726 = vcvt.f32.s32 %v2725
  %v2727 = vcvt.f32.s32 %v2721
  %v2728 = vshll.u32 %v2727, 16
  %v2729 = vadd.s32 %v2728, %v2726
  %vm2730 = vcmp.eq.s32.totalorder %v1841, %v2699
  %vm2731 = vcmp.eq.s32.totalorder %v1841, %v2714
  %vm2732 = vcmp.eq.s32.totalorder %v1841, %v2729
  %v2733 = vsel %vm2730, %v2672, 0.0
  %v2734 = vsel %vm2731, %v2675, 0.0
  %v2735 = vsel %vm2732, %v2678, 0.0
  %v2736 = vsel %vm2730, -inf, %v2655
  %v2737 = vsel %vm2731, -inf, %v2661
  %v2738 = vsel %vm2732, -inf, %v2667
  %v2739 = vsel %vm1842, %v2736, -inf
  %2740 = vmax.xlane.f32.xlu0 %v2739
  %v2741 = vpop.xlane.xlu0 %2740
  %v2742 = vsel %vm1842, %v2737, -inf
  %2743 = vmax.xlane.f32.xlu0 %v2742
  %v2744 = vpop.xlane.xlu0 %2743
  %v2745 = vsel %vm1842, %v2738, -inf
  %2746 = vmax.xlane.f32.xlu0 %v2745
  %v2747 = vpop.xlane.xlu0 %2746
  %vm2748 = vcmp.eq.f32.partialorder %v2736, %v2741
  %vm2749 = vcmp.eq.f32.partialorder %v2737, %v2744
  %vm2750 = vcmp.eq.f32.partialorder %v2738, %v2747
  %v2751 = vsel %vm2748, %v1841, 8
  %v2752 = vsel %vm2749, %v1841, 8
  %v2753 = vsel %vm2750, %v1841, 8
  %v2754 = vsel %vm1842, %v2751, 2147483647
  %v2755 = vand.u32 %v2754, 65535
  %v2756 = vshra.s32 %v2754, 16
  %v2757 = vcvt.s32.f32 %v2755
  %v2758 = vcvt.s32.f32 %v2756
  %2759 = vmin.xlane.f32.xlu0 %v2758
  %v2760 = vpop.xlane.xlu0 %2759
  %vm2761 = vcmp.eq.f32.partialorder %v2758, %v2760
  %v2762 = vsel %vm2761, %v2757, inf
  %2763 = vmin.xlane.f32.xlu0 %v2762
  %v2764 = vpop.xlane.xlu0 %2763
  %v2765 = vcvt.f32.s32 %v2764
  %v2766 = vcvt.f32.s32 %v2760
  %v2767 = vshll.u32 %v2766, 16
  %v2768 = vadd.s32 %v2767, %v2765
  %v2769 = vsel %vm1842, %v2752, 2147483647
  %v2770 = vand.u32 %v2769, 65535
  %v2771 = vshra.s32 %v2769, 16
  %v2772 = vcvt.s32.f32 %v2770
  %v2773 = vcvt.s32.f32 %v2771
  %2774 = vmin.xlane.f32.xlu0 %v2773
  %v2775 = vpop.xlane.xlu0 %2774
  %vm2776 = vcmp.eq.f32.partialorder %v2773, %v2775
  %v2777 = vsel %vm2776, %v2772, inf
  %2778 = vmin.xlane.f32.xlu0 %v2777
  %v2779 = vpop.xlane.xlu0 %2778
  %v2780 = vcvt.f32.s32 %v2779
  %v2781 = vcvt.f32.s32 %v2775
  %v2782 = vshll.u32 %v2781, 16
  %v2783 = vadd.s32 %v2782, %v2780
  %v2784 = vsel %vm1842, %v2753, 2147483647
  %v2785 = vand.u32 %v2784, 65535
  %v2786 = vshra.s32 %v2784, 16
  %v2787 = vcvt.s32.f32 %v2785
  %v2788 = vcvt.s32.f32 %v2786
  %2789 = vmin.xlane.f32.xlu0 %v2788
  %v2790 = vpop.xlane.xlu0 %2789
  %vm2791 = vcmp.eq.f32.partialorder %v2788, %v2790
  %v2792 = vsel %vm2791, %v2787, inf
  %2793 = vmin.xlane.f32.xlu0 %v2792
  %v2794 = vpop.xlane.xlu0 %2793
  %v2795 = vcvt.f32.s32 %v2794
  %v2796 = vcvt.f32.s32 %v2790
  %v2797 = vshll.u32 %v2796, 16
  %v2798 = vadd.s32 %v2797, %v2795
  %vm2799 = vcmp.eq.s32.totalorder %v1841, %v2768
  %vm2800 = vcmp.eq.s32.totalorder %v1841, %v2783
  %vm2801 = vcmp.eq.s32.totalorder %v1841, %v2798
  %v2802 = vsel %vm2799, %v2741, %v2733
  %v2803 = vsel %vm2800, %v2744, %v2734
  %v2804 = vsel %vm2801, %v2747, %v2735
  %v2805 = vsel %vm2799, -inf, %v2736
  %v2806 = vsel %vm2800, -inf, %v2737
  %v2807 = vsel %vm2801, -inf, %v2738
  %v2808 = vsel %vm1842, %v2805, -inf
  %2809 = vmax.xlane.f32.xlu0 %v2808
  %v2810 = vpop.xlane.xlu0 %2809
  %v2811 = vsel %vm1842, %v2806, -inf
  %2812 = vmax.xlane.f32.xlu0 %v2811
  %v2813 = vpop.xlane.xlu0 %2812
  %v2814 = vsel %vm1842, %v2807, -inf
  %2815 = vmax.xlane.f32.xlu0 %v2814
  %v2816 = vpop.xlane.xlu0 %2815
  %vm2817 = vcmp.eq.f32.partialorder %v2805, %v2810
  %vm2818 = vcmp.eq.f32.partialorder %v2806, %v2813
  %vm2819 = vcmp.eq.f32.partialorder %v2807, %v2816
  %v2820 = vsel %vm2817, %v1841, 8
  %v2821 = vsel %vm2818, %v1841, 8
  %v2822 = vsel %vm2819, %v1841, 8
  %v2823 = vsel %vm1842, %v2820, 2147483647
  %v2824 = vand.u32 %v2823, 65535
  %v2825 = vshra.s32 %v2823, 16
  %v2826 = vcvt.s32.f32 %v2824
  %v2827 = vcvt.s32.f32 %v2825
  %2828 = vmin.xlane.f32.xlu0 %v2827
  %v2829 = vpop.xlane.xlu0 %2828
  %vm2830 = vcmp.eq.f32.partialorder %v2827, %v2829
  %v2831 = vsel %vm2830, %v2826, inf
  %2832 = vmin.xlane.f32.xlu0 %v2831
  %v2833 = vpop.xlane.xlu0 %2832
  %v2834 = vcvt.f32.s32 %v2833
  %v2835 = vcvt.f32.s32 %v2829
  %v2836 = vshll.u32 %v2835, 16
  %v2837 = vadd.s32 %v2836, %v2834
  %v2838 = vsel %vm1842, %v2821, 2147483647
  %v2839 = vand.u32 %v2838, 65535
  %v2840 = vshra.s32 %v2838, 16
  %v2841 = vcvt.s32.f32 %v2839
  %v2842 = vcvt.s32.f32 %v2840
  %2843 = vmin.xlane.f32.xlu0 %v2842
  %v2844 = vpop.xlane.xlu0 %2843
  %vm2845 = vcmp.eq.f32.partialorder %v2842, %v2844
  %v2846 = vsel %vm2845, %v2841, inf
  %2847 = vmin.xlane.f32.xlu0 %v2846
  %v2848 = vpop.xlane.xlu0 %2847
  %v2849 = vcvt.f32.s32 %v2848
  %v2850 = vcvt.f32.s32 %v2844
  %v2851 = vshll.u32 %v2850, 16
  %v2852 = vadd.s32 %v2851, %v2849
  %v2853 = vsel %vm1842, %v2822, 2147483647
  %v2854 = vand.u32 %v2853, 65535
  %v2855 = vshra.s32 %v2853, 16
  %v2856 = vcvt.s32.f32 %v2854
  %v2857 = vcvt.s32.f32 %v2855
  %2858 = vmin.xlane.f32.xlu0 %v2857
  %v2859 = vpop.xlane.xlu0 %2858
  %vm2860 = vcmp.eq.f32.partialorder %v2857, %v2859
  %v2861 = vsel %vm2860, %v2856, inf
  %2862 = vmin.xlane.f32.xlu0 %v2861
  %v2863 = vpop.xlane.xlu0 %2862
  %v2864 = vcvt.f32.s32 %v2863
  %v2865 = vcvt.f32.s32 %v2859
  %v2866 = vshll.u32 %v2865, 16
  %v2867 = vadd.s32 %v2866, %v2864
  %vm2868 = vcmp.eq.s32.totalorder %v1841, %v2837
  %vm2869 = vcmp.eq.s32.totalorder %v1841, %v2852
  %vm2870 = vcmp.eq.s32.totalorder %v1841, %v2867
  %v2871 = vsel %vm2868, %v2810, %v2802
  %v2872 = vsel %vm2869, %v2813, %v2803
  %v2873 = vsel %vm2870, %v2816, %v2804
  %2874 = vst [vmem:[%s2] sm:$0xff] %v2871
  %2875 = vst [vmem:[%s2 + $0x8] sm:$0xff] %v2872
  %2876 = vst [vmem:[%s2 + $0x10] sm:$0xff] %v2873
  // Predicated region
  $region6: #{adjacency_layer.1} parent=0 // pred_check
    _
  $region7: #{adjacency_layer.1} parent=0 // pred_check_branch
    %2878 = sbr.rel (0) target = $region9
  $region8: #{adjacency_layer.1} parent=0 // pred_region
    _
  $region9: #{adjacency_layer.1} parent=0 // pred_fallthru
    _
  // Predicated region
  $region10: #{adjacency_layer.1} parent=0 // pred_check
    _
  $region11: #{adjacency_layer.1} parent=0 // pred_check_branch
    %2880 = sbr.rel (0) target = $region13
  $region12: #{adjacency_layer.1} parent=0 // pred_region
    _
  $region13: #{adjacency_layer.1} parent=0 // pred_fallthru
    _
  // Predicated region
  $region14: #{adjacency_layer.1} parent=0 // pred_check
    _
  $region15: #{adjacency_layer.1} parent=0 // pred_check_branch
    %2882 = sbr.rel (0) target = $region17
  $region16: #{adjacency_layer.1} parent=0 // pred_region
    _
  $region17: #{adjacency_layer.1} parent=0 // pred_fallthru
    _
  // Predicated region
  $region18: #{adjacency_layer.1} parent=0 // pred_check
    _
  $region19: #{adjacency_layer.1} parent=0 // pred_check_branch
    %2884 = sbr.rel (0) target = $region21
  $region20: #{adjacency_layer.1} parent=0 // pred_region
    _
  $region21: #{adjacency_layer.1} parent=0 // pred_fallthru
    _
  // Predicated region
  $region22: #{adjacency_layer.1} parent=0 // pred_check
    _
  $region23: #{adjacency_layer.1} parent=0 // pred_check_branch
    %2886 = sbr.rel (0) target = $region25
  $region24: #{adjacency_layer.1} parent=0 // pred_region
    _
  $region25: #{adjacency_layer.1} parent=0 // pred_fallthru
    _
  // Predicated region
  $region26: #{adjacency_layer.1} parent=0 // pred_check
    _
  $region27: #{adjacency_layer.1} parent=0 // pred_check_branch
    %2888 = sbr.rel (0) target = $region29
  $region28: #{adjacency_layer.1} parent=0 // pred_region
    _
  $region29: #{adjacency_layer.1} parent=0 // pred_fallthru
    _

</llo_original>
